<compile_context>
chip_gen: v6e
topology: v6e:2x2x1
jax: 0.10.0
libtpu: 0.0.40
codegen_flags: <defaults>
</compile_context>

<pallas_src>
import functools

import jax
import jax.numpy as jnp
from jax.experimental import pallas as pl
from jax.experimental.pallas import tpu as pltpu


LANE = 128  # TPU lane width; channel dims are zero-padded to a multiple of this.


def _round_up(x, m):
    return (x + m - 1) // m * m


# ----------------------------------------------------------------------------
# Kernel 1: fused bilinear x2 upsample (align_corners=True) + 1x1 conv.
#   y_tile = (L_tile @ x_flat) @ W1x1 + b      -- two MXU matmuls per tile.
# ----------------------------------------------------------------------------
def _up1x1_kernel(x_ref, l_ref, w_ref, b_ref, o_ref):
    # x_ref: (1, H*W, Cin_p)   l_ref: (T_rows, H*W)
    # w_ref: (Cin_p, Cp)       b_ref: (1, Cp)       o_ref: (1, T_rows, Cp)
    up = jnp.dot(l_ref[...], x_ref[0], preferred_element_type=jnp.float32)
    y = jnp.dot(up, w_ref[...], preferred_element_type=jnp.float32) + b_ref[...]
    o_ref[0] = y.astype(o_ref.dtype)


def fused_upsample_conv1x1(x1_flat, l_mat, w1x1, b1x1, t_rows):
    """x1_flat: (N, H*W, Cin_p), l_mat: (Ho*Wo, H*W) -> (N, Ho*Wo, Cp)."""
    N, HW, Cin_p = x1_flat.shape
    rows = l_mat.shape[0]
    Cp = w1x1.shape[1]
    n_tiles = rows // t_rows
    return pl.pallas_call(
        _up1x1_kernel,
        out_shape=jax.ShapeDtypeStruct((N, rows, Cp), jnp.float32),
        grid=(N, n_tiles),
        in_specs=[
            pl.BlockSpec((1, HW, Cin_p), lambda n, t: (n, 0, 0)),
            pl.BlockSpec((t_rows, HW), lambda n, t: (t, 0)),
            pl.BlockSpec((Cin_p, Cp), lambda n, t: (0, 0)),
            pl.BlockSpec((1, Cp), lambda n, t: (0, 0)),
        ],
        out_specs=pl.BlockSpec((1, t_rows, Cp), lambda n, t: (n, t, 0)),
        compiler_params=pltpu.CompilerParams(
            dimension_semantics=("parallel", "parallel")),
    )(x1_flat, l_mat, w1x1, b1x1)


# ----------------------------------------------------------------------------
# Kernel 2: 3x3 conv (input pre-padded by 1 spatially) + folded BN + ReLU.
# Supports multiple input branches (channel-concat without materializing it).
# Spatially tiled over output rows; halo stitched from main + 2 tail row blocks.
# ----------------------------------------------------------------------------
def conv3x3_bn_relu(branches, scale, shift, tile_h):
    """branches: list of (x_padded (N, H+2, W+2, Cp), w_im2col (9*Cp, Cp))."""
    N, Hp, Wp, Cp = branches[0][0].shape
    H_out, W_out = Hp - 2, Wp - 2
    n_tiles = H_out // tile_h
    n_br = len(branches)
    rows = tile_h * W_out

    def kernel(*refs):
        o_ref = refs[-1]
        scale_ref = refs[4 * n_br]
        shift_ref = refs[4 * n_br + 1]
        acc = None
        for i in range(n_br):
            xm, xa, xb, w = refs[4 * i:4 * i + 4]
            # Stitch the (tile_h + 2)-row halo window: aligned main block plus
            # two single-row tail blocks (no overlapping BlockSpec windows).
            xwin = jnp.concatenate([xm[0], xa[0], xb[0]], axis=0)
            # im2col -> one lane-dense (rows, 9*Cp) patch matrix -> a single
            # large-K MXU matmul instead of nine small-K dots.
            cols = [
                xwin[kh:kh + tile_h, kw:kw + W_out, :].reshape(rows, Cp)
                for kh in range(3) for kw in range(3)
            ]
            patches = jnp.concatenate(cols, axis=-1)
            part = jnp.dot(patches, w[...], preferred_element_type=jnp.float32)
            acc = part if acc is None else acc + part
        y = jnp.maximum(acc * scale_ref[...] + shift_ref[...], 0.0)
        o_ref[0] = y.reshape(tile_h, W_out, Cp).astype(o_ref.dtype)

    in_specs, inputs = [], []
    for x_pad, w in branches:
        in_specs += [
            pl.BlockSpec((1, tile_h, Wp, Cp), lambda n, t: (n, t, 0, 0)),
            pl.BlockSpec((1, 1, Wp, Cp),
                         lambda n, t: (n, (t + 1) * tile_h, 0, 0)),
            pl.BlockSpec((1, 1, Wp, Cp),
                         lambda n, t: (n, (t + 1) * tile_h + 1, 0, 0)),
            pl.BlockSpec((9 * Cp, Cp), lambda n, t: (0, 0)),
        ]
        inputs += [x_pad, x_pad, x_pad, w]
    in_specs += [pl.BlockSpec((1, Cp), lambda n, t: (0, 0)),
                 pl.BlockSpec((1, Cp), lambda n, t: (0, 0))]
    inputs += [scale, shift]

    return pl.pallas_call(
        kernel,
        out_shape=jax.ShapeDtypeStruct((N, H_out, W_out, Cp), jnp.float32),
        grid=(N, n_tiles),
        in_specs=in_specs,
        out_specs=pl.BlockSpec((1, tile_h, W_out, Cp),
                               lambda n, t: (n, t, 0, 0)),
        compiler_params=pltpu.CompilerParams(
            dimension_semantics=("parallel", "parallel")),
    )(*inputs)


# ----------------------------------------------------------------------------
# Static helpers (trace-time / Python ints only).
# ----------------------------------------------------------------------------
def _interp_matrix(n_in, n_out):
    """Row-stochastic bilinear (align_corners=True) interpolation matrix."""
    if n_in == 1:
        return jnp.ones((n_out, 1), jnp.float32)
    src = jnp.arange(n_out, dtype=jnp.float32) * (n_in - 1) / (n_out - 1)
    i0 = jnp.clip(jnp.floor(src), 0.0, float(n_in - 2))
    frac = src - i0
    cols = jnp.arange(n_in, dtype=jnp.float32)[None, :]
    m = (cols == i0[:, None]) * (1.0 - frac)[:, None] \
        + (cols == (i0 + 1.0)[:, None]) * frac[:, None]
    return m.astype(jnp.float32)


def _pick_row_tile(rows, budget_rows=1024, min_tiles=2):
    cands = [t for t in range(8, rows + 1, 8)
             if rows % t == 0 and t <= budget_rows]
    if not cands:
        return rows
    pref = [t for t in cands if rows // t >= min_tiles]
    return max(pref) if pref else max(cands)


def _pick_tile_h(h_out, w_out, cp, budget_bytes=512 * 1024, min_tiles=2):
    cands = [t for t in range(1, h_out + 1)
             if h_out % t == 0 and t * w_out * cp * 4 <= budget_bytes]
    if not cands:
        return 1
    pref = [t for t in cands if h_out // t >= min_tiles]
    return max(pref) if pref else max(cands)


# ----------------------------------------------------------------------------
# Parameters (PyTorch-equivalent layout) and kernel-ready (padded) parameters.
# ----------------------------------------------------------------------------
def init_params(key, in_channels, out_channels):
    ks = jax.random.split(key, 8)
    eps = 1e-5

    def bn(kg, kb, c):
        gamma = 1.0 + 0.1 * jax.random.normal(kg, (c,), jnp.float32)
        beta = 0.1 * jax.random.normal(kb, (c,), jnp.float32)
        mean = jnp.zeros((c,), jnp.float32)
        var = jnp.ones((c,), jnp.float32)
        scale = gamma / jnp.sqrt(var + eps)
        shift = beta - mean * scale
        return scale, shift

    p = {}
    p["w1x1"] = 0.1 * jax.random.normal(ks[0], (in_channels, out_channels), jnp.float32)
    p["b1x1"] = 0.1 * jax.random.normal(ks[1], (out_channels,), jnp.float32)
    p["w_c1"] = 0.1 * jax.random.normal(
        ks[2], (3, 3, 2 * out_channels, out_channels), jnp.float32)  # HWIO
    p["s1"], p["t1"] = bn(ks[3], ks[4], out_channels)
    p["w_c2"] = 0.1 * jax.random.normal(
        ks[5], (3, 3, out_channels, out_channels), jnp.float32)      # HWIO
    p["s2"], p["t2"] = bn(ks[6], ks[7], out_channels)
    return p


def prepare_params(raw, in_channels, out_channels):
    """Zero-pad channels to the 128-lane width and lay weights out for the kernels."""
    cin_p = _round_up(in_channels, LANE)
    cp = _round_up(out_channels, LANE)

    def pad2(a, r, c):
        return jnp.pad(a, ((0, r - a.shape[0]), (0, c - a.shape[1])))

    def pad_vec(v, c, fill=0.0):
        return jnp.pad(v, (0, c - v.shape[0]), constant_values=fill)

    def im2col_w(w_hwio):
        w = jnp.pad(w_hwio, ((0, 0), (0, 0),
                             (0, cp - w_hwio.shape[2]),
                             (0, cp - w_hwio.shape[3])))
        return w.reshape(9 * cp, cp)  # row index = (kh*3+kw)*cp + cin

    p = {}
    p["w1x1"] = pad2(raw["w1x1"], cin_p, cp)
    p["b1x1"] = pad_vec(raw["b1x1"], cp).reshape(1, cp)
    # first DoubleConv conv: split the concat [skip, upsampled] weight.
    p["w_skip"] = im2col_w(raw["w_c1"][:, :, :out_channels, :])
    p["w_up"] = im2col_w(raw["w_c1"][:, :, out_channels:, :])
    p["s1"] = pad_vec(raw["s1"], cp, fill=1.0).reshape(1, cp)
    p["t1"] = pad_vec(raw["t1"], cp).reshape(1, cp)
    p["w_c2"] = im2col_w(raw["w_c2"])
    p["s2"] = pad_vec(raw["s2"], cp, fill=1.0).reshape(1, cp)
    p["t2"] = pad_vec(raw["t2"], cp).reshape(1, cp)
    return p


# ----------------------------------------------------------------------------
# UpSample forward (NCHW in / NCHW out, matching the PyTorch module).
# ----------------------------------------------------------------------------
@functools.partial(jax.jit, static_argnames=("out_channels",))
def upsample_forward(x1_nchw, x2_nchw, params, *, out_channels):
    x1 = jnp.transpose(x1_nchw, (0, 2, 3, 1))   # NHWC
    x2 = jnp.transpose(x2_nchw, (0, 2, 3, 1))
    N, H, W, Cin = x1.shape
    _, H2, W2, Cskip = x2.shape
    cin_p = params["w1x1"].shape[0]
    cp = params["w1x1"].shape[1]

    # Channel pad to the lane width (zero channels are inert: matching weight
    # rows/cols are zero and the folded-BN shift for padded channels is zero).
    x1p = jnp.pad(x1, ((0, 0), (0, 0), (0, 0), (0, cin_p - Cin)))

    # 1)+2) fused bilinear x2 upsample (align_corners=True) + 1x1 conv.
    Ho, Wo = 2 * H, 2 * W
    # TODO(synk): for very large spatial dims apply Rh/Rw separably instead of
    # materializing the dense kron interpolation matrix.
    l_mat = jnp.kron(_interp_matrix(H, Ho), _interp_matrix(W, Wo))  # (Ho*Wo, H*W)
    t_rows = _pick_row_tile(Ho * Wo)
    y1 = fused_upsample_conv1x1(
        x1p.reshape(N, H * W, cin_p), l_mat, params["w1x1"], params["b1x1"],
        t_rows).reshape(N, Ho, Wo, cp)

    # 3) PyTorch-style asymmetric pad to the skip size, folded into the +1 halo
    #    pad required by the 3x3 conv.
    diffY, diffX = H2 - Ho, W2 - Wo
    y1p = jnp.pad(y1, ((0, 0),
                       (1 + diffY // 2, 1 + diffY - diffY // 2),
                       (1 + diffX // 2, 1 + diffX - diffX // 2),
                       (0, 0)))
    x2p = jnp.pad(x2, ((0, 0), (1, 1), (1, 1), (0, cp - Cskip)))

    # 4)+5a) concat [x2, y1] + conv3x3+BN+ReLU, with the concat realized as two
    #        partial im2col matmuls summed inside the kernel.
    tile_h = _pick_tile_h(H2, W2, cp)
    h1 = conv3x3_bn_relu([(x2p, params["w_skip"]), (y1p, params["w_up"])],
                         params["s1"], params["t1"], tile_h)

    # 5b) second conv3x3+BN+ReLU.
    h1p = jnp.pad(h1, ((0, 0), (1, 1), (1, 1), (0, 0)))
    h2 = conv3x3_bn_relu([(h1p, params["w_c2"])], params["s2"], params["t2"],
                         tile_h)

    return jnp.transpose(h2[..., :out_channels], (0, 3, 1, 2))  # NCHW


# ----------------------------------------------------------------------------
# Pure-JAX reference (mirrors the PyTorch module in eval mode) for a sanity check.
# ----------------------------------------------------------------------------
def _reference_forward(x1_nchw, x2_nchw, raw, out_channels):
    x1 = jnp.transpose(x1_nchw, (0, 2, 3, 1))
    x2 = jnp.transpose(x2_nchw, (0, 2, 3, 1))

    def up2(x):  # bilinear x2, align_corners=True
        n, h, w, c = x.shape
        ho, wo = 2 * h, 2 * w

        def coords(n_in, n_out):
            src = jnp.arange(n_out, dtype=jnp.float32) * (n_in - 1) / max(n_out - 1, 1)
            i0 = jnp.clip(jnp.floor(src).astype(jnp.int32), 0, max(n_in - 2, 0))
            fr = src - i0.astype(jnp.float32)
            i1 = i0 + (1 if n_in > 1 else 0)
            return i0, i1, fr

        h0, h1, fh = coords(h, ho)
        w0, w1, fw = coords(w, wo)
        top, bot = x[:, h0], x[:, h1]
        rows = top + (bot - top) * fh[None, :, None, None]
        left, right = rows[:, :, w0], rows[:, :, w1]
        return left + (right - left) * fw[None, None, :, None]

    def conv3x3(x, w_hwio):
        return jax.lax.conv_general_dilated(
            x, w_hwio, window_strides=(1, 1), padding="SAME",
            dimension_numbers=("NHWC", "HWIO", "NHWC"),
            precision=jax.lax.Precision.HIGHEST)

    y = up2(x1)
    y = jnp.einsum("nhwc,co->nhwo", y, raw["w1x1"],
                   precision=jax.lax.Precision.HIGHEST) + raw["b1x1"]
    dy = x2.shape[1] - y.shape[1]
    dx = x2.shape[2] - y.shape[2]
    y = jnp.pad(y, ((0, 0), (dy // 2, dy - dy // 2),
                    (dx // 2, dx - dx // 2), (0, 0)))
    z = jnp.concatenate([x2, y], axis=-1)
    h = jnp.maximum(conv3x3(z, raw["w_c1"]) * raw["s1"] + raw["t1"], 0.0)
    h = jnp.maximum(conv3x3(h, raw["w_c2"]) * raw["s2"] + raw["t2"], 0.0)
    return jnp.transpose(h[..., :out_channels], (0, 3, 1, 2))


if __name__ == "__main__":
    key = jax.random.PRNGKey(0)
    k_x1, k_x2, k_p = jax.random.split(key, 3)

    in_channels, out_channels = 8, 4
    N, H, W = 2, 8, 8  # x1 spatial; skip x2 is 2H x 2W with out_channels

    x1 = jax.random.normal(k_x1, (N, in_channels, H, W), jnp.float32)          # NCHW
    x2 = jax.random.normal(k_x2, (N, out_channels, 2 * H, 2 * W), jnp.float32)  # NCHW

    raw = init_params(k_p, in_channels, out_channels)
    params = prepare_params(raw, in_channels, out_channels)

    out = upsample_forward(x1, x2, params, out_channels=out_channels)
    jax.block_until_ready(out)
    assert out.shape == (N, out_channels, 2 * H, 2 * W), out.shape

    ref = _reference_forward(x1, x2, raw, out_channels)
    err = float(jnp.max(jnp.abs(out - ref)))
    assert err < 2e-2, f"max abs error vs reference: {err}"

    print("KERNEL_OK")
</pallas_src>

<mosaic_0001>
module attributes {stable_mosaic.version = 11 : i64} {
  func.func @_up1x1_kernel(%arg0: i32, %arg1: i32, %arg2: memref<1x64x128xf32, #tpu.memory_space<vmem>>, %arg3: memref<128x64xf32, #tpu.memory_space<vmem>>, %arg4: memref<128x128xf32, #tpu.memory_space<vmem>>, %arg5: memref<1x128xf32, #tpu.memory_space<vmem>>, %arg6: memref<1x128x128xf32, #tpu.memory_space<vmem>>) attributes {dimension_semantics = [#tpu.dimension_semantics<parallel>, #tpu.dimension_semantics<parallel>], iteration_bounds = array<i64: 2, 2>, scalar_prefetch = 0 : i64, scratch_operands = 0 : i64, tpu.core_type = #tpu.core_type<tc>, window_params = [{transform_indices = @transform_0, window_bounds = array<i64: 1, 64, 128>}, {transform_indices = @transform_1, window_bounds = array<i64: 128, 64>}, {pipeline_mode = #tpu.pipeline_mode<synchronous>, transform_indices = @transform_2, window_bounds = array<i64: 128, 128>}, {pipeline_mode = #tpu.pipeline_mode<synchronous>, transform_indices = @transform_3, window_bounds = array<i64: 1, 128>}, {transform_indices = @transform_4, window_bounds = array<i64: 1, 128, 128>}]} {
    %c0 = arith.constant 0 : index
    %c0_0 = arith.constant 0 : index
    %0 = vector.load %arg3[%c0, %c0_0] : memref<128x64xf32, #tpu.memory_space<vmem>>, vector<128x64xf32>
    %c0_1 = arith.constant 0 : index
    %c0_2 = arith.constant 0 : index
    %c0_3 = arith.constant 0 : index
    %1 = vector.load %arg2[%c0_1, %c0_2, %c0_3] : memref<1x64x128xf32, #tpu.memory_space<vmem>>, vector<1x64x128xf32>
    %2 = vector.shape_cast %1 : vector<1x64x128xf32> to vector<64x128xf32>
    %cst = arith.constant dense<0.000000e+00> : vector<128x128xf32>
    %3 = tpu.matmul %0, %2, %cst {dimension_numbers = #tpu.dot_dimension_numbers<[1], [0], [0], [1], [0, 0, 1, 1], [], []>} : vector<128x64xf32>, vector<64x128xf32>, vector<128x128xf32> -> vector<128x128xf32>
    %c0_4 = arith.constant 0 : index
    %c0_5 = arith.constant 0 : index
    %4 = vector.load %arg4[%c0_4, %c0_5] : memref<128x128xf32, #tpu.memory_space<vmem>>, vector<128x128xf32>
    %cst_6 = arith.constant dense<0.000000e+00> : vector<128x128xf32>
    %5 = tpu.matmul %3, %4, %cst_6 {dimension_numbers = #tpu.dot_dimension_numbers<[1], [0], [0], [1], [0, 0, 1, 1], [], []>} : vector<128x128xf32>, vector<128x128xf32>, vector<128x128xf32> -> vector<128x128xf32>
    %c0_7 = arith.constant 0 : index
    %c0_8 = arith.constant 0 : index
    %6 = vector.load %arg5[%c0_7, %c0_8] : memref<1x128xf32, #tpu.memory_space<vmem>>, vector<1x128xf32>
    %7 = vector.broadcast %6 : vector<1x128xf32> to vector<128x128xf32>
    %8 = arith.addf %5, %7 : vector<128x128xf32>
    %c0_9 = arith.constant 0 : index
    %c0_10 = arith.constant 0 : index
    %c0_11 = arith.constant 0 : index
    %9 = vector.load %arg6[%c0_9, %c0_10, %c0_11] : memref<1x128x128xf32, #tpu.memory_space<vmem>>, vector<1x128x128xf32>
    %10 = vector.shape_cast %9 : vector<1x128x128xf32> to vector<128x128xf32>
    %11 = vector.shape_cast %8 : vector<128x128xf32> to vector<1x128x128xf32>
    tpu.vector_store %arg6[%c0_9, %c0_10, %c0_11], %11 {strides = array<i32>} : memref<1x128x128xf32, #tpu.memory_space<vmem>>, vector<1x128x128xf32>,
    return
  }
  func.func @transform_0(%arg0: i32, %arg1: i32) -> (i32, i32, i32) {
    %c0_i32 = arith.constant 0 : i32
    %c0_i32_0 = arith.constant 0 : i32
    %c0_i32_1 = arith.constant 0 : i32
    return %arg0, %c0_i32, %c0_i32_0 : i32, i32, i32
  }
  func.func @transform_1(%arg0: i32, %arg1: i32) -> (i32, i32) {
    %c0_i32 = arith.constant 0 : i32
    %c0_i32_0 = arith.constant 0 : i32
    return %arg1, %c0_i32 : i32, i32
  }
  func.func @transform_2(%arg0: i32, %arg1: i32) -> (i32, i32) {
    %c0_i32 = arith.constant 0 : i32
    %c0_i32_0 = arith.constant 0 : i32
    %c0_i32_1 = arith.constant 0 : i32
    return %c0_i32, %c0_i32_0 : i32, i32
  }
  func.func @transform_3(%arg0: i32, %arg1: i32) -> (i32, i32) {
    %c0_i32 = arith.constant 0 : i32
    %c0_i32_0 = arith.constant 0 : i32
    %c0_i32_1 = arith.constant 0 : i32
    return %c0_i32, %c0_i32_0 : i32, i32
  }
  func.func @transform_4(%arg0: i32, %arg1: i32) -> (i32, i32, i32) {
    %c0_i32 = arith.constant 0 : i32
    %c0_i32_0 = arith.constant 0 : i32
    return %arg0, %arg1, %c0_i32 : i32, i32, i32
  }
}

module attributes {stable_mosaic.version = 11 : i64} {
  func.func @kernel(%arg0: i32, %arg1: i32, %arg2: memref<1x8x18x128xf32, #tpu.memory_space<vmem>>, %arg3: memref<1x1x18x128xf32, #tpu.memory_space<vmem>>, %arg4: memref<1x1x18x128xf32, #tpu.memory_space<vmem>>, %arg5: memref<1152x128xf32, #tpu.memory_space<vmem>>, %arg6: memref<1x8x18x128xf32, #tpu.memory_space<vmem>>, %arg7: memref<1x1x18x128xf32, #tpu.memory_space<vmem>>, %arg8: memref<1x1x18x128xf32, #tpu.memory_space<vmem>>, %arg9: memref<1152x128xf32, #tpu.memory_space<vmem>>, %arg10: memref<1x128xf32, #tpu.memory_space<vmem>>, %arg11: memref<1x128xf32, #tpu.memory_space<vmem>>, %arg12: memref<1x8x16x128xf32, #tpu.memory_space<vmem>>) attributes {dimension_semantics = [#tpu.dimension_semantics<parallel>, #tpu.dimension_semantics<parallel>], iteration_bounds = array<i64: 2, 2>, scalar_prefetch = 0 : i64, scratch_operands = 0 : i64, tpu.core_type = #tpu.core_type<tc>, window_params = [{transform_indices = @transform_0, window_bounds = array<i64: 1, 8, 18, 128>}, {transform_indices = @transform_1, window_bounds = array<i64: 1, 1, 18, 128>}, {transform_indices = @transform_2, window_bounds = array<i64: 1, 1, 18, 128>}, {pipeline_mode = #tpu.pipeline_mode<synchronous>, transform_indices = @transform_3, window_bounds = array<i64: 1152, 128>}, {transform_indices = @transform_4, window_bounds = array<i64: 1, 8, 18, 128>}, {transform_indices = @transform_5, window_bounds = array<i64: 1, 1, 18, 128>}, {transform_indices = @transform_6, window_bounds = array<i64: 1, 1, 18, 128>}, {pipeline_mode = #tpu.pipeline_mode<synchronous>, transform_indices = @transform_7, window_bounds = array<i64: 1152, 128>}, {pipeline_mode = #tpu.pipeline_mode<synchronous>, transform_indices = @transform_8, window_bounds = array<i64: 1, 128>}, {pipeline_mode = #tpu.pipeline_mode<synchronous>, transform_indices = @transform_9, window_bounds = array<i64: 1, 128>}, {transform_indices = @transform_10, window_bounds = array<i64: 1, 8, 16, 128>}]} {
    %c0 = arith.constant 0 : index
    %c0_0 = arith.constant 0 : index
    %c0_1 = arith.constant 0 : index
    %c0_2 = arith.constant 0 : index
    %0 = vector.load %arg2[%c0, %c0_0, %c0_1, %c0_2] : memref<1x8x18x128xf32, #tpu.memory_space<vmem>>, vector<1x8x18x128xf32>
    %1 = vector.shape_cast %0 : vector<1x8x18x128xf32> to vector<8x18x128xf32>
    %c0_3 = arith.constant 0 : index
    %c0_4 = arith.constant 0 : index
    %c0_5 = arith.constant 0 : index
    %c0_6 = arith.constant 0 : index
    %2 = vector.load %arg3[%c0_3, %c0_4, %c0_5, %c0_6] : memref<1x1x18x128xf32, #tpu.memory_space<vmem>>, vector<1x1x18x128xf32>
    %3 = vector.shape_cast %2 : vector<1x1x18x128xf32> to vector<1x18x128xf32>
    %c0_7 = arith.constant 0 : index
    %c0_8 = arith.constant 0 : index
    %c0_9 = arith.constant 0 : index
    %c0_10 = arith.constant 0 : index
    %4 = vector.load %arg4[%c0_7, %c0_8, %c0_9, %c0_10] : memref<1x1x18x128xf32, #tpu.memory_space<vmem>>, vector<1x1x18x128xf32>
    %5 = vector.shape_cast %4 : vector<1x1x18x128xf32> to vector<1x18x128xf32>
    %6 = tpu.concatenate %1, %3, %5 in 0 : vector<8x18x128xf32>, vector<1x18x128xf32>, vector<1x18x128xf32> -> vector<10x18x128xf32>
    %7 = vector.extract_strided_slice %6 {offsets = [0, 0, 0], sizes = [8, 16, 128], strides = [1, 1, 1]} : vector<10x18x128xf32> to vector<8x16x128xf32>
    %8 = vector.shape_cast %7 : vector<8x16x128xf32> to vector<128x128xf32>
    %9 = vector.extract_strided_slice %6 {offsets = [0, 1, 0], sizes = [8, 16, 128], strides = [1, 1, 1]} : vector<10x18x128xf32> to vector<8x16x128xf32>
    %10 = vector.shape_cast %9 : vector<8x16x128xf32> to vector<128x128xf32>
    %11 = vector.extract_strided_slice %6 {offsets = [0, 2, 0], sizes = [8, 16, 128], strides = [1, 1, 1]} : vector<10x18x128xf32> to vector<8x16x128xf32>
    %12 = vector.shape_cast %11 : vector<8x16x128xf32> to vector<128x128xf32>
    %13 = vector.extract_strided_slice %6 {offsets = [1, 0, 0], sizes = [8, 16, 128], strides = [1, 1, 1]} : vector<10x18x128xf32> to vector<8x16x128xf32>
    %14 = vector.shape_cast %13 : vector<8x16x128xf32> to vector<128x128xf32>
    %15 = vector.extract_strided_slice %6 {offsets = [1, 1, 0], sizes = [8, 16, 128], strides = [1, 1, 1]} : vector<10x18x128xf32> to vector<8x16x128xf32>
    %16 = vector.shape_cast %15 : vector<8x16x128xf32> to vector<128x128xf32>
    %17 = vector.extract_strided_slice %6 {offsets = [1, 2, 0], sizes = [8, 16, 128], strides = [1, 1, 1]} : vector<10x18x128xf32> to vector<8x16x128xf32>
    %18 = vector.shape_cast %17 : vector<8x16x128xf32> to vector<128x128xf32>
    %19 = vector.extract_strided_slice %6 {offsets = [2, 0, 0], sizes = [8, 16, 128], strides = [1, 1, 1]} : vector<10x18x128xf32> to vector<8x16x128xf32>
    %20 = vector.shape_cast %19 : vector<8x16x128xf32> to vector<128x128xf32>
    %21 = vector.extract_strided_slice %6 {offsets = [2, 1, 0], sizes = [8, 16, 128], strides = [1, 1, 1]} : vector<10x18x128xf32> to vector<8x16x128xf32>
    %22 = vector.shape_cast %21 : vector<8x16x128xf32> to vector<128x128xf32>
    %23 = vector.extract_strided_slice %6 {offsets = [2, 2, 0], sizes = [8, 16, 128], strides = [1, 1, 1]} : vector<10x18x128xf32> to vector<8x16x128xf32>
    %24 = vector.shape_cast %23 : vector<8x16x128xf32> to vector<128x128xf32>
    %25 = tpu.concatenate %8, %10, %12, %14, %16, %18, %20, %22, %24 in 1 : vector<128x128xf32>, vector<128x128xf32>, vector<128x128xf32>, vector<128x128xf32>, vector<128x128xf32>, vector<128x128xf32>, vector<128x128xf32>, vector<128x128xf32>, vector<128x128xf32> -> vector<128x1152xf32>
    %c0_11 = arith.constant 0 : index
    %c0_12 = arith.constant 0 : index
    %26 = vector.load %arg5[%c0_11, %c0_12] : memref<1152x128xf32, #tpu.memory_space<vmem>>, vector<1152x128xf32>
    %cst = arith.constant dense<0.000000e+00> : vector<128x128xf32>
    %27 = tpu.matmul %25, %26, %cst {dimension_numbers = #tpu.dot_dimension_numbers<[1], [0], [0], [1], [0, 0, 1, 1], [], []>} : vector<128x1152xf32>, vector<1152x128xf32>, vector<128x128xf32> -> vector<128x128xf32>
    %c0_13 = arith.constant 0 : index
    %c0_14 = arith.constant 0 : index
    %c0_15 = arith.constant 0 : index
    %c0_16 = arith.constant 0 : index
    %28 = vector.load %arg6[%c0_13, %c0_14, %c0_15, %c0_16] : memref<1x8x18x128xf32, #tpu.memory_space<vmem>>, vector<1x8x18x128xf32>
    %29 = vector.shape_cast %28 : vector<1x8x18x128xf32> to vector<8x18x128xf32>
    %c0_17 = arith.constant 0 : index
    %c0_18 = arith.constant 0 : index
    %c0_19 = arith.constant 0 : index
    %c0_20 = arith.constant 0 : index
    %30 = vector.load %arg7[%c0_17, %c0_18, %c0_19, %c0_20] : memref<1x1x18x128xf32, #tpu.memory_space<vmem>>, vector<1x1x18x128xf32>
    %31 = vector.shape_cast %30 : vector<1x1x18x128xf32> to vector<1x18x128xf32>
    %c0_21 = arith.constant 0 : index
    %c0_22 = arith.constant 0 : index
    %c0_23 = arith.constant 0 : index
    %c0_24 = arith.constant 0 : index
    %32 = vector.load %arg8[%c0_21, %c0_22, %c0_23, %c0_24] : memref<1x1x18x128xf32, #tpu.memory_space<vmem>>, vector<1x1x18x128xf32>
    %33 = vector.shape_cast %32 : vector<1x1x18x128xf32> to vector<1x18x128xf32>
    %34 = tpu.concatenate %29, %31, %33 in 0 : vector<8x18x128xf32>, vector<1x18x128xf32>, vector<1x18x128xf32> -> vector<10x18x128xf32>
    %35 = vector.extract_strided_slice %34 {offsets = [0, 0, 0], sizes = [8, 16, 128], strides = [1, 1, 1]} : vector<10x18x128xf32> to vector<8x16x128xf32>
    %36 = vector.shape_cast %35 : vector<8x16x128xf32> to vector<128x128xf32>
    %37 = vector.extract_strided_slice %34 {offsets = [0, 1, 0], sizes = [8, 16, 128], strides = [1, 1, 1]} : vector<10x18x128xf32> to vector<8x16x128xf32>
    %38 = vector.shape_cast %37 : vector<8x16x128xf32> to vector<128x128xf32>
    %39 = vector.extract_strided_slice %34 {offsets = [0, 2, 0], sizes = [8, 16, 128], strides = [1, 1, 1]} : vector<10x18x128xf32> to vector<8x16x128xf32>
    %40 = vector.shape_cast %39 : vector<8x16x128xf32> to vector<128x128xf32>
    %41 = vector.extract_strided_slice %34 {offsets = [1, 0, 0], sizes = [8, 16, 128], strides = [1, 1, 1]} : vector<10x18x128xf32> to vector<8x16x128xf32>
    %42 = vector.shape_cast %41 : vector<8x16x128xf32> to vector<128x128xf32>
    %43 = vector.extract_strided_slice %34 {offsets = [1, 1, 0], sizes = [8, 16, 128], strides = [1, 1, 1]} : vector<10x18x128xf32> to vector<8x16x128xf32>
    %44 = vector.shape_cast %43 : vector<8x16x128xf32> to vector<128x128xf32>
    %45 = vector.extract_strided_slice %34 {offsets = [1, 2, 0], sizes = [8, 16, 128], strides = [1, 1, 1]} : vector<10x18x128xf32> to vector<8x16x128xf32>
    %46 = vector.shape_cast %45 : vector<8x16x128xf32> to vector<128x128xf32>
    %47 = vector.extract_strided_slice %34 {offsets = [2, 0, 0], sizes = [8, 16, 128], strides = [1, 1, 1]} : vector<10x18x128xf32> to vector<8x16x128xf32>
    %48 = vector.shape_cast %47 : vector<8x16x128xf32> to vector<128x128xf32>
    %49 = vector.extract_strided_slice %34 {offsets = [2, 1, 0], sizes = [8, 16, 128], strides = [1, 1, 1]} : vector<10x18x128xf32> to vector<8x16x128xf32>
    %50 = vector.shape_cast %49 : vector<8x16x128xf32> to vector<128x128xf32>
    %51 = vector.extract_strided_slice %34 {offsets = [2, 2, 0], sizes = [8, 16, 128], strides = [1, 1, 1]} : vector<10x18x128xf32> to vector<8x16x128xf32>
    %52 = vector.shape_cast %51 : vector<8x16x128xf32> to vector<128x128xf32>
    %53 = tpu.concatenate %36, %38, %40, %42, %44, %46, %48, %50, %52 in 1 : vector<128x128xf32>, vector<128x128xf32>, vector<128x128xf32>, vector<128x128xf32>, vector<128x128xf32>, vector<128x128xf32>, vector<128x128xf32>, vector<128x128xf32>, vector<128x128xf32> -> vector<128x1152xf32>
    %c0_25 = arith.constant 0 : index
    %c0_26 = arith.constant 0 : index
    %54 = vector.load %arg9[%c0_25, %c0_26] : memref<1152x128xf32, #tpu.memory_space<vmem>>, vector<1152x128xf32>
    %cst_27 = arith.constant dense<0.000000e+00> : vector<128x128xf32>
    %55 = tpu.matmul %53, %54, %cst_27 {dimension_numbers = #tpu.dot_dimension_numbers<[1], [0], [0], [1], [0, 0, 1, 1], [], []>} : vector<128x1152xf32>, vector<1152x128xf32>, vector<128x128xf32> -> vector<128x128xf32>
    %56 = arith.addf %27, %55 : vector<128x128xf32>
    %c0_28 = arith.constant 0 : index
    %c0_29 = arith.constant 0 : index
    %57 = vector.load %arg10[%c0_28, %c0_29] : memref<1x128xf32, #tpu.memory_space<vmem>>, vector<1x128xf32>
    %58 = vector.broadcast %57 : vector<1x128xf32> to vector<128x128xf32>
    %59 = arith.mulf %56, %58 : vector<128x128xf32>
    %c0_30 = arith.constant 0 : index
    %c0_31 = arith.constant 0 : index
    %60 = vector.load %arg11[%c0_30, %c0_31] : memref<1x128xf32, #tpu.memory_space<vmem>>, vector<1x128xf32>
    %61 = vector.broadcast %60 : vector<1x128xf32> to vector<128x128xf32>
    %62 = arith.addf %59, %61 : vector<128x128xf32>
    %cst_32 = arith.constant 0.000000e+00 : f32
    %63 = vector.broadcast %cst_32 : f32 to vector<128x128xf32>
    %64 = arith.maximumf %62, %63 : vector<128x128xf32>
    %65 = vector.shape_cast %64 : vector<128x128xf32> to vector<8x16x128xf32>
    %c0_33 = arith.constant 0 : index
    %c0_34 = arith.constant 0 : index
    %c0_35 = arith.constant 0 : index
    %c0_36 = arith.constant 0 : index
    %66 = vector.load %arg12[%c0_33, %c0_34, %c0_35, %c0_36] : memref<1x8x16x128xf32, #tpu.memory_space<vmem>>, vector<1x8x16x128xf32>
    %67 = vector.shape_cast %66 : vector<1x8x16x128xf32> to vector<8x16x128xf32>
    %68 = vector.shape_cast %65 : vector<8x16x128xf32> to vector<1x8x16x128xf32>
    tpu.vector_store %arg12[%c0_33, %c0_34, %c0_35, %c0_36], %68 {strides = array<i32>} : memref<1x8x16x128xf32, #tpu.memory_space<vmem>>, vector<1x8x16x128xf32>,
    return
  }
  func.func @transform_0(%arg0: i32, %arg1: i32) -> (i32, i32, i32, i32) {
    %c0_i32 = arith.constant 0 : i32
    %c0_i32_0 = arith.constant 0 : i32
    %c0_i32_1 = arith.constant 0 : i32
    return %arg0, %arg1, %c0_i32, %c0_i32_0 : i32, i32, i32, i32
  }
  func.func @transform_1(%arg0: i32, %arg1: i32) -> (i32, i32, i32, i32) {
    %c1_i32 = arith.constant 1 : i32
    %0 = arith.addi %arg1, %c1_i32 : i32
    %c8_i32 = arith.constant 8 : i32
    %1 = arith.muli %0, %c8_i32 : i32
    %c0_i32 = arith.constant 0 : i32
    %c0_i32_0 = arith.constant 0 : i32
    %c0_i32_1 = arith.constant 0 : i32
    return %arg0, %1, %c0_i32, %c0_i32_0 : i32, i32, i32, i32
  }
  func.func @transform_2(%arg0: i32, %arg1: i32) -> (i32, i32, i32, i32) {
    %c1_i32 = arith.constant 1 : i32
    %0 = arith.addi %arg1, %c1_i32 : i32
    %c8_i32 = arith.constant 8 : i32
    %1 = arith.muli %0, %c8_i32 : i32
    %c1_i32_0 = arith.constant 1 : i32
    %2 = arith.addi %1, %c1_i32_0 : i32
    %c0_i32 = arith.constant 0 : i32
    %c0_i32_1 = arith.constant 0 : i32
    %c0_i32_2 = arith.constant 0 : i32
    return %arg0, %2, %c0_i32, %c0_i32_1 : i32, i32, i32, i32
  }
  func.func @transform_3(%arg0: i32, %arg1: i32) -> (i32, i32) {
    %c0_i32 = arith.constant 0 : i32
    %c0_i32_0 = arith.constant 0 : i32
    %c0_i32_1 = arith.constant 0 : i32
    return %c0_i32, %c0_i32_0 : i32, i32
  }
  func.func @transform_4(%arg0: i32, %arg1: i32) -> (i32, i32, i32, i32) {
    %c0_i32 = arith.constant 0 : i32
    %c0_i32_0 = arith.constant 0 : i32
    %c0_i32_1 = arith.constant 0 : i32
    return %arg0, %arg1, %c0_i32, %c0_i32_0 : i32, i32, i32, i32
  }
  func.func @transform_5(%arg0: i32, %arg1: i32) -> (i32, i32, i32, i32) {
    %c1_i32 = arith.constant 1 : i32
    %0 = arith.addi %arg1, %c1_i32 : i32
    %c8_i32 = arith.constant 8 : i32
    %1 = arith.muli %0, %c8_i32 : i32
    %c0_i32 = arith.constant 0 : i32
    %c0_i32_0 = arith.constant 0 : i32
    %c0_i32_1 = arith.constant 0 : i32
    return %arg0, %1, %c0_i32, %c0_i32_0 : i32, i32, i32, i32
  }
  func.func @transform_6(%arg0: i32, %arg1: i32) -> (i32, i32, i32, i32) {
    %c1_i32 = arith.constant 1 : i32
    %0 = arith.addi %arg1, %c1_i32 : i32
    %c8_i32 = arith.constant 8 : i32
    %1 = arith.muli %0, %c8_i32 : i32
    %c1_i32_0 = arith.constant 1 : i32
    %2 = arith.addi %1, %c1_i32_0 : i32
    %c0_i32 = arith.constant 0 : i32
    %c0_i32_1 = arith.constant 0 : i32
    %c0_i32_2 = arith.constant 0 : i32
    return %arg0, %2, %c0_i32, %c0_i32_1 : i32, i32, i32, i32
  }
  func.func @transform_7(%arg0: i32, %arg1: i32) -> (i32, i32) {
    %c0_i32 = arith.constant 0 : i32
    %c0_i32_0 = arith.constant 0 : i32
    %c0_i32_1 = arith.constant 0 : i32
    return %c0_i32, %c0_i32_0 : i32, i32
  }
  func.func @transform_8(%arg0: i32, %arg1: i32) -> (i32, i32) {
    %c0_i32 = arith.constant 0 : i32
    %c0_i32_0 = arith.constant 0 : i32
    %c0_i32_1 = arith.constant 0 : i32
    return %c0_i32, %c0_i32_0 : i32, i32
  }
  func.func @transform_9(%arg0: i32, %arg1: i32) -> (i32, i32) {
    %c0_i32 = arith.constant 0 : i32
    %c0_i32_0 = arith.constant 0 : i32
    %c0_i32_1 = arith.constant 0 : i32
    return %c0_i32, %c0_i32_0 : i32, i32
  }
  func.func @transform_10(%arg0: i32, %arg1: i32) -> (i32, i32, i32, i32) {
    %c0_i32 = arith.constant 0 : i32
    %c0_i32_0 = arith.constant 0 : i32
    %c0_i32_1 = arith.constant 0 : i32
    return %arg0, %arg1, %c0_i32, %c0_i32_0 : i32, i32, i32, i32
  }
}

module attributes {stable_mosaic.version = 11 : i64} {
  func.func @kernel(%arg0: i32, %arg1: i32, %arg2: memref<1x8x18x128xf32, #tpu.memory_space<vmem>>, %arg3: memref<1x1x18x128xf32, #tpu.memory_space<vmem>>, %arg4: memref<1x1x18x128xf32, #tpu.memory_space<vmem>>, %arg5: memref<1152x128xf32, #tpu.memory_space<vmem>>, %arg6: memref<1x128xf32, #tpu.memory_space<vmem>>, %arg7: memref<1x128xf32, #tpu.memory_space<vmem>>, %arg8: memref<1x8x16x128xf32, #tpu.memory_space<vmem>>) attributes {dimension_semantics = [#tpu.dimension_semantics<parallel>, #tpu.dimension_semantics<parallel>], iteration_bounds = array<i64: 2, 2>, scalar_prefetch = 0 : i64, scratch_operands = 0 : i64, tpu.core_type = #tpu.core_type<tc>, window_params = [{transform_indices = @transform_0, window_bounds = array<i64: 1, 8, 18, 128>}, {transform_indices = @transform_1, window_bounds = array<i64: 1, 1, 18, 128>}, {transform_indices = @transform_2, window_bounds = array<i64: 1, 1, 18, 128>}, {pipeline_mode = #tpu.pipeline_mode<synchronous>, transform_indices = @transform_3, window_bounds = array<i64: 1152, 128>}, {pipeline_mode = #tpu.pipeline_mode<synchronous>, transform_indices = @transform_4, window_bounds = array<i64: 1, 128>}, {pipeline_mode = #tpu.pipeline_mode<synchronous>, transform_indices = @transform_5, window_bounds = array<i64: 1, 128>}, {transform_indices = @transform_6, window_bounds = array<i64: 1, 8, 16, 128>}]} {
    %c0 = arith.constant 0 : index
    %c0_0 = arith.constant 0 : index
    %c0_1 = arith.constant 0 : index
    %c0_2 = arith.constant 0 : index
    %0 = vector.load %arg2[%c0, %c0_0, %c0_1, %c0_2] : memref<1x8x18x128xf32, #tpu.memory_space<vmem>>, vector<1x8x18x128xf32>
    %1 = vector.shape_cast %0 : vector<1x8x18x128xf32> to vector<8x18x128xf32>
    %c0_3 = arith.constant 0 : index
    %c0_4 = arith.constant 0 : index
    %c0_5 = arith.constant 0 : index
    %c0_6 = arith.constant 0 : index
    %2 = vector.load %arg3[%c0_3, %c0_4, %c0_5, %c0_6] : memref<1x1x18x128xf32, #tpu.memory_space<vmem>>, vector<1x1x18x128xf32>
    %3 = vector.shape_cast %2 : vector<1x1x18x128xf32> to vector<1x18x128xf32>
    %c0_7 = arith.constant 0 : index
    %c0_8 = arith.constant 0 : index
    %c0_9 = arith.constant 0 : index
    %c0_10 = arith.constant 0 : index
    %4 = vector.load %arg4[%c0_7, %c0_8, %c0_9, %c0_10] : memref<1x1x18x128xf32, #tpu.memory_space<vmem>>, vector<1x1x18x128xf32>
    %5 = vector.shape_cast %4 : vector<1x1x18x128xf32> to vector<1x18x128xf32>
    %6 = tpu.concatenate %1, %3, %5 in 0 : vector<8x18x128xf32>, vector<1x18x128xf32>, vector<1x18x128xf32> -> vector<10x18x128xf32>
    %7 = vector.extract_strided_slice %6 {offsets = [0, 0, 0], sizes = [8, 16, 128], strides = [1, 1, 1]} : vector<10x18x128xf32> to vector<8x16x128xf32>
    %8 = vector.shape_cast %7 : vector<8x16x128xf32> to vector<128x128xf32>
    %9 = vector.extract_strided_slice %6 {offsets = [0, 1, 0], sizes = [8, 16, 128], strides = [1, 1, 1]} : vector<10x18x128xf32> to vector<8x16x128xf32>
    %10 = vector.shape_cast %9 : vector<8x16x128xf32> to vector<128x128xf32>
    %11 = vector.extract_strided_slice %6 {offsets = [0, 2, 0], sizes = [8, 16, 128], strides = [1, 1, 1]} : vector<10x18x128xf32> to vector<8x16x128xf32>
    %12 = vector.shape_cast %11 : vector<8x16x128xf32> to vector<128x128xf32>
    %13 = vector.extract_strided_slice %6 {offsets = [1, 0, 0], sizes = [8, 16, 128], strides = [1, 1, 1]} : vector<10x18x128xf32> to vector<8x16x128xf32>
    %14 = vector.shape_cast %13 : vector<8x16x128xf32> to vector<128x128xf32>
    %15 = vector.extract_strided_slice %6 {offsets = [1, 1, 0], sizes = [8, 16, 128], strides = [1, 1, 1]} : vector<10x18x128xf32> to vector<8x16x128xf32>
    %16 = vector.shape_cast %15 : vector<8x16x128xf32> to vector<128x128xf32>
    %17 = vector.extract_strided_slice %6 {offsets = [1, 2, 0], sizes = [8, 16, 128], strides = [1, 1, 1]} : vector<10x18x128xf32> to vector<8x16x128xf32>
    %18 = vector.shape_cast %17 : vector<8x16x128xf32> to vector<128x128xf32>
    %19 = vector.extract_strided_slice %6 {offsets = [2, 0, 0], sizes = [8, 16, 128], strides = [1, 1, 1]} : vector<10x18x128xf32> to vector<8x16x128xf32>
    %20 = vector.shape_cast %19 : vector<8x16x128xf32> to vector<128x128xf32>
    %21 = vector.extract_strided_slice %6 {offsets = [2, 1, 0], sizes = [8, 16, 128], strides = [1, 1, 1]} : vector<10x18x128xf32> to vector<8x16x128xf32>
    %22 = vector.shape_cast %21 : vector<8x16x128xf32> to vector<128x128xf32>
    %23 = vector.extract_strided_slice %6 {offsets = [2, 2, 0], sizes = [8, 16, 128], strides = [1, 1, 1]} : vector<10x18x128xf32> to vector<8x16x128xf32>
    %24 = vector.shape_cast %23 : vector<8x16x128xf32> to vector<128x128xf32>
    %25 = tpu.concatenate %8, %10, %12, %14, %16, %18, %20, %22, %24 in 1 : vector<128x128xf32>, vector<128x128xf32>, vector<128x128xf32>, vector<128x128xf32>, vector<128x128xf32>, vector<128x128xf32>, vector<128x128xf32>, vector<128x128xf32>, vector<128x128xf32> -> vector<128x1152xf32>
    %c0_11 = arith.constant 0 : index
    %c0_12 = arith.constant 0 : index
    %26 = vector.load %arg5[%c0_11, %c0_12] : memref<1152x128xf32, #tpu.memory_space<vmem>>, vector<1152x128xf32>
    %cst = arith.constant dense<0.000000e+00> : vector<128x128xf32>
    %27 = tpu.matmul %25, %26, %cst {dimension_numbers = #tpu.dot_dimension_numbers<[1], [0], [0], [1], [0, 0, 1, 1], [], []>} : vector<128x1152xf32>, vector<1152x128xf32>, vector<128x128xf32> -> vector<128x128xf32>
    %c0_13 = arith.constant 0 : index
    %c0_14 = arith.constant 0 : index
    %28 = vector.load %arg6[%c0_13, %c0_14] : memref<1x128xf32, #tpu.memory_space<vmem>>, vector<1x128xf32>
    %29 = vector.broadcast %28 : vector<1x128xf32> to vector<128x128xf32>
    %30 = arith.mulf %27, %29 : vector<128x128xf32>
    %c0_15 = arith.constant 0 : index
    %c0_16 = arith.constant 0 : index
    %31 = vector.load %arg7[%c0_15, %c0_16] : memref<1x128xf32, #tpu.memory_space<vmem>>, vector<1x128xf32>
    %32 = vector.broadcast %31 : vector<1x128xf32> to vector<128x128xf32>
    %33 = arith.addf %30, %32 : vector<128x128xf32>
    %cst_17 = arith.constant 0.000000e+00 : f32
    %34 = vector.broadcast %cst_17 : f32 to vector<128x128xf32>
    %35 = arith.maximumf %33, %34 : vector<128x128xf32>
    %36 = vector.shape_cast %35 : vector<128x128xf32> to vector<8x16x128xf32>
    %c0_18 = arith.constant 0 : index
    %c0_19 = arith.constant 0 : index
    %c0_20 = arith.constant 0 : index
    %c0_21 = arith.constant 0 : index
    %37 = vector.load %arg8[%c0_18, %c0_19, %c0_20, %c0_21] : memref<1x8x16x128xf32, #tpu.memory_space<vmem>>, vector<1x8x16x128xf32>
    %38 = vector.shape_cast %37 : vector<1x8x16x128xf32> to vector<8x16x128xf32>
    %39 = vector.shape_cast %36 : vector<8x16x128xf32> to vector<1x8x16x128xf32>
    tpu.vector_store %arg8[%c0_18, %c0_19, %c0_20, %c0_21], %39 {strides = array<i32>} : memref<1x8x16x128xf32, #tpu.memory_space<vmem>>, vector<1x8x16x128xf32>,
    return
  }
  func.func @transform_0(%arg0: i32, %arg1: i32) -> (i32, i32, i32, i32) {
    %c0_i32 = arith.constant 0 : i32
    %c0_i32_0 = arith.constant 0 : i32
    %c0_i32_1 = arith.constant 0 : i32
    return %arg0, %arg1, %c0_i32, %c0_i32_0 : i32, i32, i32, i32
  }
  func.func @transform_1(%arg0: i32, %arg1: i32) -> (i32, i32, i32, i32) {
    %c1_i32 = arith.constant 1 : i32
    %0 = arith.addi %arg1, %c1_i32 : i32
    %c8_i32 = arith.constant 8 : i32
    %1 = arith.muli %0, %c8_i32 : i32
    %c0_i32 = arith.constant 0 : i32
    %c0_i32_0 = arith.constant 0 : i32
    %c0_i32_1 = arith.constant 0 : i32
    return %arg0, %1, %c0_i32, %c0_i32_0 : i32, i32, i32, i32
  }
  func.func @transform_2(%arg0: i32, %arg1: i32) -> (i32, i32, i32, i32) {
    %c1_i32 = arith.constant 1 : i32
    %0 = arith.addi %arg1, %c1_i32 : i32
    %c8_i32 = arith.constant 8 : i32
    %1 = arith.muli %0, %c8_i32 : i32
    %c1_i32_0 = arith.constant 1 : i32
    %2 = arith.addi %1, %c1_i32_0 : i32
    %c0_i32 = arith.constant 0 : i32
    %c0_i32_1 = arith.constant 0 : i32
    %c0_i32_2 = arith.constant 0 : i32
    return %arg0, %2, %c0_i32, %c0_i32_1 : i32, i32, i32, i32
  }
  func.func @transform_3(%arg0: i32, %arg1: i32) -> (i32, i32) {
    %c0_i32 = arith.constant 0 : i32
    %c0_i32_0 = arith.constant 0 : i32
    %c0_i32_1 = arith.constant 0 : i32
    return %c0_i32, %c0_i32_0 : i32, i32
  }
  func.func @transform_4(%arg0: i32, %arg1: i32) -> (i32, i32) {
    %c0_i32 = arith.constant 0 : i32
    %c0_i32_0 = arith.constant 0 : i32
    %c0_i32_1 = arith.constant 0 : i32
    return %c0_i32, %c0_i32_0 : i32, i32
  }
  func.func @transform_5(%arg0: i32, %arg1: i32) -> (i32, i32) {
    %c0_i32 = arith.constant 0 : i32
    %c0_i32_0 = arith.constant 0 : i32
    %c0_i32_1 = arith.constant 0 : i32
    return %c0_i32, %c0_i32_0 : i32, i32
  }
  func.func @transform_6(%arg0: i32, %arg1: i32) -> (i32, i32, i32, i32) {
    %c0_i32 = arith.constant 0 : i32
    %c0_i32_0 = arith.constant 0 : i32
    %c0_i32_1 = arith.constant 0 : i32
    return %arg0, %arg1, %c0_i32, %c0_i32_0 : i32, i32, i32, i32
  }
}

</mosaic_0001>

<llo_original>
// kernel: upsample_forward.3
$region0: #{upsample_forward.3}
  #allocation0 [shape = 'u32[]', space=smem, size = 0x4, offset = 0x4, fixed_abs, tag = 'smem constant byte address 0x4 - core index']
  #allocation1 [shape = 'u32[144,128]{1,0:T(1,128)}', space=vmem, size = 0x12000, scoped, tag = 'internal scratch']
  %s0 = inlined_call_operand.vmem [shape: f32[2,64,128], index: 0, kind: input, shape index: {}]
  %s1 = inlined_call_operand.vmem [shape: f32[256,64], index: 1, kind: input, shape index: {}]
  %s2 = inlined_call_operand.vmem [shape: f32[128,128], index: 2, kind: input, shape index: {}]
  %s3 = inlined_call_operand.vmem [shape: f32[1,128], index: 3, kind: input, shape index: {}]
  %s4 = inlined_call_operand.vmem [shape: f32[2,256,128], index: 4, kind: output, shape index: {}]
  %s5 = sld [smem:[#allocation0]]
  $region49: #{upsample_forward.3} parent=0
    _
  %s7 = ssub.s32 1, %s5
  %s8 = scalar_select 0, %s7, %s5
  loop: start=0, step=1, limit=6
  $region2: #{upsample_forward.3} parent=0 // loop_pre_header
    _
  $region3: #{upsample_forward.3} parent=0 // loop_header
    %s10 = sphi 0, %s14
    %p11 = scmp.ge.s32.totalorder %s10, 6
    %s17 = sphi 0, %s29
    %s18 = sphi 0, %s25
    %s19 = sphi 0, %s17
    %s20 = sphi 0, %s18
    %s21 = sphi 0, %s19
    %s22 = sphi 0, %s20
    %s32 = sphi 0, %s34
    %s35 = sphi 0, %s32
    %s36 = sphi 0, %s35
    %s52 = sphi 0, %s36
    %s58 = sphi 0, %s60
    %s61 = sphi 0, %s58
    %s62 = sphi 0, %s61
    %s78 = sphi 0, %s62
    %s82 = sphi 0, %s82
    %s84 = sphi 0, %s82
    %s85 = sphi 0, %s84
    %s99 = sphi 0, %s85
    %s103 = sphi 0, %s103
    %s105 = sphi 0, %s103
    %s106 = sphi 0, %s105
    %s120 = sphi 0, %s106
    %s128 = sphi 0, %s130
    %s131 = sphi 0, %s128
    %s132 = sphi 0, %s131
    %s148 = sphi 0, %s132
  $region4: #{upsample_forward.3} parent=0 // loop_header_branch
    %13 = sbr.rel (%p11) target = $region8
  $region5: #{upsample_forward.3} parent=0 // loop_body
    %s15 = ssub.s32 %s10, 1
    %s16 = ssub.s32 %s10, 2
    %s23 = sadd.s32 1, %s18
    %p24 = scmp.ge.s32.totalorder %s23, 2
    %s25 = scalar_select %p24, 0, %s23
    %s26 = sadd.s32 1, %s17
    %s27 = scalar_select %p24, %s26, %s17
    %p28 = scmp.ge.s32.totalorder %s27, 2
    %s29 = scalar_select %p28, 0, %s27
    %s30 = ssub.s32 %s17, %s29
    %p31 = scmp.eq.s32.totalorder %s30, 0
    %s33 = sadd.s32 %s32, 1
    %s34 = scalar_select %p31, %s32, %s33
    %p37 = pneg %p31
    %p38 = scmp.eq.s32.totalorder %s10, 3
    %p39 = por %p37, %p38
    %p40 = scmp.ne.s32.totalorder %s32, %s35
    %p41 = scmp.eq.s32.totalorder %s10, 0
    %p42 = por %p40, %p41
    %p43 = scmp.ne.s32.totalorder %s32, %s35
    %p44 = scmp.eq.s32.totalorder %s15, 3
    %p45 = por %p43, %p44
    %p46 = scmp.ne.s32.totalorder %s35, %s36
    %p47 = scmp.eq.s32.totalorder %s15, 0
    %p48 = por %p46, %p47
    %p49 = scmp.ne.s32.totalorder %s35, %s36
    %p50 = scmp.eq.s32.totalorder %s16, 3
    %p51 = por %p49, %p50
    %p53 = scmp.ne.s32.totalorder %s36, %s52
    %p54 = scmp.eq.s32.totalorder %s16, 0
    %p55 = por %p53, %p54
    %s56 = ssub.s32 %s18, %s25
    %p57 = scmp.eq.s32.totalorder %s56, 0
    %s59 = sadd.s32 %s58, 1
    %s60 = scalar_select %p57, %s58, %s59
    %p63 = pneg %p57
    %p64 = scmp.eq.s32.totalorder %s10, 3
    %p65 = por %p63, %p64
    %p66 = scmp.ne.s32.totalorder %s58, %s61
    %p67 = scmp.eq.s32.totalorder %s10, 0
    %p68 = por %p66, %p67
    %p69 = scmp.ne.s32.totalorder %s58, %s61
    %p70 = scmp.eq.s32.totalorder %s15, 3
    %p71 = por %p69, %p70
    %p72 = scmp.ne.s32.totalorder %s61, %s62
    %p73 = scmp.eq.s32.totalorder %s15, 0
    %p74 = por %p72, %p73
    %p75 = scmp.ne.s32.totalorder %s61, %s62
    %p76 = scmp.eq.s32.totalorder %s16, 3
    %p77 = por %p75, %p76
    %p79 = scmp.ne.s32.totalorder %s62, %s78
    %p80 = scmp.eq.s32.totalorder %s16, 0
    %p81 = por %p79, %p80
    %s83 = sadd.s32 %s82, 1
    %p86 = scmp.eq.s32.totalorder %s10, 3
    %p87 = scmp.ne.s32.totalorder %s82, %s84
    %p88 = scmp.eq.s32.totalorder %s10, 0
    %p89 = por %p87, %p88
    %p90 = scmp.ne.s32.totalorder %s82, %s84
    %p91 = scmp.eq.s32.totalorder %s15, 3
    %p92 = por %p90, %p91
    %p93 = scmp.ne.s32.totalorder %s84, %s85
    %p94 = scmp.eq.s32.totalorder %s15, 0
    %p95 = por %p93, %p94
    %p96 = scmp.ne.s32.totalorder %s84, %s85
    %p97 = scmp.eq.s32.totalorder %s16, 3
    %p98 = por %p96, %p97
    %p100 = scmp.ne.s32.totalorder %s85, %s99
    %p101 = scmp.eq.s32.totalorder %s16, 0
    %p102 = por %p100, %p101
    %s104 = sadd.s32 %s103, 1
    %p107 = scmp.eq.s32.totalorder %s10, 3
    %p108 = scmp.ne.s32.totalorder %s103, %s105
    %p109 = scmp.eq.s32.totalorder %s10, 0
    %p110 = por %p108, %p109
    %p111 = scmp.ne.s32.totalorder %s103, %s105
    %p112 = scmp.eq.s32.totalorder %s15, 3
    %p113 = por %p111, %p112
    %p114 = scmp.ne.s32.totalorder %s105, %s106
    %p115 = scmp.eq.s32.totalorder %s15, 0
    %p116 = por %p114, %p115
    %p117 = scmp.ne.s32.totalorder %s105, %s106
    %p118 = scmp.eq.s32.totalorder %s16, 3
    %p119 = por %p117, %p118
    %p121 = scmp.ne.s32.totalorder %s106, %s120
    %p122 = scmp.eq.s32.totalorder %s16, 0
    %p123 = por %p121, %p122
    %s124 = ssub.s32 %s17, %s29
    %s125 = ssub.s32 %s18, %s25
    %s126 = sor.u32 %s124, %s125
    %p127 = scmp.eq.s32.totalorder %s126, 0
    %s129 = sadd.s32 %s128, 1
    %s130 = scalar_select %p127, %s128, %s129
    %p133 = pneg %p127
    %p134 = scmp.eq.s32.totalorder %s10, 3
    %p135 = por %p133, %p134
    %p136 = scmp.ne.s32.totalorder %s128, %s131
    %p137 = scmp.eq.s32.totalorder %s10, 0
    %p138 = por %p136, %p137
    %p139 = scmp.ne.s32.totalorder %s128, %s131
    %p140 = scmp.eq.s32.totalorder %s15, 3
    %p141 = por %p139, %p140
    %p142 = scmp.ne.s32.totalorder %s131, %s132
    %p143 = scmp.eq.s32.totalorder %s15, 0
    %p144 = por %p142, %p143
    %p145 = scmp.ne.s32.totalorder %s131, %s132
    %p146 = scmp.eq.s32.totalorder %s16, 3
    %p147 = por %p145, %p146
    %p149 = scmp.ne.s32.totalorder %s132, %s148
    %p150 = scmp.eq.s32.totalorder %s16, 0
    %p151 = por %p149, %p150
    %p152 = scmp.le.s32.totalorder 1, %s10
    %p153 = scmp.lt.s32.totalorder %s10, 5
    %p154 = pnand %p152, %p153
    %p155 = pneg %p154
    // Predicated region
    $region9: #{upsample_forward.3} parent=5 // pred_check
      _
    $region10: #{upsample_forward.3} parent=5 // pred_check_branch
      %157 = sbr.rel (%p154) target = $region12
    $region11: #{upsample_forward.3} parent=5 // pred_region
      %s158 = ssub.s32 %s10, 1
      // Predicated region
      $region13: #{upsample_forward.3} parent=11 // pred_check
        %p159 = pneg %p95
      $region14: #{upsample_forward.3} parent=11 // pred_check_branch
        %161 = sbr.rel (%p159) target = $region16
      $region15: #{upsample_forward.3} parent=11 // pred_region
        _
      $region16: #{upsample_forward.3} parent=11 // pred_fallthru
        _
      // Predicated region
      $region17: #{upsample_forward.3} parent=11 // pred_check
        %p162 = pneg %p116
      $region18: #{upsample_forward.3} parent=11 // pred_check_branch
        %164 = sbr.rel (%p162) target = $region20
      $region19: #{upsample_forward.3} parent=11 // pred_region
        _
      $region20: #{upsample_forward.3} parent=11 // pred_fallthru
        _
    $region12: #{upsample_forward.3} parent=5 // pred_fallthru
      _
    %p165 = scmp.lt.s32.totalorder %s10, 4
    // Predicated region
    $region21: #{upsample_forward.3} parent=5 // pred_check
      %p166 = pneg %p165
    $region22: #{upsample_forward.3} parent=5 // pred_check_branch
      %168 = sbr.rel (%p166) target = $region24
    $region23: #{upsample_forward.3} parent=5 // pred_region
      // Predicated region
      $region25: #{upsample_forward.3} parent=23 // pred_check
        %p169 = pneg %p42
      $region26: #{upsample_forward.3} parent=23 // pred_check_branch
        %171 = sbr.rel (%p169) target = $region28
      $region27: #{upsample_forward.3} parent=23 // pred_region
        %p172 = scmp.lt.s32.totalorder %s17, 1
        %s173 = scalar_select %p172, %s17, 1
        %s174 = smul.addr %s173, 8
        %s175 = smul.addr %s174, 8
        %s176 = scalar_lea.vmem %s0, %s175
      $region28: #{upsample_forward.3} parent=23 // pred_fallthru
        _
      // Predicated region
      $region29: #{upsample_forward.3} parent=23 // pred_check
        %p177 = pneg %p68
      $region30: #{upsample_forward.3} parent=23 // pred_check_branch
        %179 = sbr.rel (%p177) target = $region32
      $region31: #{upsample_forward.3} parent=23 // pred_region
        %s180 = smul.u32 16, %s18
        %p181 = scmp.lt.s32.totalorder %s180, 31
        %s182 = scalar_select %p181, %s180, 31
        %s183 = smul.addr %s182, 8
        %s184 = scalar_lea.vmem %s1, %s183
        %s185 = smul.u32 16, %s18
      $region32: #{upsample_forward.3} parent=23 // pred_fallthru
        _
    $region24: #{upsample_forward.3} parent=5 // pred_fallthru
      _
    %p186 = scmp.le.s32.totalorder 1, %s10
    %p187 = scmp.lt.s32.totalorder %s10, 5
    %p188 = pnand %p186, %p187
    %p189 = pneg %p188
    // Predicated region
    $region33: #{upsample_forward.3} parent=5 // pred_check
      _
    $region34: #{upsample_forward.3} parent=5 // pred_check_branch
      %191 = sbr.rel (%p188) target = $region36
    $region35: #{upsample_forward.3} parent=5 // pred_region
      %s192 = ssub.s32 %s10, 1
      %p193 = scmp.lt.s32.totalorder %s19, 1
      %s194 = scalar_select %p193, %s19, 1
      %s195 = smul.addr %s194, 8
      %s196 = smul.addr %s195, 8
      %s197 = scalar_lea.vmem %s0, %s196
      %p198 = pneg %p48
      %p199 = pneg %p45
      %s200 = smul.u32 16, %s20
      %p201 = scmp.lt.s32.totalorder %s200, 31
      %s202 = scalar_select %p201, %s200, 31
      %s203 = smul.addr %s202, 8
      %s204 = scalar_lea.vmem %s1, %s203
      %p205 = pneg %p74
      %p206 = pneg %p71
      %p207 = pneg %p95
      %p208 = pneg %p92
      %p209 = pneg %p116
      %p210 = pneg %p113
      %p211 = pneg %p144
      %p212 = pneg %p141
      %s213 = smul.u32 16, %s20
      %p214 = scmp.lt.s32.totalorder %s19, 1
      %s215 = scalar_select %p214, %s19, 1
      %p216 = scmp.lt.s32.totalorder %s213, 31
      %s217 = scalar_select %p216, %s213, 31
      %s218 = smul.addr %s215, 32
      %s219 = sadd.s32 %s217, %s218
      %s220 = smul.addr %s219, 8
      %s221 = scalar_lea.vmem %s4, %s220
      %p222 = scmp.lt.s32.totalorder %s19, 1
      %s223 = scalar_select %p222, %s19, 1
      %s224 = smul.addr %s223, 8
      %s225 = smul.addr %s224, 8
      %s226 = scalar_lea.vmem %s0, %s225
      %s227 = smul.u32 16, %s20
      %p228 = scmp.lt.s32.totalorder %s227, 31
      %s229 = scalar_select %p228, %s227, 31
      %s230 = smul.addr %s229, 8
      %s231 = scalar_lea.vmem %s1, %s230
      %s232 = smul.u32 16, %s20
      %s233 = smul.u32 16, %s20
      %p234 = scmp.lt.s32.totalorder %s19, 1
      %s235 = scalar_select %p234, %s19, 1
      %p236 = scmp.lt.s32.totalorder %s233, 31
      %s237 = scalar_select %p236, %s233, 31
      %s238 = smul.addr %s235, 32
      %s239 = sadd.s32 %s237, %s238
      %s240 = smul.addr %s239, 8
      %s241 = scalar_lea.vmem %s4, %s240
      %s242 = smul.u32 16, %s20
      %v243 = vld [vmem:[%s231] sm:$0xff]
      %v244 = vld [vmem:[%s231 + $0x8] sm:$0xff]
      %v245 = vld [vmem:[%s231 + $0x10] sm:$0xff]
      %v246 = vld [vmem:[%s231 + $0x18] sm:$0xff]
      %v247 = vld [vmem:[%s231 + $0x20] sm:$0xff]
      %v248 = vld [vmem:[%s231 + $0x28] sm:$0xff]
      %v249 = vld [vmem:[%s231 + $0x30] sm:$0xff]
      %v250 = vld [vmem:[%s231 + $0x38] sm:$0xff]
      %v251 = vld [vmem:[%s231 + $0x40] sm:$0xff]
      %v252 = vld [vmem:[%s231 + $0x48] sm:$0xff]
      %v253 = vld [vmem:[%s231 + $0x50] sm:$0xff]
      %v254 = vld [vmem:[%s231 + $0x58] sm:$0xff]
      %v255 = vld [vmem:[%s231 + $0x60] sm:$0xff]
      %v256 = vld [vmem:[%s231 + $0x68] sm:$0xff]
      %v257 = vld [vmem:[%s231 + $0x70] sm:$0xff]
      %v258 = vld [vmem:[%s231 + $0x78] sm:$0xff]
      %v259 = vld [vmem:[%s226] sm:$0xff]
      %v260 = vld [vmem:[%s226 + $0x8] sm:$0xff]
      %v261 = vld [vmem:[%s226 + $0x10] sm:$0xff]
      %v262 = vld [vmem:[%s226 + $0x18] sm:$0xff]
      %v263 = vld [vmem:[%s226 + $0x20] sm:$0xff]
      %v264 = vld [vmem:[%s226 + $0x28] sm:$0xff]
      %v265 = vld [vmem:[%s226 + $0x30] sm:$0xff]
      %v266 = vld [vmem:[%s226 + $0x38] sm:$0xff]
      %vm267 = vcmask 523264
      %v269 = vsel %vm267, %v243, 0
      %v272 = vsel %vm267, %v244, 0
      %v275 = vsel %vm267, %v245, 0
      %v278 = vsel %vm267, %v246, 0
      %v281 = vsel %vm267, %v247, 0
      %v284 = vsel %vm267, %v248, 0
      %v287 = vsel %vm267, %v249, 0
      %v290 = vsel %vm267, %v250, 0
      %v293 = vsel %vm267, %v251, 0
      %v296 = vsel %vm267, %v252, 0
      %v299 = vsel %vm267, %v253, 0
      %v302 = vsel %vm267, %v254, 0
      %v305 = vsel %vm267, %v255, 0
      %v308 = vsel %vm267, %v256, 0
      %v311 = vsel %vm267, %v257, 0
      %v314 = vsel %vm267, %v258, 0
      %316 = vmatprep.subr.mxu0 0.0
      %317 = vmatpush1.msra.mxu0 0.0
      %318 = vmatprep.subr.mxu0 0.0
      %319 = vmatpush1.msra.mxu0 0.0
      %320 = vmatprep.subr.mxu0 0.0
      %321 = vmatpush1.msra.mxu0 0.0
      %322 = vmatprep.subr.mxu0 0.0
      %323 = vmatpush1.msra.mxu0 0.0
      %324 = vmatprep.subr.mxu0 0.0
      %325 = vmatpush1.msra.mxu0 0.0
      %326 = vmatprep.subr.mxu0 0.0
      %327 = vmatpush1.msra.mxu0 0.0
      %328 = vmatprep.subr.mxu0 0.0
      %329 = vmatpush1.msra.mxu0 0.0
      %330 = vmatprep.subr.mxu0 0.0
      %331 = vmatpush1.msra.mxu0 0.0
      %332 = vmatprep.subr.mxu0 0.0
      %333 = vmatpush1.msra.mxu0 %v266
      %334 = vmatprep.subr.mxu0 0.0
      %335 = vmatpush1.msra.mxu0 %v265
      %336 = vmatprep.subr.mxu0 0.0
      %337 = vmatpush1.msra.mxu0 %v264
      %338 = vmatprep.subr.mxu0 0.0
      %339 = vmatpush1.msra.mxu0 %v263
      %340 = vmatprep.subr.mxu0 0.0
      %341 = vmatpush1.msra.mxu0 %v262
      %342 = vmatprep.subr.mxu0 0.0
      %343 = vmatpush1.msra.mxu0 %v261
      %344 = vmatprep.subr.mxu0 0.0
      %345 = vmatpush1.msra.mxu0 %v260
      %346 = vmatprep.subr.mxu0 0.0
      %347 = vmatpush1.msra.mxu0 %v259
      %348 = vmatprep.subr.mxu0 0.0
      %349 = vmatpush2.msra.mxu0 0.0
      %350 = vmatprep.subr.mxu0 0.0
      %351 = vmatpush2.msra.mxu0 0.0
      %352 = vmatprep.subr.mxu0 0.0
      %353 = vmatpush2.msra.mxu0 0.0
      %354 = vmatprep.subr.mxu0 0.0
      %355 = vmatpush2.msra.mxu0 0.0
      %356 = vmatprep.subr.mxu0 0.0
      %357 = vmatpush2.msra.mxu0 0.0
      %358 = vmatprep.subr.mxu0 0.0
      %359 = vmatpush2.msra.mxu0 0.0
      %360 = vmatprep.subr.mxu0 0.0
      %361 = vmatpush2.msra.mxu0 0.0
      %362 = vmatprep.subr.mxu0 0.0
      %363 = vmatpush2.msra.mxu0 0.0
      %364 = vmatprep.subr.mxu0 0.0
      %365 = vmatpush2.msra.mxu0 0.0
      %366 = vmatprep.subr.mxu0 0.0
      %367 = vmatpush2.msra.mxu0 0.0
      %368 = vmatprep.subr.mxu0 0.0
      %369 = vmatpush2.msra.mxu0 0.0
      %370 = vmatprep.subr.mxu0 0.0
      %371 = vmatpush2.msra.mxu0 0.0
      %372 = vmatprep.subr.mxu0 0.0
      %373 = vmatpush2.msra.mxu0 0.0
      %374 = vmatprep.subr.mxu0 0.0
      %375 = vmatpush2.msra.mxu0 0.0
      %376 = vmatprep.subr.mxu0 0.0
      %377 = vmatpush2.msra.mxu0 0.0
      %378 = vmatprep.subr.mxu0 0.0
      %379 = vmatpush2.msra.mxu0 0.0
      %380 = vmatprep.mubr.f32.mxu0 0.0
      %381 = vmatmul.mubr.f32.gmra.mxu0 %v269
      %v382 = vpop.f32.mrf.mxu0
      %v383 = vadd.f32 0.0, %v382
      %v384 = vpop.f32.mrf.mxu0
      %385 = vmatprep.mubr.f32.mxu0 0.0
      %386 = vmatmul.mubr.f32.gmra.mxu0 %v272
      %v387 = vpop.f32.mrf.mxu0
      %v388 = vadd.f32 0.0, %v387
      %v389 = vpop.f32.mrf.mxu0
      %390 = vmatprep.mubr.f32.mxu0 0.0
      %391 = vmatmul.mubr.f32.gmra.mxu0 %v275
      %v392 = vpop.f32.mrf.mxu0
      %v393 = vadd.f32 0.0, %v392
      %v394 = vpop.f32.mrf.mxu0
      %395 = vmatprep.mubr.f32.mxu0 0.0
      %396 = vmatmul.mubr.f32.gmra.mxu0 %v278
      %v397 = vpop.f32.mrf.mxu0
      %v398 = vadd.f32 0.0, %v397
      %v399 = vpop.f32.mrf.mxu0
      %400 = vmatprep.mubr.f32.mxu0 0.0
      %401 = vmatmul.mubr.f32.gmra.mxu0 %v281
      %v402 = vpop.f32.mrf.mxu0
      %v403 = vadd.f32 0.0, %v402
      %v404 = vpop.f32.mrf.mxu0
      %405 = vmatprep.mubr.f32.mxu0 0.0
      %406 = vmatmul.mubr.f32.gmra.mxu0 %v284
      %v407 = vpop.f32.mrf.mxu0
      %v408 = vadd.f32 0.0, %v407
      %v409 = vpop.f32.mrf.mxu0
      %410 = vmatprep.mubr.f32.mxu0 0.0
      %411 = vmatmul.mubr.f32.gmra.mxu0 %v287
      %v412 = vpop.f32.mrf.mxu0
      %v413 = vadd.f32 0.0, %v412
      %v414 = vpop.f32.mrf.mxu0
      %415 = vmatprep.mubr.f32.mxu0 0.0
      %416 = vmatmul.mubr.f32.gmra.mxu0 %v290
      %v417 = vpop.f32.mrf.mxu0
      %v418 = vadd.f32 0.0, %v417
      %v419 = vpop.f32.mrf.mxu0
      %420 = vmatprep.mubr.f32.mxu0 0.0
      %421 = vmatmul.mubr.f32.gmra.mxu0 %v293
      %v422 = vpop.f32.mrf.mxu0
      %v423 = vadd.f32 0.0, %v422
      %v424 = vpop.f32.mrf.mxu0
      %425 = vmatprep.mubr.f32.mxu0 0.0
      %426 = vmatmul.mubr.f32.gmra.mxu0 %v296
      %v427 = vpop.f32.mrf.mxu0
      %v428 = vadd.f32 0.0, %v427
      %v429 = vpop.f32.mrf.mxu0
      %430 = vmatprep.mubr.f32.mxu0 0.0
      %431 = vmatmul.mubr.f32.gmra.mxu0 %v299
      %v432 = vpop.f32.mrf.mxu0
      %v433 = vadd.f32 0.0, %v432
      %v434 = vpop.f32.mrf.mxu0
      %435 = vmatprep.mubr.f32.mxu0 0.0
      %436 = vmatmul.mubr.f32.gmra.mxu0 %v302
      %v437 = vpop.f32.mrf.mxu0
      %v438 = vadd.f32 0.0, %v437
      %v439 = vpop.f32.mrf.mxu0
      %440 = vmatprep.mubr.f32.mxu0 0.0
      %441 = vmatmul.mubr.f32.gmra.mxu0 %v305
      %v442 = vpop.f32.mrf.mxu0
      %v443 = vadd.f32 0.0, %v442
      %v444 = vpop.f32.mrf.mxu0
      %445 = vmatprep.mubr.f32.mxu0 0.0
      %446 = vmatmul.mubr.f32.gmra.mxu0 %v308
      %v447 = vpop.f32.mrf.mxu0
      %v448 = vadd.f32 0.0, %v447
      %v449 = vpop.f32.mrf.mxu0
      %450 = vmatprep.mubr.f32.mxu0 0.0
      %451 = vmatmul.mubr.f32.gmra.mxu0 %v311
      %v452 = vpop.f32.mrf.mxu0
      %v453 = vadd.f32 0.0, %v452
      %v454 = vpop.f32.mrf.mxu0
      %455 = vmatprep.mubr.f32.mxu0 0.0
      %456 = vmatmul.mubr.f32.gmra.mxu0 %v314
      %v457 = vpop.f32.mrf.mxu0
      %v458 = vadd.f32 0.0, %v457
      %v459 = vpop.f32.mrf.mxu0
      %460 = vdwg.mxu0
      %v461 = vld [vmem:[%s2] sm:$0xff]
      %v462 = vld [vmem:[%s2 + $0x8] sm:$0xff]
      %v463 = vld [vmem:[%s2 + $0x10] sm:$0xff]
      %v464 = vld [vmem:[%s2 + $0x18] sm:$0xff]
      %v465 = vld [vmem:[%s2 + $0x20] sm:$0xff]
      %v466 = vld [vmem:[%s2 + $0x28] sm:$0xff]
      %v467 = vld [vmem:[%s2 + $0x30] sm:$0xff]
      %v468 = vld [vmem:[%s2 + $0x38] sm:$0xff]
      %v469 = vld [vmem:[%s2 + $0x40] sm:$0xff]
      %v470 = vld [vmem:[%s2 + $0x48] sm:$0xff]
      %v471 = vld [vmem:[%s2 + $0x50] sm:$0xff]
      %v472 = vld [vmem:[%s2 + $0x58] sm:$0xff]
      %v473 = vld [vmem:[%s2 + $0x60] sm:$0xff]
      %v474 = vld [vmem:[%s2 + $0x68] sm:$0xff]
      %v475 = vld [vmem:[%s2 + $0x70] sm:$0xff]
      %v476 = vld [vmem:[%s2 + $0x78] sm:$0xff]
      %v477 = vld [vmem:[%s3] sm:$0x1]
      %v479 = vlaneseq
      %v480 = vshrl.u32 %v479, 7
      %v481 = vsub.s32 0, %v480
      %v482 = vrot.slane %v477, %v481
      %484 = vmatprep.subr.mxu0 0.0
      %485 = vmatpush1.msra.mxu0 %v476
      %486 = vmatprep.subr.mxu0 0.0
      %487 = vmatpush1.msra.mxu0 %v475
      %488 = vmatprep.subr.mxu0 0.0
      %489 = vmatpush1.msra.mxu0 %v474
      %490 = vmatprep.subr.mxu0 0.0
      %491 = vmatpush1.msra.mxu0 %v473
      %492 = vmatprep.subr.mxu0 0.0
      %493 = vmatpush1.msra.mxu0 %v472
      %494 = vmatprep.subr.mxu0 0.0
      %495 = vmatpush1.msra.mxu0 %v471
      %496 = vmatprep.subr.mxu0 0.0
      %497 = vmatpush1.msra.mxu0 %v470
      %498 = vmatprep.subr.mxu0 0.0
      %499 = vmatpush1.msra.mxu0 %v469
      %500 = vmatprep.subr.mxu0 0.0
      %501 = vmatpush1.msra.mxu0 %v468
      %502 = vmatprep.subr.mxu0 0.0
      %503 = vmatpush1.msra.mxu0 %v467
      %504 = vmatprep.subr.mxu0 0.0
      %505 = vmatpush1.msra.mxu0 %v466
      %506 = vmatprep.subr.mxu0 0.0
      %507 = vmatpush1.msra.mxu0 %v465
      %508 = vmatprep.subr.mxu0 0.0
      %509 = vmatpush1.msra.mxu0 %v464
      %510 = vmatprep.subr.mxu0 0.0
      %511 = vmatpush1.msra.mxu0 %v463
      %512 = vmatprep.subr.mxu0 0.0
      %513 = vmatpush1.msra.mxu0 %v462
      %514 = vmatprep.subr.mxu0 0.0
      %515 = vmatpush1.msra.mxu0 %v461
      %516 = vmatprep.subr.mxu0 0.0
      %517 = vmatpush2.msra.mxu0 0.0
      %518 = vmatprep.subr.mxu0 0.0
      %519 = vmatpush2.msra.mxu0 0.0
      %520 = vmatprep.subr.mxu0 0.0
      %521 = vmatpush2.msra.mxu0 0.0
      %522 = vmatprep.subr.mxu0 0.0
      %523 = vmatpush2.msra.mxu0 0.0
      %524 = vmatprep.subr.mxu0 0.0
      %525 = vmatpush2.msra.mxu0 0.0
      %526 = vmatprep.subr.mxu0 0.0
      %527 = vmatpush2.msra.mxu0 0.0
      %528 = vmatprep.subr.mxu0 0.0
      %529 = vmatpush2.msra.mxu0 0.0
      %530 = vmatprep.subr.mxu0 0.0
      %531 = vmatpush2.msra.mxu0 0.0
      %532 = vmatprep.subr.mxu0 0.0
      %533 = vmatpush2.msra.mxu0 0.0
      %534 = vmatprep.subr.mxu0 0.0
      %535 = vmatpush2.msra.mxu0 0.0
      %536 = vmatprep.subr.mxu0 0.0
      %537 = vmatpush2.msra.mxu0 0.0
      %538 = vmatprep.subr.mxu0 0.0
      %539 = vmatpush2.msra.mxu0 0.0
      %540 = vmatprep.subr.mxu0 0.0
      %541 = vmatpush2.msra.mxu0 0.0
      %542 = vmatprep.subr.mxu0 0.0
      %543 = vmatpush2.msra.mxu0 0.0
      %544 = vmatprep.subr.mxu0 0.0
      %545 = vmatpush2.msra.mxu0 0.0
      %546 = vmatprep.subr.mxu0 0.0
      %547 = vmatpush2.msra.mxu0 0.0
      %548 = vmatprep.mubr.f32.mxu0 0.0
      %549 = vmatmul.mubr.f32.gmra.mxu0 %v383
      %v550 = vpop.f32.mrf.mxu0
      %v551 = vadd.f32 %v482, %v550
      %v552 = vpop.f32.mrf.mxu0
      %553 = vmatprep.mubr.f32.mxu0 0.0
      %554 = vmatmul.mubr.f32.gmra.mxu0 %v388
      %v555 = vpop.f32.mrf.mxu0
      %v556 = vadd.f32 %v482, %v555
      %v557 = vpop.f32.mrf.mxu0
      %558 = vmatprep.mubr.f32.mxu0 0.0
      %559 = vmatmul.mubr.f32.gmra.mxu0 %v393
      %v560 = vpop.f32.mrf.mxu0
      %v561 = vadd.f32 %v482, %v560
      %v562 = vpop.f32.mrf.mxu0
      %563 = vmatprep.mubr.f32.mxu0 0.0
      %564 = vmatmul.mubr.f32.gmra.mxu0 %v398
      %v565 = vpop.f32.mrf.mxu0
      %v566 = vadd.f32 %v482, %v565
      %v567 = vpop.f32.mrf.mxu0
      %568 = vmatprep.mubr.f32.mxu0 0.0
      %569 = vmatmul.mubr.f32.gmra.mxu0 %v403
      %v570 = vpop.f32.mrf.mxu0
      %v571 = vadd.f32 %v482, %v570
      %v572 = vpop.f32.mrf.mxu0
      %573 = vmatprep.mubr.f32.mxu0 0.0
      %574 = vmatmul.mubr.f32.gmra.mxu0 %v408
      %v575 = vpop.f32.mrf.mxu0
      %v576 = vadd.f32 %v482, %v575
      %v577 = vpop.f32.mrf.mxu0
      %578 = vmatprep.mubr.f32.mxu0 0.0
      %579 = vmatmul.mubr.f32.gmra.mxu0 %v413
      %v580 = vpop.f32.mrf.mxu0
      %v581 = vadd.f32 %v482, %v580
      %v582 = vpop.f32.mrf.mxu0
      %583 = vmatprep.mubr.f32.mxu0 0.0
      %584 = vmatmul.mubr.f32.gmra.mxu0 %v418
      %v585 = vpop.f32.mrf.mxu0
      %v586 = vadd.f32 %v482, %v585
      %v587 = vpop.f32.mrf.mxu0
      %588 = vmatprep.mubr.f32.mxu0 0.0
      %589 = vmatmul.mubr.f32.gmra.mxu0 %v423
      %v590 = vpop.f32.mrf.mxu0
      %v591 = vadd.f32 %v482, %v590
      %v592 = vpop.f32.mrf.mxu0
      %593 = vmatprep.mubr.f32.mxu0 0.0
      %594 = vmatmul.mubr.f32.gmra.mxu0 %v428
      %v595 = vpop.f32.mrf.mxu0
      %v596 = vadd.f32 %v482, %v595
      %v597 = vpop.f32.mrf.mxu0
      %598 = vmatprep.mubr.f32.mxu0 0.0
      %599 = vmatmul.mubr.f32.gmra.mxu0 %v433
      %v600 = vpop.f32.mrf.mxu0
      %v601 = vadd.f32 %v482, %v600
      %v602 = vpop.f32.mrf.mxu0
      %603 = vmatprep.mubr.f32.mxu0 0.0
      %604 = vmatmul.mubr.f32.gmra.mxu0 %v438
      %v605 = vpop.f32.mrf.mxu0
      %v606 = vadd.f32 %v482, %v605
      %v607 = vpop.f32.mrf.mxu0
      %608 = vmatprep.mubr.f32.mxu0 0.0
      %609 = vmatmul.mubr.f32.gmra.mxu0 %v443
      %v610 = vpop.f32.mrf.mxu0
      %v611 = vadd.f32 %v482, %v610
      %v612 = vpop.f32.mrf.mxu0
      %613 = vmatprep.mubr.f32.mxu0 0.0
      %614 = vmatmul.mubr.f32.gmra.mxu0 %v448
      %v615 = vpop.f32.mrf.mxu0
      %v616 = vadd.f32 %v482, %v615
      %v617 = vpop.f32.mrf.mxu0
      %618 = vmatprep.mubr.f32.mxu0 0.0
      %619 = vmatmul.mubr.f32.gmra.mxu0 %v453
      %v620 = vpop.f32.mrf.mxu0
      %v621 = vadd.f32 %v482, %v620
      %v622 = vpop.f32.mrf.mxu0
      %623 = vmatprep.mubr.f32.mxu0 0.0
      %624 = vmatmul.mubr.f32.gmra.mxu0 %v458
      %v625 = vpop.f32.mrf.mxu0
      %v626 = vadd.f32 %v482, %v625
      %v627 = vpop.f32.mrf.mxu0
      %628 = vdwg.mxu0
      %629 = vst [vmem:[%s241] sm:$0xff] %v551
      %630 = vst [vmem:[%s241 + $0x8] sm:$0xff] %v556
      %631 = vst [vmem:[%s241 + $0x10] sm:$0xff] %v561
      %632 = vst [vmem:[%s241 + $0x18] sm:$0xff] %v566
      %633 = vst [vmem:[%s241 + $0x20] sm:$0xff] %v571
      %634 = vst [vmem:[%s241 + $0x28] sm:$0xff] %v576
      %635 = vst [vmem:[%s241 + $0x30] sm:$0xff] %v581
      %636 = vst [vmem:[%s241 + $0x38] sm:$0xff] %v586
      %637 = vst [vmem:[%s241 + $0x40] sm:$0xff] %v591
      %638 = vst [vmem:[%s241 + $0x48] sm:$0xff] %v596
      %639 = vst [vmem:[%s241 + $0x50] sm:$0xff] %v601
      %640 = vst [vmem:[%s241 + $0x58] sm:$0xff] %v606
      %641 = vst [vmem:[%s241 + $0x60] sm:$0xff] %v611
      %642 = vst [vmem:[%s241 + $0x68] sm:$0xff] %v616
      %643 = vst [vmem:[%s241 + $0x70] sm:$0xff] %v621
      %644 = vst [vmem:[%s241 + $0x78] sm:$0xff] %v626
      %s645 = smul.u32 16, %s20
      %p646 = scmp.lt.s32.totalorder %s19, 1
      %s647 = scalar_select %p646, %s19, 1
      %p648 = scmp.lt.s32.totalorder %s645, 31
      %s649 = scalar_select %p648, %s645, 31
      %s650 = smul.addr %s647, 32
      %s651 = sadd.s32 %s649, %s650
      %s652 = smul.addr %s651, 8
      %s653 = scalar_lea.vmem %s4, %s652
      // Predicated region
      $region37: #{upsample_forward.3} parent=35 // pred_check
        %p654 = pneg %p141
      $region38: #{upsample_forward.3} parent=35 // pred_check_branch
        %656 = sbr.rel (%p654) target = $region40
      $region39: #{upsample_forward.3} parent=35 // pred_region
        %s657 = smul.u32 16, %s20
      $region40: #{upsample_forward.3} parent=35 // pred_fallthru
        _
    $region36: #{upsample_forward.3} parent=5 // pred_fallthru
      _
    %p658 = scmp.le.s32.totalorder 2, %s10
    // Predicated region
    $region41: #{upsample_forward.3} parent=5 // pred_check
      %p659 = pneg %p658
    $region42: #{upsample_forward.3} parent=5 // pred_check_branch
      %661 = sbr.rel (%p659) target = $region44
    $region43: #{upsample_forward.3} parent=5 // pred_region
      %s662 = ssub.s32 %s10, 2
      // Predicated region
      $region45: #{upsample_forward.3} parent=43 // pred_check
        %p663 = pneg %p147
      $region46: #{upsample_forward.3} parent=43 // pred_check_branch
        %665 = sbr.rel (%p663) target = $region48
      $region47: #{upsample_forward.3} parent=43 // pred_region
        %s666 = smul.u32 16, %s22
        %p667 = scmp.lt.s32.totalorder %s21, 1
        %s668 = scalar_select %p667, %s21, 1
        %p669 = scmp.lt.s32.totalorder %s666, 31
        %s670 = scalar_select %p669, %s666, 31
        %s671 = smul.addr %s668, 32
        %s672 = sadd.s32 %s670, %s671
        %s673 = smul.addr %s672, 8
        %s674 = scalar_lea.vmem %s4, %s673
      $region48: #{upsample_forward.3} parent=43 // pred_fallthru
        _
    $region44: #{upsample_forward.3} parent=5 // pred_fallthru
      _
  $region6: #{upsample_forward.3} parent=0 // loop_footer
    %s14 = sadd.s32 1, %s10
  $region7: #{upsample_forward.3} parent=0 // loop_footer_branch
    %9 = sbr.rel target = $region3
  $region8: #{upsample_forward.3} parent=0 // loop_exit
    _

// kernel: upsample_forward.5
$region0: #{upsample_forward.5}
  #allocation0 [shape = 'u32[]', space=smem, size = 0x4, offset = 0x4, fixed_abs, tag = 'smem constant byte address 0x4 - core index']
  #allocation1 [shape = 'u32[144,128]{1,0:T(1,128)}', space=vmem, size = 0x12000, scoped, tag = 'internal scratch']
  %s0 = inlined_call_operand.vmem [shape: f32[2,18,18,128], index: 0, kind: input, shape index: {}, may-alias: {0,1,2}]
  %s1 = inlined_call_operand.vmem [shape: f32[2,18,18,128], index: 1, kind: input, shape index: {}, may-alias: {0,1,2}]
  %s2 = inlined_call_operand.vmem [shape: f32[2,18,18,128], index: 2, kind: input, shape index: {}, may-alias: {0,1,2}]
  %s3 = inlined_call_operand.vmem [shape: f32[1152,128], index: 3, kind: input, shape index: {}]
  %s4 = inlined_call_operand.vmem [shape: f32[1,128], index: 4, kind: input, shape index: {}]
  %s5 = inlined_call_operand.vmem [shape: f32[1,128], index: 5, kind: input, shape index: {}]
  %s6 = inlined_call_operand.vmem [shape: f32[2,16,16,128], index: 6, kind: output, shape index: {}]
  %s7 = sld [smem:[#allocation0]]
  $region57: #{upsample_forward.5} parent=0
    _
  %s9 = ssub.s32 1, %s7
  %s10 = scalar_select 0, %s9, %s7
  loop: start=0, step=1, limit=6
  $region2: #{upsample_forward.5} parent=0 // loop_pre_header
    _
  $region3: #{upsample_forward.5} parent=0 // loop_header
    %s12 = sphi 0, %s16
    %p13 = scmp.ge.s32.totalorder %s12, 6
    %s19 = sphi 0, %s31
    %s20 = sphi 0, %s27
    %s21 = sphi 0, %s19
    %s22 = sphi 0, %s20
    %s23 = sphi 0, %s21
    %s24 = sphi 0, %s22
    %s36 = sphi 0, %s38
    %s39 = sphi 0, %s36
    %s40 = sphi 0, %s39
    %s56 = sphi 0, %s40
    %s68 = sphi 0, %s70
    %s71 = sphi 0, %s68
    %s72 = sphi 0, %s71
    %s88 = sphi 0, %s72
    %s102 = sphi 0, %s104
    %s105 = sphi 0, %s102
    %s106 = sphi 0, %s105
    %s122 = sphi 0, %s106
    %s126 = sphi 0, %s126
    %s128 = sphi 0, %s126
    %s129 = sphi 0, %s128
    %s143 = sphi 0, %s129
    %s147 = sphi 0, %s147
    %s149 = sphi 0, %s147
    %s150 = sphi 0, %s149
    %s164 = sphi 0, %s150
    %s168 = sphi 0, %s168
    %s170 = sphi 0, %s168
    %s171 = sphi 0, %s170
    %s185 = sphi 0, %s171
    %s193 = sphi 0, %s195
    %s196 = sphi 0, %s193
    %s197 = sphi 0, %s196
    %s213 = sphi 0, %s197
  $region4: #{upsample_forward.5} parent=0 // loop_header_branch
    %15 = sbr.rel (%p13) target = $region8
  $region5: #{upsample_forward.5} parent=0 // loop_body
    %s17 = ssub.s32 %s12, 1
    %s18 = ssub.s32 %s12, 2
    %s25 = sadd.s32 1, %s20
    %p26 = scmp.ge.s32.totalorder %s25, 2
    %s27 = scalar_select %p26, 0, %s25
    %s28 = sadd.s32 1, %s19
    %s29 = scalar_select %p26, %s28, %s19
    %p30 = scmp.ge.s32.totalorder %s29, 2
    %s31 = scalar_select %p30, 0, %s29
    %s32 = ssub.s32 %s19, %s31
    %s33 = ssub.s32 %s20, %s27
    %s34 = sor.u32 %s32, %s33
    %p35 = scmp.eq.s32.totalorder %s34, 0
    %s37 = sadd.s32 %s36, 1
    %s38 = scalar_select %p35, %s36, %s37
    %p41 = pneg %p35
    %p42 = scmp.eq.s32.totalorder %s12, 3
    %p43 = por %p41, %p42
    %p44 = scmp.ne.s32.totalorder %s36, %s39
    %p45 = scmp.eq.s32.totalorder %s12, 0
    %p46 = por %p44, %p45
    %p47 = scmp.ne.s32.totalorder %s36, %s39
    %p48 = scmp.eq.s32.totalorder %s17, 3
    %p49 = por %p47, %p48
    %p50 = scmp.ne.s32.totalorder %s39, %s40
    %p51 = scmp.eq.s32.totalorder %s17, 0
    %p52 = por %p50, %p51
    %p53 = scmp.ne.s32.totalorder %s39, %s40
    %p54 = scmp.eq.s32.totalorder %s18, 3
    %p55 = por %p53, %p54
    %p57 = scmp.ne.s32.totalorder %s40, %s56
    %p58 = scmp.eq.s32.totalorder %s18, 0
    %p59 = por %p57, %p58
    %s60 = sadd.s32 %s20, 1
    %s61 = smul.u32 %s60, 8
    %s62 = sadd.s32 %s27, 1
    %s63 = smul.u32 %s62, 8
    %s64 = ssub.s32 %s19, %s31
    %s65 = ssub.s32 %s61, %s63
    %s66 = sor.u32 %s64, %s65
    %p67 = scmp.eq.s32.totalorder %s66, 0
    %s69 = sadd.s32 %s68, 1
    %s70 = scalar_select %p67, %s68, %s69
    %p73 = pneg %p67
    %p74 = scmp.eq.s32.totalorder %s12, 3
    %p75 = por %p73, %p74
    %p76 = scmp.ne.s32.totalorder %s68, %s71
    %p77 = scmp.eq.s32.totalorder %s12, 0
    %p78 = por %p76, %p77
    %p79 = scmp.ne.s32.totalorder %s68, %s71
    %p80 = scmp.eq.s32.totalorder %s17, 3
    %p81 = por %p79, %p80
    %p82 = scmp.ne.s32.totalorder %s71, %s72
    %p83 = scmp.eq.s32.totalorder %s17, 0
    %p84 = por %p82, %p83
    %p85 = scmp.ne.s32.totalorder %s71, %s72
    %p86 = scmp.eq.s32.totalorder %s18, 3
    %p87 = por %p85, %p86
    %p89 = scmp.ne.s32.totalorder %s72, %s88
    %p90 = scmp.eq.s32.totalorder %s18, 0
    %p91 = por %p89, %p90
    %s92 = sadd.s32 %s20, 1
    %s93 = smul.u32 %s92, 8
    %s94 = sadd.s32 %s93, 1
    %s95 = sadd.s32 %s27, 1
    %s96 = smul.u32 %s95, 8
    %s97 = sadd.s32 %s96, 1
    %s98 = ssub.s32 %s19, %s31
    %s99 = ssub.s32 %s94, %s97
    %s100 = sor.u32 %s98, %s99
    %p101 = scmp.eq.s32.totalorder %s100, 0
    %s103 = sadd.s32 %s102, 1
    %s104 = scalar_select %p101, %s102, %s103
    %p107 = pneg %p101
    %p108 = scmp.eq.s32.totalorder %s12, 3
    %p109 = por %p107, %p108
    %p110 = scmp.ne.s32.totalorder %s102, %s105
    %p111 = scmp.eq.s32.totalorder %s12, 0
    %p112 = por %p110, %p111
    %p113 = scmp.ne.s32.totalorder %s102, %s105
    %p114 = scmp.eq.s32.totalorder %s17, 3
    %p115 = por %p113, %p114
    %p116 = scmp.ne.s32.totalorder %s105, %s106
    %p117 = scmp.eq.s32.totalorder %s17, 0
    %p118 = por %p116, %p117
    %p119 = scmp.ne.s32.totalorder %s105, %s106
    %p120 = scmp.eq.s32.totalorder %s18, 3
    %p121 = por %p119, %p120
    %p123 = scmp.ne.s32.totalorder %s106, %s122
    %p124 = scmp.eq.s32.totalorder %s18, 0
    %p125 = por %p123, %p124
    %s127 = sadd.s32 %s126, 1
    %p130 = scmp.eq.s32.totalorder %s12, 3
    %p131 = scmp.ne.s32.totalorder %s126, %s128
    %p132 = scmp.eq.s32.totalorder %s12, 0
    %p133 = por %p131, %p132
    %p134 = scmp.ne.s32.totalorder %s126, %s128
    %p135 = scmp.eq.s32.totalorder %s17, 3
    %p136 = por %p134, %p135
    %p137 = scmp.ne.s32.totalorder %s128, %s129
    %p138 = scmp.eq.s32.totalorder %s17, 0
    %p139 = por %p137, %p138
    %p140 = scmp.ne.s32.totalorder %s128, %s129
    %p141 = scmp.eq.s32.totalorder %s18, 3
    %p142 = por %p140, %p141
    %p144 = scmp.ne.s32.totalorder %s129, %s143
    %p145 = scmp.eq.s32.totalorder %s18, 0
    %p146 = por %p144, %p145
    %s148 = sadd.s32 %s147, 1
    %p151 = scmp.eq.s32.totalorder %s12, 3
    %p152 = scmp.ne.s32.totalorder %s147, %s149
    %p153 = scmp.eq.s32.totalorder %s12, 0
    %p154 = por %p152, %p153
    %p155 = scmp.ne.s32.totalorder %s147, %s149
    %p156 = scmp.eq.s32.totalorder %s17, 3
    %p157 = por %p155, %p156
    %p158 = scmp.ne.s32.totalorder %s149, %s150
    %p159 = scmp.eq.s32.totalorder %s17, 0
    %p160 = por %p158, %p159
    %p161 = scmp.ne.s32.totalorder %s149, %s150
    %p162 = scmp.eq.s32.totalorder %s18, 3
    %p163 = por %p161, %p162
    %p165 = scmp.ne.s32.totalorder %s150, %s164
    %p166 = scmp.eq.s32.totalorder %s18, 0
    %p167 = por %p165, %p166
    %s169 = sadd.s32 %s168, 1
    %p172 = scmp.eq.s32.totalorder %s12, 3
    %p173 = scmp.ne.s32.totalorder %s168, %s170
    %p174 = scmp.eq.s32.totalorder %s12, 0
    %p175 = por %p173, %p174
    %p176 = scmp.ne.s32.totalorder %s168, %s170
    %p177 = scmp.eq.s32.totalorder %s17, 3
    %p178 = por %p176, %p177
    %p179 = scmp.ne.s32.totalorder %s170, %s171
    %p180 = scmp.eq.s32.totalorder %s17, 0
    %p181 = por %p179, %p180
    %p182 = scmp.ne.s32.totalorder %s170, %s171
    %p183 = scmp.eq.s32.totalorder %s18, 3
    %p184 = por %p182, %p183
    %p186 = scmp.ne.s32.totalorder %s171, %s185
    %p187 = scmp.eq.s32.totalorder %s18, 0
    %p188 = por %p186, %p187
    %s189 = ssub.s32 %s19, %s31
    %s190 = ssub.s32 %s20, %s27
    %s191 = sor.u32 %s189, %s190
    %p192 = scmp.eq.s32.totalorder %s191, 0
    %s194 = sadd.s32 %s193, 1
    %s195 = scalar_select %p192, %s193, %s194
    %p198 = pneg %p192
    %p199 = scmp.eq.s32.totalorder %s12, 3
    %p200 = por %p198, %p199
    %p201 = scmp.ne.s32.totalorder %s193, %s196
    %p202 = scmp.eq.s32.totalorder %s12, 0
    %p203 = por %p201, %p202
    %p204 = scmp.ne.s32.totalorder %s193, %s196
    %p205 = scmp.eq.s32.totalorder %s17, 3
    %p206 = por %p204, %p205
    %p207 = scmp.ne.s32.totalorder %s196, %s197
    %p208 = scmp.eq.s32.totalorder %s17, 0
    %p209 = por %p207, %p208
    %p210 = scmp.ne.s32.totalorder %s196, %s197
    %p211 = scmp.eq.s32.totalorder %s18, 3
    %p212 = por %p210, %p211
    %p214 = scmp.ne.s32.totalorder %s197, %s213
    %p215 = scmp.eq.s32.totalorder %s18, 0
    %p216 = por %p214, %p215
    %p217 = scmp.le.s32.totalorder 1, %s12
    %p218 = scmp.lt.s32.totalorder %s12, 5
    %p219 = pnand %p217, %p218
    %p220 = pneg %p219
    // Predicated region
    $region9: #{upsample_forward.5} parent=5 // pred_check
      _
    $region10: #{upsample_forward.5} parent=5 // pred_check_branch
      %222 = sbr.rel (%p219) target = $region12
    $region11: #{upsample_forward.5} parent=5 // pred_region
      %s223 = ssub.s32 %s12, 1
      // Predicated region
      $region13: #{upsample_forward.5} parent=11 // pred_check
        %p224 = pneg %p139
      $region14: #{upsample_forward.5} parent=11 // pred_check_branch
        %226 = sbr.rel (%p224) target = $region16
      $region15: #{upsample_forward.5} parent=11 // pred_region
        _
      $region16: #{upsample_forward.5} parent=11 // pred_fallthru
        _
      // Predicated region
      $region17: #{upsample_forward.5} parent=11 // pred_check
        %p227 = pneg %p160
      $region18: #{upsample_forward.5} parent=11 // pred_check_branch
        %229 = sbr.rel (%p227) target = $region20
      $region19: #{upsample_forward.5} parent=11 // pred_region
        _
      $region20: #{upsample_forward.5} parent=11 // pred_fallthru
        _
      // Predicated region
      $region21: #{upsample_forward.5} parent=11 // pred_check
        %p230 = pneg %p181
      $region22: #{upsample_forward.5} parent=11 // pred_check_branch
        %232 = sbr.rel (%p230) target = $region24
      $region23: #{upsample_forward.5} parent=11 // pred_region
        _
      $region24: #{upsample_forward.5} parent=11 // pred_fallthru
        _
    $region12: #{upsample_forward.5} parent=5 // pred_fallthru
      _
    %p233 = scmp.lt.s32.totalorder %s12, 4
    // Predicated region
    $region25: #{upsample_forward.5} parent=5 // pred_check
      %p234 = pneg %p233
    $region26: #{upsample_forward.5} parent=5 // pred_check_branch
      %236 = sbr.rel (%p234) target = $region28
    $region27: #{upsample_forward.5} parent=5 // pred_region
      // Predicated region
      $region29: #{upsample_forward.5} parent=27 // pred_check
        %p237 = pneg %p46
      $region30: #{upsample_forward.5} parent=27 // pred_check_branch
        %239 = sbr.rel (%p237) target = $region32
      $region31: #{upsample_forward.5} parent=27 // pred_region
        %s240 = smul.u32 8, %s20
        %s241 = ssub.s32 18, %s240
        %p242 = scmp.lt.s32.totalorder %s241, 8
        %s243 = scalar_select %p242, %s241, 8
        %s244 = smul.u32 128, %s243
        %s245 = smul.u32 %s244, 3
        %p246 = scmp.lt.s32.totalorder %s19, 1
        %s247 = scalar_select %p246, %s19, 1
        %p248 = scmp.lt.s32.totalorder %s240, 17
        %s249 = scalar_select %p248, %s240, 17
        %s250 = smul.addr %s249, 3
        %s251 = smul.addr %s247, 54
        %s252 = sadd.s32 %s250, %s251
        %s253 = smul.addr %s252, 8
        %s254 = scalar_lea.vmem %s0, %s253
        %s255 = smul.u32 8, %s20
        %s256 = ssub.s32 18, %s255
        %p257 = scmp.lt.s32.totalorder %s256, 8
        %s258 = scalar_select %p257, %s256, 8
        %s259 = smul.u32 128, %s258
        %s260 = smul.u32 %s259, 3
      $region32: #{upsample_forward.5} parent=27 // pred_fallthru
        _
      // Predicated region
      $region33: #{upsample_forward.5} parent=27 // pred_check
        %p261 = pneg %p78
      $region34: #{upsample_forward.5} parent=27 // pred_check_branch
        %263 = sbr.rel (%p261) target = $region36
      $region35: #{upsample_forward.5} parent=27 // pred_region
        %s264 = sadd.s32 %s20, 1
        %s265 = smul.u32 %s264, 8
        %p266 = scmp.lt.s32.totalorder %s19, 1
        %s267 = scalar_select %p266, %s19, 1
        %p268 = scmp.lt.s32.totalorder %s265, 17
        %s269 = scalar_select %p268, %s265, 17
        %s270 = smul.addr %s269, 3
        %s271 = smul.addr %s267, 54
        %s272 = sadd.s32 %s270, %s271
        %s273 = smul.addr %s272, 8
        %s274 = scalar_lea.vmem %s1, %s273
        %s275 = sadd.s32 %s20, 1
        %s276 = smul.u32 %s275, 8
      $region36: #{upsample_forward.5} parent=27 // pred_fallthru
        _
      // Predicated region
      $region37: #{upsample_forward.5} parent=27 // pred_check
        %p277 = pneg %p112
      $region38: #{upsample_forward.5} parent=27 // pred_check_branch
        %279 = sbr.rel (%p277) target = $region40
      $region39: #{upsample_forward.5} parent=27 // pred_region
        %s280 = sadd.s32 %s20, 1
        %s281 = smul.u32 %s280, 8
        %s282 = sadd.s32 %s281, 1
        %p283 = scmp.lt.s32.totalorder %s19, 1
        %s284 = scalar_select %p283, %s19, 1
        %p285 = scmp.lt.s32.totalorder %s282, 17
        %s286 = scalar_select %p285, %s282, 17
        %s287 = smul.addr %s286, 3
        %s288 = smul.addr %s284, 54
        %s289 = sadd.s32 %s287, %s288
        %s290 = smul.addr %s289, 8
        %s291 = scalar_lea.vmem %s2, %s290
        %s292 = sadd.s32 %s20, 1
        %s293 = smul.u32 %s292, 8
        %s294 = sadd.s32 %s293, 1
      $region40: #{upsample_forward.5} parent=27 // pred_fallthru
        _
    $region28: #{upsample_forward.5} parent=5 // pred_fallthru
      _
    %p295 = scmp.le.s32.totalorder 1, %s12
    %p296 = scmp.lt.s32.totalorder %s12, 5
    %p297 = pnand %p295, %p296
    %p298 = pneg %p297
    // Predicated region
    $region41: #{upsample_forward.5} parent=5 // pred_check
      _
    $region42: #{upsample_forward.5} parent=5 // pred_check_branch
      %300 = sbr.rel (%p297) target = $region44
    $region43: #{upsample_forward.5} parent=5 // pred_region
      %s301 = ssub.s32 %s12, 1
      %s302 = smul.u32 8, %s22
      %s303 = ssub.s32 18, %s302
      %p304 = scmp.lt.s32.totalorder %s303, 8
      %s305 = scalar_select %p304, %s303, 8
      %s306 = smul.u32 128, %s305
      %s307 = smul.u32 %s306, 3
      %p308 = scmp.lt.s32.totalorder %s21, 1
      %s309 = scalar_select %p308, %s21, 1
      %p310 = scmp.lt.s32.totalorder %s302, 17
      %s311 = scalar_select %p310, %s302, 17
      %s312 = smul.addr %s311, 3
      %s313 = smul.addr %s309, 54
      %s314 = sadd.s32 %s312, %s313
      %s315 = smul.addr %s314, 8
      %s316 = scalar_lea.vmem %s0, %s315
      %p317 = pneg %p52
      %p318 = pneg %p49
      %s319 = sadd.s32 %s22, 1
      %s320 = smul.u32 %s319, 8
      %p321 = scmp.lt.s32.totalorder %s21, 1
      %s322 = scalar_select %p321, %s21, 1
      %p323 = scmp.lt.s32.totalorder %s320, 17
      %s324 = scalar_select %p323, %s320, 17
      %s325 = smul.addr %s324, 3
      %s326 = smul.addr %s322, 54
      %s327 = sadd.s32 %s325, %s326
      %s328 = smul.addr %s327, 8
      %s329 = scalar_lea.vmem %s1, %s328
      %p330 = pneg %p84
      %p331 = pneg %p81
      %s332 = sadd.s32 %s22, 1
      %s333 = smul.u32 %s332, 8
      %s334 = sadd.s32 %s333, 1
      %p335 = scmp.lt.s32.totalorder %s21, 1
      %s336 = scalar_select %p335, %s21, 1
      %p337 = scmp.lt.s32.totalorder %s334, 17
      %s338 = scalar_select %p337, %s334, 17
      %s339 = smul.addr %s338, 3
      %s340 = smul.addr %s336, 54
      %s341 = sadd.s32 %s339, %s340
      %s342 = smul.addr %s341, 8
      %s343 = scalar_lea.vmem %s2, %s342
      %p344 = pneg %p118
      %p345 = pneg %p115
      %p346 = pneg %p139
      %p347 = pneg %p136
      %p348 = pneg %p160
      %p349 = pneg %p157
      %p350 = pneg %p181
      %p351 = pneg %p178
      %p352 = pneg %p209
      %p353 = pneg %p206
      %s354 = smul.u32 8, %s22
      %p355 = scmp.lt.s32.totalorder %s21, 1
      %s356 = scalar_select %p355, %s21, 1
      %p357 = scmp.lt.s32.totalorder %s354, 15
      %s358 = scalar_select %p357, %s354, 15
      %s359 = smul.addr %s358, 2
      %s360 = smul.addr %s356, 32
      %s361 = sadd.s32 %s359, %s360
      %s362 = smul.addr %s361, 8
      %s363 = scalar_lea.vmem %s6, %s362
      %s364 = smul.u32 8, %s22
      %s365 = ssub.s32 18, %s364
      %p366 = scmp.lt.s32.totalorder %s365, 8
      %s367 = scalar_select %p366, %s365, 8
      %s368 = smul.u32 128, %s367
      %s369 = smul.u32 %s368, 3
      %p370 = scmp.lt.s32.totalorder %s21, 1
      %s371 = scalar_select %p370, %s21, 1
      %p372 = scmp.lt.s32.totalorder %s364, 17
      %s373 = scalar_select %p372, %s364, 17
      %s374 = smul.addr %s373, 3
      %s375 = smul.addr %s371, 54
      %s376 = sadd.s32 %s374, %s375
      %s377 = smul.addr %s376, 8
      %s378 = scalar_lea.vmem %s0, %s377
      %s379 = smul.u32 8, %s22
      %s380 = ssub.s32 18, %s379
      %p381 = scmp.lt.s32.totalorder %s380, 8
      %s382 = scalar_select %p381, %s380, 8
      %s383 = smul.u32 128, %s382
      %s384 = smul.u32 %s383, 3
      %s385 = sadd.s32 %s22, 1
      %s386 = smul.u32 %s385, 8
      %p387 = scmp.lt.s32.totalorder %s21, 1
      %s388 = scalar_select %p387, %s21, 1
      %p389 = scmp.lt.s32.totalorder %s386, 17
      %s390 = scalar_select %p389, %s386, 17
      %s391 = smul.addr %s390, 3
      %s392 = smul.addr %s388, 54
      %s393 = sadd.s32 %s391, %s392
      %s394 = smul.addr %s393, 8
      %s395 = scalar_lea.vmem %s1, %s394
      %s396 = sadd.s32 %s22, 1
      %s397 = smul.u32 %s396, 8
      %s398 = sadd.s32 %s22, 1
      %s399 = smul.u32 %s398, 8
      %s400 = sadd.s32 %s399, 1
      %p401 = scmp.lt.s32.totalorder %s21, 1
      %s402 = scalar_select %p401, %s21, 1
      %p403 = scmp.lt.s32.totalorder %s400, 17
      %s404 = scalar_select %p403, %s400, 17
      %s405 = smul.addr %s404, 3
      %s406 = smul.addr %s402, 54
      %s407 = sadd.s32 %s405, %s406
      %s408 = smul.addr %s407, 8
      %s409 = scalar_lea.vmem %s2, %s408
      %s410 = sadd.s32 %s22, 1
      %s411 = smul.u32 %s410, 8
      %s412 = sadd.s32 %s411, 1
      %s413 = smul.u32 8, %s22
      %p414 = scmp.lt.s32.totalorder %s21, 1
      %s415 = scalar_select %p414, %s21, 1
      %p416 = scmp.lt.s32.totalorder %s413, 15
      %s417 = scalar_select %p416, %s413, 15
      %s418 = smul.addr %s417, 2
      %s419 = smul.addr %s415, 32
      %s420 = sadd.s32 %s418, %s419
      %s421 = smul.addr %s420, 8
      %s422 = scalar_lea.vmem %s6, %s421
      %s423 = smul.u32 8, %s22
      %v424 = vld [vmem:[%s378] sm:$0xff]
      %v425 = vld [vmem:[%s378 + $0x8] sm:$0xff]
      %v426 = vld [vmem:[%s378 + $0x10] sm:$0x3]
      %v427 = vld [vmem:[%s378 + $0x18] sm:$0xff]
      %v428 = vld [vmem:[%s378 + $0x20] sm:$0xff]
      %v429 = vld [vmem:[%s378 + $0x28] sm:$0x3]
      %v430 = vld [vmem:[%s378 + $0x30] sm:$0xff]
      %v431 = vld [vmem:[%s378 + $0x38] sm:$0xff]
      %v432 = vld [vmem:[%s378 + $0x40] sm:$0x3]
      %v433 = vld [vmem:[%s378 + $0x48] sm:$0xff]
      %v434 = vld [vmem:[%s378 + $0x50] sm:$0xff]
      %v435 = vld [vmem:[%s378 + $0x58] sm:$0x3]
      %v436 = vld [vmem:[%s378 + $0x60] sm:$0xff]
      %v437 = vld [vmem:[%s378 + $0x68] sm:$0xff]
      %v438 = vld [vmem:[%s378 + $0x70] sm:$0x3]
      %v439 = vld [vmem:[%s378 + $0x78] sm:$0xff]
      %v440 = vld [vmem:[%s378 + $0x80] sm:$0xff]
      %v441 = vld [vmem:[%s378 + $0x88] sm:$0x3]
      %v442 = vld [vmem:[%s378 + $0x90] sm:$0xff]
      %v443 = vld [vmem:[%s378 + $0x98] sm:$0xff]
      %v444 = vld [vmem:[%s378 + $0xa0] sm:$0x3]
      %v445 = vld [vmem:[%s378 + $0xa8] sm:$0xff]
      %v446 = vld [vmem:[%s378 + $0xb0] sm:$0xff]
      %v447 = vld [vmem:[%s378 + $0xb8] sm:$0x3]
      %v448 = vld [vmem:[%s395] sm:$0xff]
      %v449 = vld [vmem:[%s395 + $0x8] sm:$0xff]
      %v450 = vld [vmem:[%s395 + $0x10] sm:$0x3]
      %v451 = vld [vmem:[%s409] sm:$0xff]
      %v452 = vld [vmem:[%s409 + $0x8] sm:$0xff]
      %v453 = vld [vmem:[%s409 + $0x10] sm:$0x3]
      %vm478 = vcmask 1046528
      %v479 = vrot.slane %v424, 1
      %v480 = vrot.slane %v425, 1
      %v481 = vsel %vm478, %v479, %v480
      %v482 = vrot.slane %v426, 1
      %v483 = vsel %vm478, %v480, %v482
      %v484 = vrot.slane %v427, 1
      %v485 = vrot.slane %v428, 1
      %v486 = vsel %vm478, %v484, %v485
      %v487 = vrot.slane %v429, 1
      %v488 = vsel %vm478, %v485, %v487
      %v489 = vrot.slane %v430, 1
      %v490 = vrot.slane %v431, 1
      %v491 = vsel %vm478, %v489, %v490
      %v492 = vrot.slane %v432, 1
      %v493 = vsel %vm478, %v490, %v492
      %v494 = vrot.slane %v433, 1
      %v495 = vrot.slane %v434, 1
      %v496 = vsel %vm478, %v494, %v495
      %v497 = vrot.slane %v435, 1
      %v498 = vsel %vm478, %v495, %v497
      %v499 = vrot.slane %v436, 1
      %v500 = vrot.slane %v437, 1
      %v501 = vsel %vm478, %v499, %v500
      %v502 = vrot.slane %v438, 1
      %v503 = vsel %vm478, %v500, %v502
      %v504 = vrot.slane %v439, 1
      %v505 = vrot.slane %v440, 1
      %v506 = vsel %vm478, %v504, %v505
      %v507 = vrot.slane %v441, 1
      %v508 = vsel %vm478, %v505, %v507
      %v509 = vrot.slane %v442, 1
      %v510 = vrot.slane %v443, 1
      %v511 = vsel %vm478, %v509, %v510
      %v512 = vrot.slane %v444, 1
      %v513 = vsel %vm478, %v510, %v512
      %v514 = vrot.slane %v445, 1
      %v515 = vrot.slane %v446, 1
      %v516 = vsel %vm478, %v514, %v515
      %v517 = vrot.slane %v447, 1
      %v518 = vsel %vm478, %v515, %v517
      %vm535 = vcmask 1045504
      %v536 = vrot.slane %v424, 2
      %v537 = vrot.slane %v425, 2
      %v538 = vsel %vm535, %v536, %v537
      %v539 = vrot.slane %v426, 2
      %v540 = vsel %vm535, %v537, %v539
      %v541 = vrot.slane %v427, 2
      %v542 = vrot.slane %v428, 2
      %v543 = vsel %vm535, %v541, %v542
      %v544 = vrot.slane %v429, 2
      %v545 = vsel %vm535, %v542, %v544
      %v546 = vrot.slane %v430, 2
      %v547 = vrot.slane %v431, 2
      %v548 = vsel %vm535, %v546, %v547
      %v549 = vrot.slane %v432, 2
      %v550 = vsel %vm535, %v547, %v549
      %v551 = vrot.slane %v433, 2
      %v552 = vrot.slane %v434, 2
      %v553 = vsel %vm535, %v551, %v552
      %v554 = vrot.slane %v435, 2
      %v555 = vsel %vm535, %v552, %v554
      %v556 = vrot.slane %v436, 2
      %v557 = vrot.slane %v437, 2
      %v558 = vsel %vm535, %v556, %v557
      %v559 = vrot.slane %v438, 2
      %v560 = vsel %vm535, %v557, %v559
      %v561 = vrot.slane %v439, 2
      %v562 = vrot.slane %v440, 2
      %v563 = vsel %vm535, %v561, %v562
      %v564 = vrot.slane %v441, 2
      %v565 = vsel %vm535, %v562, %v564
      %v566 = vrot.slane %v442, 2
      %v567 = vrot.slane %v443, 2
      %v568 = vsel %vm535, %v566, %v567
      %v569 = vrot.slane %v444, 2
      %v570 = vsel %vm535, %v567, %v569
      %v571 = vrot.slane %v445, 2
      %v572 = vrot.slane %v446, 2
      %v573 = vsel %vm535, %v571, %v572
      %v574 = vrot.slane %v447, 2
      %v575 = vsel %vm535, %v572, %v574
      %v595 = vrot.slane %v448, 1
      %v596 = vrot.slane %v449, 1
      %v597 = vsel %vm478, %v595, %v596
      %v598 = vrot.slane %v450, 1
      %v599 = vsel %vm478, %v596, %v598
      %v602 = vrot.slane %v448, 2
      %v603 = vrot.slane %v449, 2
      %v604 = vsel %vm535, %v602, %v603
      %v605 = vrot.slane %v450, 2
      %v606 = vsel %vm535, %v603, %v605
      %v612 = vrot.slane %v451, 1
      %v613 = vrot.slane %v452, 1
      %v614 = vsel %vm478, %v612, %v613
      %v615 = vrot.slane %v453, 1
      %v616 = vsel %vm478, %v613, %v615
      %v619 = vrot.slane %v451, 2
      %v620 = vrot.slane %v452, 2
      %v621 = vsel %vm535, %v619, %v620
      %v622 = vrot.slane %v453, 2
      %v623 = vsel %vm535, %v620, %v622
      %v626 = vld [vmem:[%s3] sm:$0xff]
      %v627 = vld [vmem:[%s3 + $0x8] sm:$0xff]
      %v628 = vld [vmem:[%s3 + $0x10] sm:$0xff]
      %v629 = vld [vmem:[%s3 + $0x18] sm:$0xff]
      %v630 = vld [vmem:[%s3 + $0x20] sm:$0xff]
      %v631 = vld [vmem:[%s3 + $0x28] sm:$0xff]
      %v632 = vld [vmem:[%s3 + $0x30] sm:$0xff]
      %v633 = vld [vmem:[%s3 + $0x38] sm:$0xff]
      %v634 = vld [vmem:[%s3 + $0x40] sm:$0xff]
      %v635 = vld [vmem:[%s3 + $0x48] sm:$0xff]
      %v636 = vld [vmem:[%s3 + $0x50] sm:$0xff]
      %v637 = vld [vmem:[%s3 + $0x58] sm:$0xff]
      %v638 = vld [vmem:[%s3 + $0x60] sm:$0xff]
      %v639 = vld [vmem:[%s3 + $0x68] sm:$0xff]
      %v640 = vld [vmem:[%s3 + $0x70] sm:$0xff]
      %v641 = vld [vmem:[%s3 + $0x78] sm:$0xff]
      %v642 = vld [vmem:[%s3 + $0x80] sm:$0xff]
      %v643 = vld [vmem:[%s3 + $0x88] sm:$0xff]
      %v644 = vld [vmem:[%s3 + $0x90] sm:$0xff]
      %v645 = vld [vmem:[%s3 + $0x98] sm:$0xff]
      %v646 = vld [vmem:[%s3 + $0xa0] sm:$0xff]
      %v647 = vld [vmem:[%s3 + $0xa8] sm:$0xff]
      %v648 = vld [vmem:[%s3 + $0xb0] sm:$0xff]
      %v649 = vld [vmem:[%s3 + $0xb8] sm:$0xff]
      %v650 = vld [vmem:[%s3 + $0xc0] sm:$0xff]
      %v651 = vld [vmem:[%s3 + $0xc8] sm:$0xff]
      %v652 = vld [vmem:[%s3 + $0xd0] sm:$0xff]
      %v653 = vld [vmem:[%s3 + $0xd8] sm:$0xff]
      %v654 = vld [vmem:[%s3 + $0xe0] sm:$0xff]
      %v655 = vld [vmem:[%s3 + $0xe8] sm:$0xff]
      %v656 = vld [vmem:[%s3 + $0xf0] sm:$0xff]
      %v657 = vld [vmem:[%s3 + $0xf8] sm:$0xff]
      %v658 = vld [vmem:[%s3 + $0x100] sm:$0xff]
      %v659 = vld [vmem:[%s3 + $0x108] sm:$0xff]
      %v660 = vld [vmem:[%s3 + $0x110] sm:$0xff]
      %v661 = vld [vmem:[%s3 + $0x118] sm:$0xff]
      %v662 = vld [vmem:[%s3 + $0x120] sm:$0xff]
      %v663 = vld [vmem:[%s3 + $0x128] sm:$0xff]
      %v664 = vld [vmem:[%s3 + $0x130] sm:$0xff]
      %v665 = vld [vmem:[%s3 + $0x138] sm:$0xff]
      %v666 = vld [vmem:[%s3 + $0x140] sm:$0xff]
      %v667 = vld [vmem:[%s3 + $0x148] sm:$0xff]
      %v668 = vld [vmem:[%s3 + $0x150] sm:$0xff]
      %v669 = vld [vmem:[%s3 + $0x158] sm:$0xff]
      %v670 = vld [vmem:[%s3 + $0x160] sm:$0xff]
      %v671 = vld [vmem:[%s3 + $0x168] sm:$0xff]
      %v672 = vld [vmem:[%s3 + $0x170] sm:$0xff]
      %v673 = vld [vmem:[%s3 + $0x178] sm:$0xff]
      %v674 = vld [vmem:[%s3 + $0x180] sm:$0xff]
      %v675 = vld [vmem:[%s3 + $0x188] sm:$0xff]
      %v676 = vld [vmem:[%s3 + $0x190] sm:$0xff]
      %v677 = vld [vmem:[%s3 + $0x198] sm:$0xff]
      %v678 = vld [vmem:[%s3 + $0x1a0] sm:$0xff]
      %v679 = vld [vmem:[%s3 + $0x1a8] sm:$0xff]
      %v680 = vld [vmem:[%s3 + $0x1b0] sm:$0xff]
      %v681 = vld [vmem:[%s3 + $0x1b8] sm:$0xff]
      %v682 = vld [vmem:[%s3 + $0x1c0] sm:$0xff]
      %v683 = vld [vmem:[%s3 + $0x1c8] sm:$0xff]
      %v684 = vld [vmem:[%s3 + $0x1d0] sm:$0xff]
      %v685 = vld [vmem:[%s3 + $0x1d8] sm:$0xff]
      %v686 = vld [vmem:[%s3 + $0x1e0] sm:$0xff]
      %v687 = vld [vmem:[%s3 + $0x1e8] sm:$0xff]
      %v688 = vld [vmem:[%s3 + $0x1f0] sm:$0xff]
      %v689 = vld [vmem:[%s3 + $0x1f8] sm:$0xff]
      %v690 = vld [vmem:[%s3 + $0x200] sm:$0xff]
      %v691 = vld [vmem:[%s3 + $0x208] sm:$0xff]
      %v692 = vld [vmem:[%s3 + $0x210] sm:$0xff]
      %v693 = vld [vmem:[%s3 + $0x218] sm:$0xff]
      %v694 = vld [vmem:[%s3 + $0x220] sm:$0xff]
      %v695 = vld [vmem:[%s3 + $0x228] sm:$0xff]
      %v696 = vld [vmem:[%s3 + $0x230] sm:$0xff]
      %v697 = vld [vmem:[%s3 + $0x238] sm:$0xff]
      %v698 = vld [vmem:[%s3 + $0x240] sm:$0xff]
      %v699 = vld [vmem:[%s3 + $0x248] sm:$0xff]
      %v700 = vld [vmem:[%s3 + $0x250] sm:$0xff]
      %v701 = vld [vmem:[%s3 + $0x258] sm:$0xff]
      %v702 = vld [vmem:[%s3 + $0x260] sm:$0xff]
      %v703 = vld [vmem:[%s3 + $0x268] sm:$0xff]
      %v704 = vld [vmem:[%s3 + $0x270] sm:$0xff]
      %v705 = vld [vmem:[%s3 + $0x278] sm:$0xff]
      %v706 = vld [vmem:[%s3 + $0x280] sm:$0xff]
      %v707 = vld [vmem:[%s3 + $0x288] sm:$0xff]
      %v708 = vld [vmem:[%s3 + $0x290] sm:$0xff]
      %v709 = vld [vmem:[%s3 + $0x298] sm:$0xff]
      %v710 = vld [vmem:[%s3 + $0x2a0] sm:$0xff]
      %v711 = vld [vmem:[%s3 + $0x2a8] sm:$0xff]
      %v712 = vld [vmem:[%s3 + $0x2b0] sm:$0xff]
      %v713 = vld [vmem:[%s3 + $0x2b8] sm:$0xff]
      %v714 = vld [vmem:[%s3 + $0x2c0] sm:$0xff]
      %v715 = vld [vmem:[%s3 + $0x2c8] sm:$0xff]
      %v716 = vld [vmem:[%s3 + $0x2d0] sm:$0xff]
      %v717 = vld [vmem:[%s3 + $0x2d8] sm:$0xff]
      %v718 = vld [vmem:[%s3 + $0x2e0] sm:$0xff]
      %v719 = vld [vmem:[%s3 + $0x2e8] sm:$0xff]
      %v720 = vld [vmem:[%s3 + $0x2f0] sm:$0xff]
      %v721 = vld [vmem:[%s3 + $0x2f8] sm:$0xff]
      %v722 = vld [vmem:[%s3 + $0x300] sm:$0xff]
      %v723 = vld [vmem:[%s3 + $0x308] sm:$0xff]
      %v724 = vld [vmem:[%s3 + $0x310] sm:$0xff]
      %v725 = vld [vmem:[%s3 + $0x318] sm:$0xff]
      %v726 = vld [vmem:[%s3 + $0x320] sm:$0xff]
      %v727 = vld [vmem:[%s3 + $0x328] sm:$0xff]
      %v728 = vld [vmem:[%s3 + $0x330] sm:$0xff]
      %v729 = vld [vmem:[%s3 + $0x338] sm:$0xff]
      %v730 = vld [vmem:[%s3 + $0x340] sm:$0xff]
      %v731 = vld [vmem:[%s3 + $0x348] sm:$0xff]
      %v732 = vld [vmem:[%s3 + $0x350] sm:$0xff]
      %v733 = vld [vmem:[%s3 + $0x358] sm:$0xff]
      %v734 = vld [vmem:[%s3 + $0x360] sm:$0xff]
      %v735 = vld [vmem:[%s3 + $0x368] sm:$0xff]
      %v736 = vld [vmem:[%s3 + $0x370] sm:$0xff]
      %v737 = vld [vmem:[%s3 + $0x378] sm:$0xff]
      %v738 = vld [vmem:[%s3 + $0x380] sm:$0xff]
      %v739 = vld [vmem:[%s3 + $0x388] sm:$0xff]
      %v740 = vld [vmem:[%s3 + $0x390] sm:$0xff]
      %v741 = vld [vmem:[%s3 + $0x398] sm:$0xff]
      %v742 = vld [vmem:[%s3 + $0x3a0] sm:$0xff]
      %v743 = vld [vmem:[%s3 + $0x3a8] sm:$0xff]
      %v744 = vld [vmem:[%s3 + $0x3b0] sm:$0xff]
      %v745 = vld [vmem:[%s3 + $0x3b8] sm:$0xff]
      %v746 = vld [vmem:[%s3 + $0x3c0] sm:$0xff]
      %v747 = vld [vmem:[%s3 + $0x3c8] sm:$0xff]
      %v748 = vld [vmem:[%s3 + $0x3d0] sm:$0xff]
      %v749 = vld [vmem:[%s3 + $0x3d8] sm:$0xff]
      %v750 = vld [vmem:[%s3 + $0x3e0] sm:$0xff]
      %v751 = vld [vmem:[%s3 + $0x3e8] sm:$0xff]
      %v752 = vld [vmem:[%s3 + $0x3f0] sm:$0xff]
      %v753 = vld [vmem:[%s3 + $0x3f8] sm:$0xff]
      %v754 = vld [vmem:[%s3 + $0x400] sm:$0xff]
      %v755 = vld [vmem:[%s3 + $0x408] sm:$0xff]
      %v756 = vld [vmem:[%s3 + $0x410] sm:$0xff]
      %v757 = vld [vmem:[%s3 + $0x418] sm:$0xff]
      %v758 = vld [vmem:[%s3 + $0x420] sm:$0xff]
      %v759 = vld [vmem:[%s3 + $0x428] sm:$0xff]
      %v760 = vld [vmem:[%s3 + $0x430] sm:$0xff]
      %v761 = vld [vmem:[%s3 + $0x438] sm:$0xff]
      %v762 = vld [vmem:[%s3 + $0x440] sm:$0xff]
      %v763 = vld [vmem:[%s3 + $0x448] sm:$0xff]
      %v764 = vld [vmem:[%s3 + $0x450] sm:$0xff]
      %v765 = vld [vmem:[%s3 + $0x458] sm:$0xff]
      %v766 = vld [vmem:[%s3 + $0x460] sm:$0xff]
      %v767 = vld [vmem:[%s3 + $0x468] sm:$0xff]
      %v768 = vld [vmem:[%s3 + $0x470] sm:$0xff]
      %v769 = vld [vmem:[%s3 + $0x478] sm:$0xff]
      %770 = vmatprep.subr.mxu0 0.0
      %771 = vmatpush1.msra.mxu0 %v641
      %772 = vmatprep.subr.mxu0 0.0
      %773 = vmatpush1.msra.mxu0 %v640
      %774 = vmatprep.subr.mxu0 0.0
      %775 = vmatpush1.msra.mxu0 %v639
      %776 = vmatprep.subr.mxu0 0.0
      %777 = vmatpush1.msra.mxu0 %v638
      %778 = vmatprep.subr.mxu0 0.0
      %779 = vmatpush1.msra.mxu0 %v637
      %780 = vmatprep.subr.mxu0 0.0
      %781 = vmatpush1.msra.mxu0 %v636
      %782 = vmatprep.subr.mxu0 0.0
      %783 = vmatpush1.msra.mxu0 %v635
      %784 = vmatprep.subr.mxu0 0.0
      %785 = vmatpush1.msra.mxu0 %v634
      %786 = vmatprep.subr.mxu0 0.0
      %787 = vmatpush1.msra.mxu0 %v633
      %788 = vmatprep.subr.mxu0 0.0
      %789 = vmatpush1.msra.mxu0 %v632
      %790 = vmatprep.subr.mxu0 0.0
      %791 = vmatpush1.msra.mxu0 %v631
      %792 = vmatprep.subr.mxu0 0.0
      %793 = vmatpush1.msra.mxu0 %v630
      %794 = vmatprep.subr.mxu0 0.0
      %795 = vmatpush1.msra.mxu0 %v629
      %796 = vmatprep.subr.mxu0 0.0
      %797 = vmatpush1.msra.mxu0 %v628
      %798 = vmatprep.subr.mxu0 0.0
      %799 = vmatpush1.msra.mxu0 %v627
      %800 = vmatprep.subr.mxu0 0.0
      %801 = vmatpush1.msra.mxu0 %v626
      %802 = vmatprep.subr.mxu0 0.0
      %803 = vmatpush2.msra.mxu0 %v657
      %804 = vmatprep.subr.mxu0 0.0
      %805 = vmatpush2.msra.mxu0 %v656
      %806 = vmatprep.subr.mxu0 0.0
      %807 = vmatpush2.msra.mxu0 %v655
      %808 = vmatprep.subr.mxu0 0.0
      %809 = vmatpush2.msra.mxu0 %v654
      %810 = vmatprep.subr.mxu0 0.0
      %811 = vmatpush2.msra.mxu0 %v653
      %812 = vmatprep.subr.mxu0 0.0
      %813 = vmatpush2.msra.mxu0 %v652
      %814 = vmatprep.subr.mxu0 0.0
      %815 = vmatpush2.msra.mxu0 %v651
      %816 = vmatprep.subr.mxu0 0.0
      %817 = vmatpush2.msra.mxu0 %v650
      %818 = vmatprep.subr.mxu0 0.0
      %819 = vmatpush2.msra.mxu0 %v649
      %820 = vmatprep.subr.mxu0 0.0
      %821 = vmatpush2.msra.mxu0 %v648
      %822 = vmatprep.subr.mxu0 0.0
      %823 = vmatpush2.msra.mxu0 %v647
      %824 = vmatprep.subr.mxu0 0.0
      %825 = vmatpush2.msra.mxu0 %v646
      %826 = vmatprep.subr.mxu0 0.0
      %827 = vmatpush2.msra.mxu0 %v645
      %828 = vmatprep.subr.mxu0 0.0
      %829 = vmatpush2.msra.mxu0 %v644
      %830 = vmatprep.subr.mxu0 0.0
      %831 = vmatpush2.msra.mxu0 %v643
      %832 = vmatprep.subr.mxu0 0.0
      %833 = vmatpush2.msra.mxu0 %v642
      %834 = vmatprep.mubr.f32.mxu0 %v481
      %835 = vmatmul.mubr.f32.gmra.mxu0 %v424
      %v836 = vpop.f32.mrf.mxu0
      %v837 = vadd.f32 0.0, %v836
      %v838 = vpop.f32.mrf.mxu0
      %839 = vmatprep.mubr.f32.mxu0 %v483
      %840 = vmatmul.mubr.f32.gmra.mxu0 %v425
      %v841 = vpop.f32.mrf.mxu0
      %v842 = vadd.f32 0.0, %v841
      %v843 = vpop.f32.mrf.mxu0
      %844 = vmatprep.mubr.f32.mxu0 %v486
      %845 = vmatmul.mubr.f32.gmra.mxu0 %v427
      %v846 = vpop.f32.mrf.mxu0
      %v847 = vadd.f32 0.0, %v846
      %v848 = vpop.f32.mrf.mxu0
      %849 = vmatprep.mubr.f32.mxu0 %v488
      %850 = vmatmul.mubr.f32.gmra.mxu0 %v428
      %v851 = vpop.f32.mrf.mxu0
      %v852 = vadd.f32 0.0, %v851
      %v853 = vpop.f32.mrf.mxu0
      %854 = vmatprep.mubr.f32.mxu0 %v491
      %855 = vmatmul.mubr.f32.gmra.mxu0 %v430
      %v856 = vpop.f32.mrf.mxu0
      %v857 = vadd.f32 0.0, %v856
      %v858 = vpop.f32.mrf.mxu0
      %859 = vmatprep.mubr.f32.mxu0 %v493
      %860 = vmatmul.mubr.f32.gmra.mxu0 %v431
      %v861 = vpop.f32.mrf.mxu0
      %v862 = vadd.f32 0.0, %v861
      %v863 = vpop.f32.mrf.mxu0
      %864 = vmatprep.mubr.f32.mxu0 %v496
      %865 = vmatmul.mubr.f32.gmra.mxu0 %v433
      %v866 = vpop.f32.mrf.mxu0
      %v867 = vadd.f32 0.0, %v866
      %v868 = vpop.f32.mrf.mxu0
      %869 = vmatprep.mubr.f32.mxu0 %v498
      %870 = vmatmul.mubr.f32.gmra.mxu0 %v434
      %v871 = vpop.f32.mrf.mxu0
      %v872 = vadd.f32 0.0, %v871
      %v873 = vpop.f32.mrf.mxu0
      %874 = vmatprep.mubr.f32.mxu0 %v501
      %875 = vmatmul.mubr.f32.gmra.mxu0 %v436
      %v876 = vpop.f32.mrf.mxu0
      %v877 = vadd.f32 0.0, %v876
      %v878 = vpop.f32.mrf.mxu0
      %879 = vmatprep.mubr.f32.mxu0 %v503
      %880 = vmatmul.mubr.f32.gmra.mxu0 %v437
      %v881 = vpop.f32.mrf.mxu0
      %v882 = vadd.f32 0.0, %v881
      %v883 = vpop.f32.mrf.mxu0
      %884 = vmatprep.mubr.f32.mxu0 %v506
      %885 = vmatmul.mubr.f32.gmra.mxu0 %v439
      %v886 = vpop.f32.mrf.mxu0
      %v887 = vadd.f32 0.0, %v886
      %v888 = vpop.f32.mrf.mxu0
      %889 = vmatprep.mubr.f32.mxu0 %v508
      %890 = vmatmul.mubr.f32.gmra.mxu0 %v440
      %v891 = vpop.f32.mrf.mxu0
      %v892 = vadd.f32 0.0, %v891
      %v893 = vpop.f32.mrf.mxu0
      %894 = vmatprep.mubr.f32.mxu0 %v511
      %895 = vmatmul.mubr.f32.gmra.mxu0 %v442
      %v896 = vpop.f32.mrf.mxu0
      %v897 = vadd.f32 0.0, %v896
      %v898 = vpop.f32.mrf.mxu0
      %899 = vmatprep.mubr.f32.mxu0 %v513
      %900 = vmatmul.mubr.f32.gmra.mxu0 %v443
      %v901 = vpop.f32.mrf.mxu0
      %v902 = vadd.f32 0.0, %v901
      %v903 = vpop.f32.mrf.mxu0
      %904 = vmatprep.mubr.f32.mxu0 %v516
      %905 = vmatmul.mubr.f32.gmra.mxu0 %v445
      %v906 = vpop.f32.mrf.mxu0
      %v907 = vadd.f32 0.0, %v906
      %v908 = vpop.f32.mrf.mxu0
      %909 = vmatprep.mubr.f32.mxu0 %v518
      %910 = vmatmul.mubr.f32.gmra.mxu0 %v446
      %v911 = vpop.f32.mrf.mxu0
      %v912 = vadd.f32 0.0, %v911
      %v913 = vpop.f32.mrf.mxu0
      %914 = vdwg.mxu0
      %915 = vmatprep.subr.mxu0 0.0
      %916 = vmatpush1.msra.mxu0 %v673
      %917 = vmatprep.subr.mxu0 0.0
      %918 = vmatpush1.msra.mxu0 %v672
      %919 = vmatprep.subr.mxu0 0.0
      %920 = vmatpush1.msra.mxu0 %v671
      %921 = vmatprep.subr.mxu0 0.0
      %922 = vmatpush1.msra.mxu0 %v670
      %923 = vmatprep.subr.mxu0 0.0
      %924 = vmatpush1.msra.mxu0 %v669
      %925 = vmatprep.subr.mxu0 0.0
      %926 = vmatpush1.msra.mxu0 %v668
      %927 = vmatprep.subr.mxu0 0.0
      %928 = vmatpush1.msra.mxu0 %v667
      %929 = vmatprep.subr.mxu0 0.0
      %930 = vmatpush1.msra.mxu0 %v666
      %931 = vmatprep.subr.mxu0 0.0
      %932 = vmatpush1.msra.mxu0 %v665
      %933 = vmatprep.subr.mxu0 0.0
      %934 = vmatpush1.msra.mxu0 %v664
      %935 = vmatprep.subr.mxu0 0.0
      %936 = vmatpush1.msra.mxu0 %v663
      %937 = vmatprep.subr.mxu0 0.0
      %938 = vmatpush1.msra.mxu0 %v662
      %939 = vmatprep.subr.mxu0 0.0
      %940 = vmatpush1.msra.mxu0 %v661
      %941 = vmatprep.subr.mxu0 0.0
      %942 = vmatpush1.msra.mxu0 %v660
      %943 = vmatprep.subr.mxu0 0.0
      %944 = vmatpush1.msra.mxu0 %v659
      %945 = vmatprep.subr.mxu0 0.0
      %946 = vmatpush1.msra.mxu0 %v658
      %947 = vmatprep.subr.mxu0 0.0
      %948 = vmatpush2.msra.mxu0 %v689
      %949 = vmatprep.subr.mxu0 0.0
      %950 = vmatpush2.msra.mxu0 %v688
      %951 = vmatprep.subr.mxu0 0.0
      %952 = vmatpush2.msra.mxu0 %v687
      %953 = vmatprep.subr.mxu0 0.0
      %954 = vmatpush2.msra.mxu0 %v686
      %955 = vmatprep.subr.mxu0 0.0
      %956 = vmatpush2.msra.mxu0 %v685
      %957 = vmatprep.subr.mxu0 0.0
      %958 = vmatpush2.msra.mxu0 %v684
      %959 = vmatprep.subr.mxu0 0.0
      %960 = vmatpush2.msra.mxu0 %v683
      %961 = vmatprep.subr.mxu0 0.0
      %962 = vmatpush2.msra.mxu0 %v682
      %963 = vmatprep.subr.mxu0 0.0
      %964 = vmatpush2.msra.mxu0 %v681
      %965 = vmatprep.subr.mxu0 0.0
      %966 = vmatpush2.msra.mxu0 %v680
      %967 = vmatprep.subr.mxu0 0.0
      %968 = vmatpush2.msra.mxu0 %v679
      %969 = vmatprep.subr.mxu0 0.0
      %970 = vmatpush2.msra.mxu0 %v678
      %971 = vmatprep.subr.mxu0 0.0
      %972 = vmatpush2.msra.mxu0 %v677
      %973 = vmatprep.subr.mxu0 0.0
      %974 = vmatpush2.msra.mxu0 %v676
      %975 = vmatprep.subr.mxu0 0.0
      %976 = vmatpush2.msra.mxu0 %v675
      %977 = vmatprep.subr.mxu0 0.0
      %978 = vmatpush2.msra.mxu0 %v674
      %979 = vmatprep.mubr.f32.mxu0 %v427
      %980 = vmatmul.mubr.f32.gmra.mxu0 %v538
      %v981 = vpop.f32.mrf.mxu0
      %v982 = vadd.f32 %v837, %v981
      %v983 = vpop.f32.mrf.mxu0
      %984 = vmatprep.mubr.f32.mxu0 %v428
      %985 = vmatmul.mubr.f32.gmra.mxu0 %v540
      %v986 = vpop.f32.mrf.mxu0
      %v987 = vadd.f32 %v842, %v986
      %v988 = vpop.f32.mrf.mxu0
      %989 = vmatprep.mubr.f32.mxu0 %v430
      %990 = vmatmul.mubr.f32.gmra.mxu0 %v543
      %v991 = vpop.f32.mrf.mxu0
      %v992 = vadd.f32 %v847, %v991
      %v993 = vpop.f32.mrf.mxu0
      %994 = vmatprep.mubr.f32.mxu0 %v431
      %995 = vmatmul.mubr.f32.gmra.mxu0 %v545
      %v996 = vpop.f32.mrf.mxu0
      %v997 = vadd.f32 %v852, %v996
      %v998 = vpop.f32.mrf.mxu0
      %999 = vmatprep.mubr.f32.mxu0 %v433
      %1000 = vmatmul.mubr.f32.gmra.mxu0 %v548
      %v1001 = vpop.f32.mrf.mxu0
      %v1002 = vadd.f32 %v857, %v1001
      %v1003 = vpop.f32.mrf.mxu0
      %1004 = vmatprep.mubr.f32.mxu0 %v434
      %1005 = vmatmul.mubr.f32.gmra.mxu0 %v550
      %v1006 = vpop.f32.mrf.mxu0
      %v1007 = vadd.f32 %v862, %v1006
      %v1008 = vpop.f32.mrf.mxu0
      %1009 = vmatprep.mubr.f32.mxu0 %v436
      %1010 = vmatmul.mubr.f32.gmra.mxu0 %v553
      %v1011 = vpop.f32.mrf.mxu0
      %v1012 = vadd.f32 %v867, %v1011
      %v1013 = vpop.f32.mrf.mxu0
      %1014 = vmatprep.mubr.f32.mxu0 %v437
      %1015 = vmatmul.mubr.f32.gmra.mxu0 %v555
      %v1016 = vpop.f32.mrf.mxu0
      %v1017 = vadd.f32 %v872, %v1016
      %v1018 = vpop.f32.mrf.mxu0
      %1019 = vmatprep.mubr.f32.mxu0 %v439
      %1020 = vmatmul.mubr.f32.gmra.mxu0 %v558
      %v1021 = vpop.f32.mrf.mxu0
      %v1022 = vadd.f32 %v877, %v1021
      %v1023 = vpop.f32.mrf.mxu0
      %1024 = vmatprep.mubr.f32.mxu0 %v440
      %1025 = vmatmul.mubr.f32.gmra.mxu0 %v560
      %v1026 = vpop.f32.mrf.mxu0
      %v1027 = vadd.f32 %v882, %v1026
      %v1028 = vpop.f32.mrf.mxu0
      %1029 = vmatprep.mubr.f32.mxu0 %v442
      %1030 = vmatmul.mubr.f32.gmra.mxu0 %v563
      %v1031 = vpop.f32.mrf.mxu0
      %v1032 = vadd.f32 %v887, %v1031
      %v1033 = vpop.f32.mrf.mxu0
      %1034 = vmatprep.mubr.f32.mxu0 %v443
      %1035 = vmatmul.mubr.f32.gmra.mxu0 %v565
      %v1036 = vpop.f32.mrf.mxu0
      %v1037 = vadd.f32 %v892, %v1036
      %v1038 = vpop.f32.mrf.mxu0
      %1039 = vmatprep.mubr.f32.mxu0 %v445
      %1040 = vmatmul.mubr.f32.gmra.mxu0 %v568
      %v1041 = vpop.f32.mrf.mxu0
      %v1042 = vadd.f32 %v897, %v1041
      %v1043 = vpop.f32.mrf.mxu0
      %1044 = vmatprep.mubr.f32.mxu0 %v446
      %1045 = vmatmul.mubr.f32.gmra.mxu0 %v570
      %v1046 = vpop.f32.mrf.mxu0
      %v1047 = vadd.f32 %v902, %v1046
      %v1048 = vpop.f32.mrf.mxu0
      %1049 = vmatprep.mubr.f32.mxu0 %v448
      %1050 = vmatmul.mubr.f32.gmra.mxu0 %v573
      %v1051 = vpop.f32.mrf.mxu0
      %v1052 = vadd.f32 %v907, %v1051
      %v1053 = vpop.f32.mrf.mxu0
      %1054 = vmatprep.mubr.f32.mxu0 %v449
      %1055 = vmatmul.mubr.f32.gmra.mxu0 %v575
      %v1056 = vpop.f32.mrf.mxu0
      %v1057 = vadd.f32 %v912, %v1056
      %v1058 = vpop.f32.mrf.mxu0
      %1059 = vdwg.mxu0
      %1060 = vmatprep.subr.mxu0 0.0
      %1061 = vmatpush1.msra.mxu0 %v705
      %1062 = vmatprep.subr.mxu0 0.0
      %1063 = vmatpush1.msra.mxu0 %v704
      %1064 = vmatprep.subr.mxu0 0.0
      %1065 = vmatpush1.msra.mxu0 %v703
      %1066 = vmatprep.subr.mxu0 0.0
      %1067 = vmatpush1.msra.mxu0 %v702
      %1068 = vmatprep.subr.mxu0 0.0
      %1069 = vmatpush1.msra.mxu0 %v701
      %1070 = vmatprep.subr.mxu0 0.0
      %1071 = vmatpush1.msra.mxu0 %v700
      %1072 = vmatprep.subr.mxu0 0.0
      %1073 = vmatpush1.msra.mxu0 %v699
      %1074 = vmatprep.subr.mxu0 0.0
      %1075 = vmatpush1.msra.mxu0 %v698
      %1076 = vmatprep.subr.mxu0 0.0
      %1077 = vmatpush1.msra.mxu0 %v697
      %1078 = vmatprep.subr.mxu0 0.0
      %1079 = vmatpush1.msra.mxu0 %v696
      %1080 = vmatprep.subr.mxu0 0.0
      %1081 = vmatpush1.msra.mxu0 %v695
      %1082 = vmatprep.subr.mxu0 0.0
      %1083 = vmatpush1.msra.mxu0 %v694
      %1084 = vmatprep.subr.mxu0 0.0
      %1085 = vmatpush1.msra.mxu0 %v693
      %1086 = vmatprep.subr.mxu0 0.0
      %1087 = vmatpush1.msra.mxu0 %v692
      %1088 = vmatprep.subr.mxu0 0.0
      %1089 = vmatpush1.msra.mxu0 %v691
      %1090 = vmatprep.subr.mxu0 0.0
      %1091 = vmatpush1.msra.mxu0 %v690
      %1092 = vmatprep.subr.mxu0 0.0
      %1093 = vmatpush2.msra.mxu0 %v721
      %1094 = vmatprep.subr.mxu0 0.0
      %1095 = vmatpush2.msra.mxu0 %v720
      %1096 = vmatprep.subr.mxu0 0.0
      %1097 = vmatpush2.msra.mxu0 %v719
      %1098 = vmatprep.subr.mxu0 0.0
      %1099 = vmatpush2.msra.mxu0 %v718
      %1100 = vmatprep.subr.mxu0 0.0
      %1101 = vmatpush2.msra.mxu0 %v717
      %1102 = vmatprep.subr.mxu0 0.0
      %1103 = vmatpush2.msra.mxu0 %v716
      %1104 = vmatprep.subr.mxu0 0.0
      %1105 = vmatpush2.msra.mxu0 %v715
      %1106 = vmatprep.subr.mxu0 0.0
      %1107 = vmatpush2.msra.mxu0 %v714
      %1108 = vmatprep.subr.mxu0 0.0
      %1109 = vmatpush2.msra.mxu0 %v713
      %1110 = vmatprep.subr.mxu0 0.0
      %1111 = vmatpush2.msra.mxu0 %v712
      %1112 = vmatprep.subr.mxu0 0.0
      %1113 = vmatpush2.msra.mxu0 %v711
      %1114 = vmatprep.subr.mxu0 0.0
      %1115 = vmatpush2.msra.mxu0 %v710
      %1116 = vmatprep.subr.mxu0 0.0
      %1117 = vmatpush2.msra.mxu0 %v709
      %1118 = vmatprep.subr.mxu0 0.0
      %1119 = vmatpush2.msra.mxu0 %v708
      %1120 = vmatprep.subr.mxu0 0.0
      %1121 = vmatpush2.msra.mxu0 %v707
      %1122 = vmatprep.subr.mxu0 0.0
      %1123 = vmatpush2.msra.mxu0 %v706
      %1124 = vmatprep.mubr.f32.mxu0 %v543
      %1125 = vmatmul.mubr.f32.gmra.mxu0 %v486
      %v1126 = vpop.f32.mrf.mxu0
      %v1127 = vadd.f32 %v982, %v1126
      %v1128 = vpop.f32.mrf.mxu0
      %1129 = vmatprep.mubr.f32.mxu0 %v545
      %1130 = vmatmul.mubr.f32.gmra.mxu0 %v488
      %v1131 = vpop.f32.mrf.mxu0
      %v1132 = vadd.f32 %v987, %v1131
      %v1133 = vpop.f32.mrf.mxu0
      %1134 = vmatprep.mubr.f32.mxu0 %v548
      %1135 = vmatmul.mubr.f32.gmra.mxu0 %v491
      %v1136 = vpop.f32.mrf.mxu0
      %v1137 = vadd.f32 %v992, %v1136
      %v1138 = vpop.f32.mrf.mxu0
      %1139 = vmatprep.mubr.f32.mxu0 %v550
      %1140 = vmatmul.mubr.f32.gmra.mxu0 %v493
      %v1141 = vpop.f32.mrf.mxu0
      %v1142 = vadd.f32 %v997, %v1141
      %v1143 = vpop.f32.mrf.mxu0
      %1144 = vmatprep.mubr.f32.mxu0 %v553
      %1145 = vmatmul.mubr.f32.gmra.mxu0 %v496
      %v1146 = vpop.f32.mrf.mxu0
      %v1147 = vadd.f32 %v1002, %v1146
      %v1148 = vpop.f32.mrf.mxu0
      %1149 = vmatprep.mubr.f32.mxu0 %v555
      %1150 = vmatmul.mubr.f32.gmra.mxu0 %v498
      %v1151 = vpop.f32.mrf.mxu0
      %v1152 = vadd.f32 %v1007, %v1151
      %v1153 = vpop.f32.mrf.mxu0
      %1154 = vmatprep.mubr.f32.mxu0 %v558
      %1155 = vmatmul.mubr.f32.gmra.mxu0 %v501
      %v1156 = vpop.f32.mrf.mxu0
      %v1157 = vadd.f32 %v1012, %v1156
      %v1158 = vpop.f32.mrf.mxu0
      %1159 = vmatprep.mubr.f32.mxu0 %v560
      %1160 = vmatmul.mubr.f32.gmra.mxu0 %v503
      %v1161 = vpop.f32.mrf.mxu0
      %v1162 = vadd.f32 %v1017, %v1161
      %v1163 = vpop.f32.mrf.mxu0
      %1164 = vmatprep.mubr.f32.mxu0 %v563
      %1165 = vmatmul.mubr.f32.gmra.mxu0 %v506
      %v1166 = vpop.f32.mrf.mxu0
      %v1167 = vadd.f32 %v1022, %v1166
      %v1168 = vpop.f32.mrf.mxu0
      %1169 = vmatprep.mubr.f32.mxu0 %v565
      %1170 = vmatmul.mubr.f32.gmra.mxu0 %v508
      %v1171 = vpop.f32.mrf.mxu0
      %v1172 = vadd.f32 %v1027, %v1171
      %v1173 = vpop.f32.mrf.mxu0
      %1174 = vmatprep.mubr.f32.mxu0 %v568
      %1175 = vmatmul.mubr.f32.gmra.mxu0 %v511
      %v1176 = vpop.f32.mrf.mxu0
      %v1177 = vadd.f32 %v1032, %v1176
      %v1178 = vpop.f32.mrf.mxu0
      %1179 = vmatprep.mubr.f32.mxu0 %v570
      %1180 = vmatmul.mubr.f32.gmra.mxu0 %v513
      %v1181 = vpop.f32.mrf.mxu0
      %v1182 = vadd.f32 %v1037, %v1181
      %v1183 = vpop.f32.mrf.mxu0
      %1184 = vmatprep.mubr.f32.mxu0 %v573
      %1185 = vmatmul.mubr.f32.gmra.mxu0 %v516
      %v1186 = vpop.f32.mrf.mxu0
      %v1187 = vadd.f32 %v1042, %v1186
      %v1188 = vpop.f32.mrf.mxu0
      %1189 = vmatprep.mubr.f32.mxu0 %v575
      %1190 = vmatmul.mubr.f32.gmra.mxu0 %v518
      %v1191 = vpop.f32.mrf.mxu0
      %v1192 = vadd.f32 %v1047, %v1191
      %v1193 = vpop.f32.mrf.mxu0
      %1194 = vmatprep.mubr.f32.mxu0 %v604
      %1195 = vmatmul.mubr.f32.gmra.mxu0 %v597
      %v1196 = vpop.f32.mrf.mxu0
      %v1197 = vadd.f32 %v1052, %v1196
      %v1198 = vpop.f32.mrf.mxu0
      %1199 = vmatprep.mubr.f32.mxu0 %v606
      %1200 = vmatmul.mubr.f32.gmra.mxu0 %v599
      %v1201 = vpop.f32.mrf.mxu0
      %v1202 = vadd.f32 %v1057, %v1201
      %v1203 = vpop.f32.mrf.mxu0
      %1204 = vdwg.mxu0
      %1205 = vmatprep.subr.mxu0 0.0
      %1206 = vmatpush1.msra.mxu0 %v737
      %1207 = vmatprep.subr.mxu0 0.0
      %1208 = vmatpush1.msra.mxu0 %v736
      %1209 = vmatprep.subr.mxu0 0.0
      %1210 = vmatpush1.msra.mxu0 %v735
      %1211 = vmatprep.subr.mxu0 0.0
      %1212 = vmatpush1.msra.mxu0 %v734
      %1213 = vmatprep.subr.mxu0 0.0
      %1214 = vmatpush1.msra.mxu0 %v733
      %1215 = vmatprep.subr.mxu0 0.0
      %1216 = vmatpush1.msra.mxu0 %v732
      %1217 = vmatprep.subr.mxu0 0.0
      %1218 = vmatpush1.msra.mxu0 %v731
      %1219 = vmatprep.subr.mxu0 0.0
      %1220 = vmatpush1.msra.mxu0 %v730
      %1221 = vmatprep.subr.mxu0 0.0
      %1222 = vmatpush1.msra.mxu0 %v729
      %1223 = vmatprep.subr.mxu0 0.0
      %1224 = vmatpush1.msra.mxu0 %v728
      %1225 = vmatprep.subr.mxu0 0.0
      %1226 = vmatpush1.msra.mxu0 %v727
      %1227 = vmatprep.subr.mxu0 0.0
      %1228 = vmatpush1.msra.mxu0 %v726
      %1229 = vmatprep.subr.mxu0 0.0
      %1230 = vmatpush1.msra.mxu0 %v725
      %1231 = vmatprep.subr.mxu0 0.0
      %1232 = vmatpush1.msra.mxu0 %v724
      %1233 = vmatprep.subr.mxu0 0.0
      %1234 = vmatpush1.msra.mxu0 %v723
      %1235 = vmatprep.subr.mxu0 0.0
      %1236 = vmatpush1.msra.mxu0 %v722
      %1237 = vmatprep.subr.mxu0 0.0
      %1238 = vmatpush2.msra.mxu0 %v753
      %1239 = vmatprep.subr.mxu0 0.0
      %1240 = vmatpush2.msra.mxu0 %v752
      %1241 = vmatprep.subr.mxu0 0.0
      %1242 = vmatpush2.msra.mxu0 %v751
      %1243 = vmatprep.subr.mxu0 0.0
      %1244 = vmatpush2.msra.mxu0 %v750
      %1245 = vmatprep.subr.mxu0 0.0
      %1246 = vmatpush2.msra.mxu0 %v749
      %1247 = vmatprep.subr.mxu0 0.0
      %1248 = vmatpush2.msra.mxu0 %v748
      %1249 = vmatprep.subr.mxu0 0.0
      %1250 = vmatpush2.msra.mxu0 %v747
      %1251 = vmatprep.subr.mxu0 0.0
      %1252 = vmatpush2.msra.mxu0 %v746
      %1253 = vmatprep.subr.mxu0 0.0
      %1254 = vmatpush2.msra.mxu0 %v745
      %1255 = vmatprep.subr.mxu0 0.0
      %1256 = vmatpush2.msra.mxu0 %v744
      %1257 = vmatprep.subr.mxu0 0.0
      %1258 = vmatpush2.msra.mxu0 %v743
      %1259 = vmatprep.subr.mxu0 0.0
      %1260 = vmatpush2.msra.mxu0 %v742
      %1261 = vmatprep.subr.mxu0 0.0
      %1262 = vmatpush2.msra.mxu0 %v741
      %1263 = vmatprep.subr.mxu0 0.0
      %1264 = vmatpush2.msra.mxu0 %v740
      %1265 = vmatprep.subr.mxu0 0.0
      %1266 = vmatpush2.msra.mxu0 %v739
      %1267 = vmatprep.subr.mxu0 0.0
      %1268 = vmatpush2.msra.mxu0 %v738
      %1269 = vmatprep.mubr.f32.mxu0 %v491
      %1270 = vmatmul.mubr.f32.gmra.mxu0 %v430
      %v1271 = vpop.f32.mrf.mxu0
      %v1272 = vadd.f32 %v1127, %v1271
      %v1273 = vpop.f32.mrf.mxu0
      %1274 = vmatprep.mubr.f32.mxu0 %v493
      %1275 = vmatmul.mubr.f32.gmra.mxu0 %v431
      %v1276 = vpop.f32.mrf.mxu0
      %v1277 = vadd.f32 %v1132, %v1276
      %v1278 = vpop.f32.mrf.mxu0
      %1279 = vmatprep.mubr.f32.mxu0 %v496
      %1280 = vmatmul.mubr.f32.gmra.mxu0 %v433
      %v1281 = vpop.f32.mrf.mxu0
      %v1282 = vadd.f32 %v1137, %v1281
      %v1283 = vpop.f32.mrf.mxu0
      %1284 = vmatprep.mubr.f32.mxu0 %v498
      %1285 = vmatmul.mubr.f32.gmra.mxu0 %v434
      %v1286 = vpop.f32.mrf.mxu0
      %v1287 = vadd.f32 %v1142, %v1286
      %v1288 = vpop.f32.mrf.mxu0
      %1289 = vmatprep.mubr.f32.mxu0 %v501
      %1290 = vmatmul.mubr.f32.gmra.mxu0 %v436
      %v1291 = vpop.f32.mrf.mxu0
      %v1292 = vadd.f32 %v1147, %v1291
      %v1293 = vpop.f32.mrf.mxu0
      %1294 = vmatprep.mubr.f32.mxu0 %v503
      %1295 = vmatmul.mubr.f32.gmra.mxu0 %v437
      %v1296 = vpop.f32.mrf.mxu0
      %v1297 = vadd.f32 %v1152, %v1296
      %v1298 = vpop.f32.mrf.mxu0
      %1299 = vmatprep.mubr.f32.mxu0 %v506
      %1300 = vmatmul.mubr.f32.gmra.mxu0 %v439
      %v1301 = vpop.f32.mrf.mxu0
      %v1302 = vadd.f32 %v1157, %v1301
      %v1303 = vpop.f32.mrf.mxu0
      %1304 = vmatprep.mubr.f32.mxu0 %v508
      %1305 = vmatmul.mubr.f32.gmra.mxu0 %v440
      %v1306 = vpop.f32.mrf.mxu0
      %v1307 = vadd.f32 %v1162, %v1306
      %v1308 = vpop.f32.mrf.mxu0
      %1309 = vmatprep.mubr.f32.mxu0 %v511
      %1310 = vmatmul.mubr.f32.gmra.mxu0 %v442
      %v1311 = vpop.f32.mrf.mxu0
      %v1312 = vadd.f32 %v1167, %v1311
      %v1313 = vpop.f32.mrf.mxu0
      %1314 = vmatprep.mubr.f32.mxu0 %v513
      %1315 = vmatmul.mubr.f32.gmra.mxu0 %v443
      %v1316 = vpop.f32.mrf.mxu0
      %v1317 = vadd.f32 %v1172, %v1316
      %v1318 = vpop.f32.mrf.mxu0
      %1319 = vmatprep.mubr.f32.mxu0 %v516
      %1320 = vmatmul.mubr.f32.gmra.mxu0 %v445
      %v1321 = vpop.f32.mrf.mxu0
      %v1322 = vadd.f32 %v1177, %v1321
      %v1323 = vpop.f32.mrf.mxu0
      %1324 = vmatprep.mubr.f32.mxu0 %v518
      %1325 = vmatmul.mubr.f32.gmra.mxu0 %v446
      %v1326 = vpop.f32.mrf.mxu0
      %v1327 = vadd.f32 %v1182, %v1326
      %v1328 = vpop.f32.mrf.mxu0
      %1329 = vmatprep.mubr.f32.mxu0 %v597
      %1330 = vmatmul.mubr.f32.gmra.mxu0 %v448
      %v1331 = vpop.f32.mrf.mxu0
      %v1332 = vadd.f32 %v1187, %v1331
      %v1333 = vpop.f32.mrf.mxu0
      %1334 = vmatprep.mubr.f32.mxu0 %v599
      %1335 = vmatmul.mubr.f32.gmra.mxu0 %v449
      %v1336 = vpop.f32.mrf.mxu0
      %v1337 = vadd.f32 %v1192, %v1336
      %v1338 = vpop.f32.mrf.mxu0
      %1339 = vmatprep.mubr.f32.mxu0 %v614
      %1340 = vmatmul.mubr.f32.gmra.mxu0 %v451
      %v1341 = vpop.f32.mrf.mxu0
      %v1342 = vadd.f32 %v1197, %v1341
      %v1343 = vpop.f32.mrf.mxu0
      %1344 = vmatprep.mubr.f32.mxu0 %v616
      %1345 = vmatmul.mubr.f32.gmra.mxu0 %v452
      %v1346 = vpop.f32.mrf.mxu0
      %v1347 = vadd.f32 %v1202, %v1346
      %v1348 = vpop.f32.mrf.mxu0
      %1349 = vdwg.mxu0
      %1350 = vmatprep.subr.mxu0 0.0
      %1351 = vmatpush1.msra.mxu0 %v769
      %1352 = vmatprep.subr.mxu0 0.0
      %1353 = vmatpush1.msra.mxu0 %v768
      %1354 = vmatprep.subr.mxu0 0.0
      %1355 = vmatpush1.msra.mxu0 %v767
      %1356 = vmatprep.subr.mxu0 0.0
      %1357 = vmatpush1.msra.mxu0 %v766
      %1358 = vmatprep.subr.mxu0 0.0
      %1359 = vmatpush1.msra.mxu0 %v765
      %1360 = vmatprep.subr.mxu0 0.0
      %1361 = vmatpush1.msra.mxu0 %v764
      %1362 = vmatprep.subr.mxu0 0.0
      %1363 = vmatpush1.msra.mxu0 %v763
      %1364 = vmatprep.subr.mxu0 0.0
      %1365 = vmatpush1.msra.mxu0 %v762
      %1366 = vmatprep.subr.mxu0 0.0
      %1367 = vmatpush1.msra.mxu0 %v761
      %1368 = vmatprep.subr.mxu0 0.0
      %1369 = vmatpush1.msra.mxu0 %v760
      %1370 = vmatprep.subr.mxu0 0.0
      %1371 = vmatpush1.msra.mxu0 %v759
      %1372 = vmatprep.subr.mxu0 0.0
      %1373 = vmatpush1.msra.mxu0 %v758
      %1374 = vmatprep.subr.mxu0 0.0
      %1375 = vmatpush1.msra.mxu0 %v757
      %1376 = vmatprep.subr.mxu0 0.0
      %1377 = vmatpush1.msra.mxu0 %v756
      %1378 = vmatprep.subr.mxu0 0.0
      %1379 = vmatpush1.msra.mxu0 %v755
      %1380 = vmatprep.subr.mxu0 0.0
      %1381 = vmatpush1.msra.mxu0 %v754
      %1382 = vmatprep.subr.mxu0 0.0
      %1383 = vmatpush2.msra.mxu0 0.0
      %1384 = vmatprep.subr.mxu0 0.0
      %1385 = vmatpush2.msra.mxu0 0.0
      %1386 = vmatprep.subr.mxu0 0.0
      %1387 = vmatpush2.msra.mxu0 0.0
      %1388 = vmatprep.subr.mxu0 0.0
      %1389 = vmatpush2.msra.mxu0 0.0
      %1390 = vmatprep.subr.mxu0 0.0
      %1391 = vmatpush2.msra.mxu0 0.0
      %1392 = vmatprep.subr.mxu0 0.0
      %1393 = vmatpush2.msra.mxu0 0.0
      %1394 = vmatprep.subr.mxu0 0.0
      %1395 = vmatpush2.msra.mxu0 0.0
      %1396 = vmatprep.subr.mxu0 0.0
      %1397 = vmatpush2.msra.mxu0 0.0
      %1398 = vmatprep.subr.mxu0 0.0
      %1399 = vmatpush2.msra.mxu0 0.0
      %1400 = vmatprep.subr.mxu0 0.0
      %1401 = vmatpush2.msra.mxu0 0.0
      %1402 = vmatprep.subr.mxu0 0.0
      %1403 = vmatpush2.msra.mxu0 0.0
      %1404 = vmatprep.subr.mxu0 0.0
      %1405 = vmatpush2.msra.mxu0 0.0
      %1406 = vmatprep.subr.mxu0 0.0
      %1407 = vmatpush2.msra.mxu0 0.0
      %1408 = vmatprep.subr.mxu0 0.0
      %1409 = vmatpush2.msra.mxu0 0.0
      %1410 = vmatprep.subr.mxu0 0.0
      %1411 = vmatpush2.msra.mxu0 0.0
      %1412 = vmatprep.subr.mxu0 0.0
      %1413 = vmatpush2.msra.mxu0 0.0
      %1414 = vmatprep.mubr.f32.mxu0 0.0
      %1415 = vmatmul.mubr.f32.gmra.mxu0 %v548
      %v1416 = vpop.f32.mrf.mxu0
      %v1417 = vadd.f32 %v1272, %v1416
      %v1418 = vpop.f32.mrf.mxu0
      %1419 = vmatprep.mubr.f32.mxu0 0.0
      %1420 = vmatmul.mubr.f32.gmra.mxu0 %v550
      %v1421 = vpop.f32.mrf.mxu0
      %v1422 = vadd.f32 %v1277, %v1421
      %v1423 = vpop.f32.mrf.mxu0
      %1424 = vmatprep.mubr.f32.mxu0 0.0
      %1425 = vmatmul.mubr.f32.gmra.mxu0 %v553
      %v1426 = vpop.f32.mrf.mxu0
      %v1427 = vadd.f32 %v1282, %v1426
      %v1428 = vpop.f32.mrf.mxu0
      %1429 = vmatprep.mubr.f32.mxu0 0.0
      %1430 = vmatmul.mubr.f32.gmra.mxu0 %v555
      %v1431 = vpop.f32.mrf.mxu0
      %v1432 = vadd.f32 %v1287, %v1431
      %v1433 = vpop.f32.mrf.mxu0
      %1434 = vmatprep.mubr.f32.mxu0 0.0
      %1435 = vmatmul.mubr.f32.gmra.mxu0 %v558
      %v1436 = vpop.f32.mrf.mxu0
      %v1437 = vadd.f32 %v1292, %v1436
      %v1438 = vpop.f32.mrf.mxu0
      %1439 = vmatprep.mubr.f32.mxu0 0.0
      %1440 = vmatmul.mubr.f32.gmra.mxu0 %v560
      %v1441 = vpop.f32.mrf.mxu0
      %v1442 = vadd.f32 %v1297, %v1441
      %v1443 = vpop.f32.mrf.mxu0
      %1444 = vmatprep.mubr.f32.mxu0 0.0
      %1445 = vmatmul.mubr.f32.gmra.mxu0 %v563
      %v1446 = vpop.f32.mrf.mxu0
      %v1447 = vadd.f32 %v1302, %v1446
      %v1448 = vpop.f32.mrf.mxu0
      %1449 = vmatprep.mubr.f32.mxu0 0.0
      %1450 = vmatmul.mubr.f32.gmra.mxu0 %v565
      %v1451 = vpop.f32.mrf.mxu0
      %v1452 = vadd.f32 %v1307, %v1451
      %v1453 = vpop.f32.mrf.mxu0
      %1454 = vmatprep.mubr.f32.mxu0 0.0
      %1455 = vmatmul.mubr.f32.gmra.mxu0 %v568
      %v1456 = vpop.f32.mrf.mxu0
      %v1457 = vadd.f32 %v1312, %v1456
      %v1458 = vpop.f32.mrf.mxu0
      %1459 = vmatprep.mubr.f32.mxu0 0.0
      %1460 = vmatmul.mubr.f32.gmra.mxu0 %v570
      %v1461 = vpop.f32.mrf.mxu0
      %v1462 = vadd.f32 %v1317, %v1461
      %v1463 = vpop.f32.mrf.mxu0
      %1464 = vmatprep.mubr.f32.mxu0 0.0
      %1465 = vmatmul.mubr.f32.gmra.mxu0 %v573
      %v1466 = vpop.f32.mrf.mxu0
      %v1467 = vadd.f32 %v1322, %v1466
      %v1468 = vpop.f32.mrf.mxu0
      %1469 = vmatprep.mubr.f32.mxu0 0.0
      %1470 = vmatmul.mubr.f32.gmra.mxu0 %v575
      %v1471 = vpop.f32.mrf.mxu0
      %v1472 = vadd.f32 %v1327, %v1471
      %v1473 = vpop.f32.mrf.mxu0
      %1474 = vmatprep.mubr.f32.mxu0 0.0
      %1475 = vmatmul.mubr.f32.gmra.mxu0 %v604
      %v1476 = vpop.f32.mrf.mxu0
      %v1477 = vadd.f32 %v1332, %v1476
      %v1478 = vpop.f32.mrf.mxu0
      %1479 = vmatprep.mubr.f32.mxu0 0.0
      %1480 = vmatmul.mubr.f32.gmra.mxu0 %v606
      %v1481 = vpop.f32.mrf.mxu0
      %v1482 = vadd.f32 %v1337, %v1481
      %v1483 = vpop.f32.mrf.mxu0
      %1484 = vmatprep.mubr.f32.mxu0 0.0
      %1485 = vmatmul.mubr.f32.gmra.mxu0 %v621
      %v1486 = vpop.f32.mrf.mxu0
      %v1487 = vadd.f32 %v1342, %v1486
      %v1488 = vpop.f32.mrf.mxu0
      %1489 = vmatprep.mubr.f32.mxu0 0.0
      %1490 = vmatmul.mubr.f32.gmra.mxu0 %v623
      %v1491 = vpop.f32.mrf.mxu0
      %v1492 = vadd.f32 %v1347, %v1491
      %v1493 = vpop.f32.mrf.mxu0
      %1494 = vdwg.mxu0
      %v1495 = vld [vmem:[%s4] sm:$0x1]
      %v1497 = vlaneseq
      %v1498 = vshrl.u32 %v1497, 7
      %v1499 = vsub.s32 0, %v1498
      %v1500 = vrot.slane %v1495, %v1499
      %v1502 = vmul.f32 %v1417, %v1500
      %v1503 = vmul.f32 %v1422, %v1500
      %v1504 = vmul.f32 %v1427, %v1500
      %v1505 = vmul.f32 %v1432, %v1500
      %v1506 = vmul.f32 %v1437, %v1500
      %v1507 = vmul.f32 %v1442, %v1500
      %v1508 = vmul.f32 %v1447, %v1500
      %v1509 = vmul.f32 %v1452, %v1500
      %v1510 = vmul.f32 %v1457, %v1500
      %v1511 = vmul.f32 %v1462, %v1500
      %v1512 = vmul.f32 %v1467, %v1500
      %v1513 = vmul.f32 %v1472, %v1500
      %v1514 = vmul.f32 %v1477, %v1500
      %v1515 = vmul.f32 %v1482, %v1500
      %v1516 = vmul.f32 %v1487, %v1500
      %v1517 = vmul.f32 %v1492, %v1500
      %v1518 = vld [vmem:[%s5] sm:$0x1]
      %v1520 = vlaneseq
      %v1521 = vshrl.u32 %v1520, 7
      %v1522 = vsub.s32 0, %v1521
      %v1523 = vrot.slane %v1518, %v1522
      %v1525 = vadd.f32 %v1502, %v1523
      %v1526 = vadd.f32 %v1503, %v1523
      %v1527 = vadd.f32 %v1504, %v1523
      %v1528 = vadd.f32 %v1505, %v1523
      %v1529 = vadd.f32 %v1506, %v1523
      %v1530 = vadd.f32 %v1507, %v1523
      %v1531 = vadd.f32 %v1508, %v1523
      %v1532 = vadd.f32 %v1509, %v1523
      %v1533 = vadd.f32 %v1510, %v1523
      %v1534 = vadd.f32 %v1511, %v1523
      %v1535 = vadd.f32 %v1512, %v1523
      %v1536 = vadd.f32 %v1513, %v1523
      %v1537 = vadd.f32 %v1514, %v1523
      %v1538 = vadd.f32 %v1515, %v1523
      %v1539 = vadd.f32 %v1516, %v1523
      %v1540 = vadd.f32 %v1517, %v1523
      %v1541 = vmax.f32 %v1525, 0.0
      %v1542 = vmax.f32 %v1526, 0.0
      %v1543 = vmax.f32 %v1527, 0.0
      %v1544 = vmax.f32 %v1528, 0.0
      %v1545 = vmax.f32 %v1529, 0.0
      %v1546 = vmax.f32 %v1530, 0.0
      %v1547 = vmax.f32 %v1531, 0.0
      %v1548 = vmax.f32 %v1532, 0.0
      %v1549 = vmax.f32 %v1533, 0.0
      %v1550 = vmax.f32 %v1534, 0.0
      %v1551 = vmax.f32 %v1535, 0.0
      %v1552 = vmax.f32 %v1536, 0.0
      %v1553 = vmax.f32 %v1537, 0.0
      %v1554 = vmax.f32 %v1538, 0.0
      %v1555 = vmax.f32 %v1539, 0.0
      %v1556 = vmax.f32 %v1540, 0.0
      %1557 = vst [vmem:[%s422] sm:$0xff] %v1541
      %1558 = vst [vmem:[%s422 + $0x8] sm:$0xff] %v1542
      %1559 = vst [vmem:[%s422 + $0x10] sm:$0xff] %v1543
      %1560 = vst [vmem:[%s422 + $0x18] sm:$0xff] %v1544
      %1561 = vst [vmem:[%s422 + $0x20] sm:$0xff] %v1545
      %1562 = vst [vmem:[%s422 + $0x28] sm:$0xff] %v1546
      %1563 = vst [vmem:[%s422 + $0x30] sm:$0xff] %v1547
      %1564 = vst [vmem:[%s422 + $0x38] sm:$0xff] %v1548
      %1565 = vst [vmem:[%s422 + $0x40] sm:$0xff] %v1549
      %1566 = vst [vmem:[%s422 + $0x48] sm:$0xff] %v1550
      %1567 = vst [vmem:[%s422 + $0x50] sm:$0xff] %v1551
      %1568 = vst [vmem:[%s422 + $0x58] sm:$0xff] %v1552
      %1569 = vst [vmem:[%s422 + $0x60] sm:$0xff] %v1553
      %1570 = vst [vmem:[%s422 + $0x68] sm:$0xff] %v1554
      %1571 = vst [vmem:[%s422 + $0x70] sm:$0xff] %v1555
      %1572 = vst [vmem:[%s422 + $0x78] sm:$0xff] %v1556
      %s1573 = smul.u32 8, %s22
      %p1574 = scmp.lt.s32.totalorder %s21, 1
      %s1575 = scalar_select %p1574, %s21, 1
      %p1576 = scmp.lt.s32.totalorder %s1573, 15
      %s1577 = scalar_select %p1576, %s1573, 15
      %s1578 = smul.addr %s1577, 2
      %s1579 = smul.addr %s1575, 32
      %s1580 = sadd.s32 %s1578, %s1579
      %s1581 = smul.addr %s1580, 8
      %s1582 = scalar_lea.vmem %s6, %s1581
      // Predicated region
      $region45: #{upsample_forward.5} parent=43 // pred_check
        %p1583 = pneg %p206
      $region46: #{upsample_forward.5} parent=43 // pred_check_branch
        %1585 = sbr.rel (%p1583) target = $region48
      $region47: #{upsample_forward.5} parent=43 // pred_region
        %s1586 = smul.u32 8, %s22
      $region48: #{upsample_forward.5} parent=43 // pred_fallthru
        _
    $region44: #{upsample_forward.5} parent=5 // pred_fallthru
      _
    %p1587 = scmp.le.s32.totalorder 2, %s12
    // Predicated region
    $region49: #{upsample_forward.5} parent=5 // pred_check
      %p1588 = pneg %p1587
    $region50: #{upsample_forward.5} parent=5 // pred_check_branch
      %1590 = sbr.rel (%p1588) target = $region52
    $region51: #{upsample_forward.5} parent=5 // pred_region
      %s1591 = ssub.s32 %s12, 2
      // Predicated region
      $region53: #{upsample_forward.5} parent=51 // pred_check
        %p1592 = pneg %p212
      $region54: #{upsample_forward.5} parent=51 // pred_check_branch
        %1594 = sbr.rel (%p1592) target = $region56
      $region55: #{upsample_forward.5} parent=51 // pred_region
        %s1595 = smul.u32 8, %s24
        %p1596 = scmp.lt.s32.totalorder %s23, 1
        %s1597 = scalar_select %p1596, %s23, 1
        %p1598 = scmp.lt.s32.totalorder %s1595, 15
        %s1599 = scalar_select %p1598, %s1595, 15
        %s1600 = smul.addr %s1599, 2
        %s1601 = smul.addr %s1597, 32
        %s1602 = sadd.s32 %s1600, %s1601
        %s1603 = smul.addr %s1602, 8
        %s1604 = scalar_lea.vmem %s6, %s1603
      $region56: #{upsample_forward.5} parent=51 // pred_fallthru
        _
    $region52: #{upsample_forward.5} parent=5 // pred_fallthru
      _
  $region6: #{upsample_forward.5} parent=0 // loop_footer
    %s16 = sadd.s32 1, %s12
  $region7: #{upsample_forward.5} parent=0 // loop_footer_branch
    %11 = sbr.rel target = $region3
  $region8: #{upsample_forward.5} parent=0 // loop_exit
    _

// kernel: upsample_forward.4
$region0: #{upsample_forward.4}
  #allocation0 [shape = 'u32[]', space=smem, size = 0x4, offset = 0x4, fixed_abs, tag = 'smem constant byte address 0x4 - core index']
  #allocation1 [shape = 'u32[144,128]{1,0:T(1,128)}', space=vmem, size = 0x12000, scoped, tag = 'internal scratch']
  %s0 = inlined_call_operand.vmem [shape: f32[2,18,18,128], index: 0, kind: input, shape index: {}, may-alias: {0,1,2}]
  %s1 = inlined_call_operand.vmem [shape: f32[2,18,18,128], index: 1, kind: input, shape index: {}, may-alias: {0,1,2}]
  %s2 = inlined_call_operand.vmem [shape: f32[2,18,18,128], index: 2, kind: input, shape index: {}, may-alias: {0,1,2}]
  %s3 = inlined_call_operand.vmem [shape: f32[1152,128], index: 3, kind: input, shape index: {}]
  %s4 = inlined_call_operand.vmem [shape: f32[2,18,18,128], index: 4, kind: input, shape index: {}, may-alias: {4,5,6}]
  %s5 = inlined_call_operand.vmem [shape: f32[2,18,18,128], index: 5, kind: input, shape index: {}, may-alias: {4,5,6}]
  %s6 = inlined_call_operand.vmem [shape: f32[2,18,18,128], index: 6, kind: input, shape index: {}, may-alias: {4,5,6}]
  %s7 = inlined_call_operand.vmem [shape: f32[1152,128], index: 7, kind: input, shape index: {}]
  %s8 = inlined_call_operand.vmem [shape: f32[1,128], index: 8, kind: input, shape index: {}]
  %s9 = inlined_call_operand.vmem [shape: f32[1,128], index: 9, kind: input, shape index: {}]
  %s10 = inlined_call_operand.vmem [shape: f32[2,16,16,128], index: 10, kind: output, shape index: {}]
  %s11 = sld [smem:[#allocation0]]
  $region73: #{upsample_forward.4} parent=0
    _
  %s13 = ssub.s32 1, %s11
  %s14 = scalar_select 0, %s13, %s11
  loop: start=0, step=1, limit=6
  $region2: #{upsample_forward.4} parent=0 // loop_pre_header
    _
  $region3: #{upsample_forward.4} parent=0 // loop_header
    %s16 = sphi 0, %s20
    %p17 = scmp.ge.s32.totalorder %s16, 6
    %s23 = sphi 0, %s35
    %s24 = sphi 0, %s31
    %s25 = sphi 0, %s23
    %s26 = sphi 0, %s24
    %s27 = sphi 0, %s25
    %s28 = sphi 0, %s26
    %s40 = sphi 0, %s42
    %s43 = sphi 0, %s40
    %s44 = sphi 0, %s43
    %s60 = sphi 0, %s44
    %s72 = sphi 0, %s74
    %s75 = sphi 0, %s72
    %s76 = sphi 0, %s75
    %s92 = sphi 0, %s76
    %s106 = sphi 0, %s108
    %s109 = sphi 0, %s106
    %s110 = sphi 0, %s109
    %s126 = sphi 0, %s110
    %s130 = sphi 0, %s130
    %s132 = sphi 0, %s130
    %s133 = sphi 0, %s132
    %s147 = sphi 0, %s133
    %s155 = sphi 0, %s157
    %s158 = sphi 0, %s155
    %s159 = sphi 0, %s158
    %s175 = sphi 0, %s159
    %s187 = sphi 0, %s189
    %s190 = sphi 0, %s187
    %s191 = sphi 0, %s190
    %s207 = sphi 0, %s191
    %s221 = sphi 0, %s223
    %s224 = sphi 0, %s221
    %s225 = sphi 0, %s224
    %s241 = sphi 0, %s225
    %s245 = sphi 0, %s245
    %s247 = sphi 0, %s245
    %s248 = sphi 0, %s247
    %s262 = sphi 0, %s248
    %s266 = sphi 0, %s266
    %s268 = sphi 0, %s266
    %s269 = sphi 0, %s268
    %s283 = sphi 0, %s269
    %s287 = sphi 0, %s287
    %s289 = sphi 0, %s287
    %s290 = sphi 0, %s289
    %s304 = sphi 0, %s290
    %s312 = sphi 0, %s314
    %s315 = sphi 0, %s312
    %s316 = sphi 0, %s315
    %s332 = sphi 0, %s316
  $region4: #{upsample_forward.4} parent=0 // loop_header_branch
    %19 = sbr.rel (%p17) target = $region8
  $region5: #{upsample_forward.4} parent=0 // loop_body
    %s21 = ssub.s32 %s16, 1
    %s22 = ssub.s32 %s16, 2
    %s29 = sadd.s32 1, %s24
    %p30 = scmp.ge.s32.totalorder %s29, 2
    %s31 = scalar_select %p30, 0, %s29
    %s32 = sadd.s32 1, %s23
    %s33 = scalar_select %p30, %s32, %s23
    %p34 = scmp.ge.s32.totalorder %s33, 2
    %s35 = scalar_select %p34, 0, %s33
    %s36 = ssub.s32 %s23, %s35
    %s37 = ssub.s32 %s24, %s31
    %s38 = sor.u32 %s36, %s37
    %p39 = scmp.eq.s32.totalorder %s38, 0
    %s41 = sadd.s32 %s40, 1
    %s42 = scalar_select %p39, %s40, %s41
    %p45 = pneg %p39
    %p46 = scmp.eq.s32.totalorder %s16, 3
    %p47 = por %p45, %p46
    %p48 = scmp.ne.s32.totalorder %s40, %s43
    %p49 = scmp.eq.s32.totalorder %s16, 0
    %p50 = por %p48, %p49
    %p51 = scmp.ne.s32.totalorder %s40, %s43
    %p52 = scmp.eq.s32.totalorder %s21, 3
    %p53 = por %p51, %p52
    %p54 = scmp.ne.s32.totalorder %s43, %s44
    %p55 = scmp.eq.s32.totalorder %s21, 0
    %p56 = por %p54, %p55
    %p57 = scmp.ne.s32.totalorder %s43, %s44
    %p58 = scmp.eq.s32.totalorder %s22, 3
    %p59 = por %p57, %p58
    %p61 = scmp.ne.s32.totalorder %s44, %s60
    %p62 = scmp.eq.s32.totalorder %s22, 0
    %p63 = por %p61, %p62
    %s64 = sadd.s32 %s24, 1
    %s65 = smul.u32 %s64, 8
    %s66 = sadd.s32 %s31, 1
    %s67 = smul.u32 %s66, 8
    %s68 = ssub.s32 %s23, %s35
    %s69 = ssub.s32 %s65, %s67
    %s70 = sor.u32 %s68, %s69
    %p71 = scmp.eq.s32.totalorder %s70, 0
    %s73 = sadd.s32 %s72, 1
    %s74 = scalar_select %p71, %s72, %s73
    %p77 = pneg %p71
    %p78 = scmp.eq.s32.totalorder %s16, 3
    %p79 = por %p77, %p78
    %p80 = scmp.ne.s32.totalorder %s72, %s75
    %p81 = scmp.eq.s32.totalorder %s16, 0
    %p82 = por %p80, %p81
    %p83 = scmp.ne.s32.totalorder %s72, %s75
    %p84 = scmp.eq.s32.totalorder %s21, 3
    %p85 = por %p83, %p84
    %p86 = scmp.ne.s32.totalorder %s75, %s76
    %p87 = scmp.eq.s32.totalorder %s21, 0
    %p88 = por %p86, %p87
    %p89 = scmp.ne.s32.totalorder %s75, %s76
    %p90 = scmp.eq.s32.totalorder %s22, 3
    %p91 = por %p89, %p90
    %p93 = scmp.ne.s32.totalorder %s76, %s92
    %p94 = scmp.eq.s32.totalorder %s22, 0
    %p95 = por %p93, %p94
    %s96 = sadd.s32 %s24, 1
    %s97 = smul.u32 %s96, 8
    %s98 = sadd.s32 %s97, 1
    %s99 = sadd.s32 %s31, 1
    %s100 = smul.u32 %s99, 8
    %s101 = sadd.s32 %s100, 1
    %s102 = ssub.s32 %s23, %s35
    %s103 = ssub.s32 %s98, %s101
    %s104 = sor.u32 %s102, %s103
    %p105 = scmp.eq.s32.totalorder %s104, 0
    %s107 = sadd.s32 %s106, 1
    %s108 = scalar_select %p105, %s106, %s107
    %p111 = pneg %p105
    %p112 = scmp.eq.s32.totalorder %s16, 3
    %p113 = por %p111, %p112
    %p114 = scmp.ne.s32.totalorder %s106, %s109
    %p115 = scmp.eq.s32.totalorder %s16, 0
    %p116 = por %p114, %p115
    %p117 = scmp.ne.s32.totalorder %s106, %s109
    %p118 = scmp.eq.s32.totalorder %s21, 3
    %p119 = por %p117, %p118
    %p120 = scmp.ne.s32.totalorder %s109, %s110
    %p121 = scmp.eq.s32.totalorder %s21, 0
    %p122 = por %p120, %p121
    %p123 = scmp.ne.s32.totalorder %s109, %s110
    %p124 = scmp.eq.s32.totalorder %s22, 3
    %p125 = por %p123, %p124
    %p127 = scmp.ne.s32.totalorder %s110, %s126
    %p128 = scmp.eq.s32.totalorder %s22, 0
    %p129 = por %p127, %p128
    %s131 = sadd.s32 %s130, 1
    %p134 = scmp.eq.s32.totalorder %s16, 3
    %p135 = scmp.ne.s32.totalorder %s130, %s132
    %p136 = scmp.eq.s32.totalorder %s16, 0
    %p137 = por %p135, %p136
    %p138 = scmp.ne.s32.totalorder %s130, %s132
    %p139 = scmp.eq.s32.totalorder %s21, 3
    %p140 = por %p138, %p139
    %p141 = scmp.ne.s32.totalorder %s132, %s133
    %p142 = scmp.eq.s32.totalorder %s21, 0
    %p143 = por %p141, %p142
    %p144 = scmp.ne.s32.totalorder %s132, %s133
    %p145 = scmp.eq.s32.totalorder %s22, 3
    %p146 = por %p144, %p145
    %p148 = scmp.ne.s32.totalorder %s133, %s147
    %p149 = scmp.eq.s32.totalorder %s22, 0
    %p150 = por %p148, %p149
    %s151 = ssub.s32 %s23, %s35
    %s152 = ssub.s32 %s24, %s31
    %s153 = sor.u32 %s151, %s152
    %p154 = scmp.eq.s32.totalorder %s153, 0
    %s156 = sadd.s32 %s155, 1
    %s157 = scalar_select %p154, %s155, %s156
    %p160 = pneg %p154
    %p161 = scmp.eq.s32.totalorder %s16, 3
    %p162 = por %p160, %p161
    %p163 = scmp.ne.s32.totalorder %s155, %s158
    %p164 = scmp.eq.s32.totalorder %s16, 0
    %p165 = por %p163, %p164
    %p166 = scmp.ne.s32.totalorder %s155, %s158
    %p167 = scmp.eq.s32.totalorder %s21, 3
    %p168 = por %p166, %p167
    %p169 = scmp.ne.s32.totalorder %s158, %s159
    %p170 = scmp.eq.s32.totalorder %s21, 0
    %p171 = por %p169, %p170
    %p172 = scmp.ne.s32.totalorder %s158, %s159
    %p173 = scmp.eq.s32.totalorder %s22, 3
    %p174 = por %p172, %p173
    %p176 = scmp.ne.s32.totalorder %s159, %s175
    %p177 = scmp.eq.s32.totalorder %s22, 0
    %p178 = por %p176, %p177
    %s179 = sadd.s32 %s24, 1
    %s180 = smul.u32 %s179, 8
    %s181 = sadd.s32 %s31, 1
    %s182 = smul.u32 %s181, 8
    %s183 = ssub.s32 %s23, %s35
    %s184 = ssub.s32 %s180, %s182
    %s185 = sor.u32 %s183, %s184
    %p186 = scmp.eq.s32.totalorder %s185, 0
    %s188 = sadd.s32 %s187, 1
    %s189 = scalar_select %p186, %s187, %s188
    %p192 = pneg %p186
    %p193 = scmp.eq.s32.totalorder %s16, 3
    %p194 = por %p192, %p193
    %p195 = scmp.ne.s32.totalorder %s187, %s190
    %p196 = scmp.eq.s32.totalorder %s16, 0
    %p197 = por %p195, %p196
    %p198 = scmp.ne.s32.totalorder %s187, %s190
    %p199 = scmp.eq.s32.totalorder %s21, 3
    %p200 = por %p198, %p199
    %p201 = scmp.ne.s32.totalorder %s190, %s191
    %p202 = scmp.eq.s32.totalorder %s21, 0
    %p203 = por %p201, %p202
    %p204 = scmp.ne.s32.totalorder %s190, %s191
    %p205 = scmp.eq.s32.totalorder %s22, 3
    %p206 = por %p204, %p205
    %p208 = scmp.ne.s32.totalorder %s191, %s207
    %p209 = scmp.eq.s32.totalorder %s22, 0
    %p210 = por %p208, %p209
    %s211 = sadd.s32 %s24, 1
    %s212 = smul.u32 %s211, 8
    %s213 = sadd.s32 %s212, 1
    %s214 = sadd.s32 %s31, 1
    %s215 = smul.u32 %s214, 8
    %s216 = sadd.s32 %s215, 1
    %s217 = ssub.s32 %s23, %s35
    %s218 = ssub.s32 %s213, %s216
    %s219 = sor.u32 %s217, %s218
    %p220 = scmp.eq.s32.totalorder %s219, 0
    %s222 = sadd.s32 %s221, 1
    %s223 = scalar_select %p220, %s221, %s222
    %p226 = pneg %p220
    %p227 = scmp.eq.s32.totalorder %s16, 3
    %p228 = por %p226, %p227
    %p229 = scmp.ne.s32.totalorder %s221, %s224
    %p230 = scmp.eq.s32.totalorder %s16, 0
    %p231 = por %p229, %p230
    %p232 = scmp.ne.s32.totalorder %s221, %s224
    %p233 = scmp.eq.s32.totalorder %s21, 3
    %p234 = por %p232, %p233
    %p235 = scmp.ne.s32.totalorder %s224, %s225
    %p236 = scmp.eq.s32.totalorder %s21, 0
    %p237 = por %p235, %p236
    %p238 = scmp.ne.s32.totalorder %s224, %s225
    %p239 = scmp.eq.s32.totalorder %s22, 3
    %p240 = por %p238, %p239
    %p242 = scmp.ne.s32.totalorder %s225, %s241
    %p243 = scmp.eq.s32.totalorder %s22, 0
    %p244 = por %p242, %p243
    %s246 = sadd.s32 %s245, 1
    %p249 = scmp.eq.s32.totalorder %s16, 3
    %p250 = scmp.ne.s32.totalorder %s245, %s247
    %p251 = scmp.eq.s32.totalorder %s16, 0
    %p252 = por %p250, %p251
    %p253 = scmp.ne.s32.totalorder %s245, %s247
    %p254 = scmp.eq.s32.totalorder %s21, 3
    %p255 = por %p253, %p254
    %p256 = scmp.ne.s32.totalorder %s247, %s248
    %p257 = scmp.eq.s32.totalorder %s21, 0
    %p258 = por %p256, %p257
    %p259 = scmp.ne.s32.totalorder %s247, %s248
    %p260 = scmp.eq.s32.totalorder %s22, 3
    %p261 = por %p259, %p260
    %p263 = scmp.ne.s32.totalorder %s248, %s262
    %p264 = scmp.eq.s32.totalorder %s22, 0
    %p265 = por %p263, %p264
    %s267 = sadd.s32 %s266, 1
    %p270 = scmp.eq.s32.totalorder %s16, 3
    %p271 = scmp.ne.s32.totalorder %s266, %s268
    %p272 = scmp.eq.s32.totalorder %s16, 0
    %p273 = por %p271, %p272
    %p274 = scmp.ne.s32.totalorder %s266, %s268
    %p275 = scmp.eq.s32.totalorder %s21, 3
    %p276 = por %p274, %p275
    %p277 = scmp.ne.s32.totalorder %s268, %s269
    %p278 = scmp.eq.s32.totalorder %s21, 0
    %p279 = por %p277, %p278
    %p280 = scmp.ne.s32.totalorder %s268, %s269
    %p281 = scmp.eq.s32.totalorder %s22, 3
    %p282 = por %p280, %p281
    %p284 = scmp.ne.s32.totalorder %s269, %s283
    %p285 = scmp.eq.s32.totalorder %s22, 0
    %p286 = por %p284, %p285
    %s288 = sadd.s32 %s287, 1
    %p291 = scmp.eq.s32.totalorder %s16, 3
    %p292 = scmp.ne.s32.totalorder %s287, %s289
    %p293 = scmp.eq.s32.totalorder %s16, 0
    %p294 = por %p292, %p293
    %p295 = scmp.ne.s32.totalorder %s287, %s289
    %p296 = scmp.eq.s32.totalorder %s21, 3
    %p297 = por %p295, %p296
    %p298 = scmp.ne.s32.totalorder %s289, %s290
    %p299 = scmp.eq.s32.totalorder %s21, 0
    %p300 = por %p298, %p299
    %p301 = scmp.ne.s32.totalorder %s289, %s290
    %p302 = scmp.eq.s32.totalorder %s22, 3
    %p303 = por %p301, %p302
    %p305 = scmp.ne.s32.totalorder %s290, %s304
    %p306 = scmp.eq.s32.totalorder %s22, 0
    %p307 = por %p305, %p306
    %s308 = ssub.s32 %s23, %s35
    %s309 = ssub.s32 %s24, %s31
    %s310 = sor.u32 %s308, %s309
    %p311 = scmp.eq.s32.totalorder %s310, 0
    %s313 = sadd.s32 %s312, 1
    %s314 = scalar_select %p311, %s312, %s313
    %p317 = pneg %p311
    %p318 = scmp.eq.s32.totalorder %s16, 3
    %p319 = por %p317, %p318
    %p320 = scmp.ne.s32.totalorder %s312, %s315
    %p321 = scmp.eq.s32.totalorder %s16, 0
    %p322 = por %p320, %p321
    %p323 = scmp.ne.s32.totalorder %s312, %s315
    %p324 = scmp.eq.s32.totalorder %s21, 3
    %p325 = por %p323, %p324
    %p326 = scmp.ne.s32.totalorder %s315, %s316
    %p327 = scmp.eq.s32.totalorder %s21, 0
    %p328 = por %p326, %p327
    %p329 = scmp.ne.s32.totalorder %s315, %s316
    %p330 = scmp.eq.s32.totalorder %s22, 3
    %p331 = por %p329, %p330
    %p333 = scmp.ne.s32.totalorder %s316, %s332
    %p334 = scmp.eq.s32.totalorder %s22, 0
    %p335 = por %p333, %p334
    %p336 = scmp.le.s32.totalorder 1, %s16
    %p337 = scmp.lt.s32.totalorder %s16, 5
    %p338 = pnand %p336, %p337
    %p339 = pneg %p338
    // Predicated region
    $region9: #{upsample_forward.4} parent=5 // pred_check
      _
    $region10: #{upsample_forward.4} parent=5 // pred_check_branch
      %341 = sbr.rel (%p338) target = $region12
    $region11: #{upsample_forward.4} parent=5 // pred_region
      %s342 = ssub.s32 %s16, 1
      // Predicated region
      $region13: #{upsample_forward.4} parent=11 // pred_check
        %p343 = pneg %p143
      $region14: #{upsample_forward.4} parent=11 // pred_check_branch
        %345 = sbr.rel (%p343) target = $region16
      $region15: #{upsample_forward.4} parent=11 // pred_region
        _
      $region16: #{upsample_forward.4} parent=11 // pred_fallthru
        _
      // Predicated region
      $region17: #{upsample_forward.4} parent=11 // pred_check
        %p346 = pneg %p258
      $region18: #{upsample_forward.4} parent=11 // pred_check_branch
        %348 = sbr.rel (%p346) target = $region20
      $region19: #{upsample_forward.4} parent=11 // pred_region
        _
      $region20: #{upsample_forward.4} parent=11 // pred_fallthru
        _
      // Predicated region
      $region21: #{upsample_forward.4} parent=11 // pred_check
        %p349 = pneg %p279
      $region22: #{upsample_forward.4} parent=11 // pred_check_branch
        %351 = sbr.rel (%p349) target = $region24
      $region23: #{upsample_forward.4} parent=11 // pred_region
        _
      $region24: #{upsample_forward.4} parent=11 // pred_fallthru
        _
      // Predicated region
      $region25: #{upsample_forward.4} parent=11 // pred_check
        %p352 = pneg %p300
      $region26: #{upsample_forward.4} parent=11 // pred_check_branch
        %354 = sbr.rel (%p352) target = $region28
      $region27: #{upsample_forward.4} parent=11 // pred_region
        _
      $region28: #{upsample_forward.4} parent=11 // pred_fallthru
        _
    $region12: #{upsample_forward.4} parent=5 // pred_fallthru
      _
    %p355 = scmp.lt.s32.totalorder %s16, 4
    // Predicated region
    $region29: #{upsample_forward.4} parent=5 // pred_check
      %p356 = pneg %p355
    $region30: #{upsample_forward.4} parent=5 // pred_check_branch
      %358 = sbr.rel (%p356) target = $region32
    $region31: #{upsample_forward.4} parent=5 // pred_region
      // Predicated region
      $region33: #{upsample_forward.4} parent=31 // pred_check
        %p359 = pneg %p50
      $region34: #{upsample_forward.4} parent=31 // pred_check_branch
        %361 = sbr.rel (%p359) target = $region36
      $region35: #{upsample_forward.4} parent=31 // pred_region
        %s362 = smul.u32 8, %s24
        %s363 = ssub.s32 18, %s362
        %p364 = scmp.lt.s32.totalorder %s363, 8
        %s365 = scalar_select %p364, %s363, 8
        %s366 = smul.u32 128, %s365
        %s367 = smul.u32 %s366, 3
        %p368 = scmp.lt.s32.totalorder %s23, 1
        %s369 = scalar_select %p368, %s23, 1
        %p370 = scmp.lt.s32.totalorder %s362, 17
        %s371 = scalar_select %p370, %s362, 17
        %s372 = smul.addr %s371, 3
        %s373 = smul.addr %s369, 54
        %s374 = sadd.s32 %s372, %s373
        %s375 = smul.addr %s374, 8
        %s376 = scalar_lea.vmem %s0, %s375
        %s377 = smul.u32 8, %s24
        %s378 = ssub.s32 18, %s377
        %p379 = scmp.lt.s32.totalorder %s378, 8
        %s380 = scalar_select %p379, %s378, 8
        %s381 = smul.u32 128, %s380
        %s382 = smul.u32 %s381, 3
      $region36: #{upsample_forward.4} parent=31 // pred_fallthru
        _
      // Predicated region
      $region37: #{upsample_forward.4} parent=31 // pred_check
        %p383 = pneg %p82
      $region38: #{upsample_forward.4} parent=31 // pred_check_branch
        %385 = sbr.rel (%p383) target = $region40
      $region39: #{upsample_forward.4} parent=31 // pred_region
        %s386 = sadd.s32 %s24, 1
        %s387 = smul.u32 %s386, 8
        %p388 = scmp.lt.s32.totalorder %s23, 1
        %s389 = scalar_select %p388, %s23, 1
        %p390 = scmp.lt.s32.totalorder %s387, 17
        %s391 = scalar_select %p390, %s387, 17
        %s392 = smul.addr %s391, 3
        %s393 = smul.addr %s389, 54
        %s394 = sadd.s32 %s392, %s393
        %s395 = smul.addr %s394, 8
        %s396 = scalar_lea.vmem %s1, %s395
        %s397 = sadd.s32 %s24, 1
        %s398 = smul.u32 %s397, 8
      $region40: #{upsample_forward.4} parent=31 // pred_fallthru
        _
      // Predicated region
      $region41: #{upsample_forward.4} parent=31 // pred_check
        %p399 = pneg %p116
      $region42: #{upsample_forward.4} parent=31 // pred_check_branch
        %401 = sbr.rel (%p399) target = $region44
      $region43: #{upsample_forward.4} parent=31 // pred_region
        %s402 = sadd.s32 %s24, 1
        %s403 = smul.u32 %s402, 8
        %s404 = sadd.s32 %s403, 1
        %p405 = scmp.lt.s32.totalorder %s23, 1
        %s406 = scalar_select %p405, %s23, 1
        %p407 = scmp.lt.s32.totalorder %s404, 17
        %s408 = scalar_select %p407, %s404, 17
        %s409 = smul.addr %s408, 3
        %s410 = smul.addr %s406, 54
        %s411 = sadd.s32 %s409, %s410
        %s412 = smul.addr %s411, 8
        %s413 = scalar_lea.vmem %s2, %s412
        %s414 = sadd.s32 %s24, 1
        %s415 = smul.u32 %s414, 8
        %s416 = sadd.s32 %s415, 1
      $region44: #{upsample_forward.4} parent=31 // pred_fallthru
        _
      // Predicated region
      $region45: #{upsample_forward.4} parent=31 // pred_check
        %p417 = pneg %p165
      $region46: #{upsample_forward.4} parent=31 // pred_check_branch
        %419 = sbr.rel (%p417) target = $region48
      $region47: #{upsample_forward.4} parent=31 // pred_region
        %s420 = smul.u32 8, %s24
        %s421 = ssub.s32 18, %s420
        %p422 = scmp.lt.s32.totalorder %s421, 8
        %s423 = scalar_select %p422, %s421, 8
        %s424 = smul.u32 128, %s423
        %s425 = smul.u32 %s424, 3
        %p426 = scmp.lt.s32.totalorder %s23, 1
        %s427 = scalar_select %p426, %s23, 1
        %p428 = scmp.lt.s32.totalorder %s420, 17
        %s429 = scalar_select %p428, %s420, 17
        %s430 = smul.addr %s429, 3
        %s431 = smul.addr %s427, 54
        %s432 = sadd.s32 %s430, %s431
        %s433 = smul.addr %s432, 8
        %s434 = scalar_lea.vmem %s4, %s433
        %s435 = smul.u32 8, %s24
        %s436 = ssub.s32 18, %s435
        %p437 = scmp.lt.s32.totalorder %s436, 8
        %s438 = scalar_select %p437, %s436, 8
        %s439 = smul.u32 128, %s438
        %s440 = smul.u32 %s439, 3
      $region48: #{upsample_forward.4} parent=31 // pred_fallthru
        _
      // Predicated region
      $region49: #{upsample_forward.4} parent=31 // pred_check
        %p441 = pneg %p197
      $region50: #{upsample_forward.4} parent=31 // pred_check_branch
        %443 = sbr.rel (%p441) target = $region52
      $region51: #{upsample_forward.4} parent=31 // pred_region
        %s444 = sadd.s32 %s24, 1
        %s445 = smul.u32 %s444, 8
        %p446 = scmp.lt.s32.totalorder %s23, 1
        %s447 = scalar_select %p446, %s23, 1
        %p448 = scmp.lt.s32.totalorder %s445, 17
        %s449 = scalar_select %p448, %s445, 17
        %s450 = smul.addr %s449, 3
        %s451 = smul.addr %s447, 54
        %s452 = sadd.s32 %s450, %s451
        %s453 = smul.addr %s452, 8
        %s454 = scalar_lea.vmem %s5, %s453
        %s455 = sadd.s32 %s24, 1
        %s456 = smul.u32 %s455, 8
      $region52: #{upsample_forward.4} parent=31 // pred_fallthru
        _
      // Predicated region
      $region53: #{upsample_forward.4} parent=31 // pred_check
        %p457 = pneg %p231
      $region54: #{upsample_forward.4} parent=31 // pred_check_branch
        %459 = sbr.rel (%p457) target = $region56
      $region55: #{upsample_forward.4} parent=31 // pred_region
        %s460 = sadd.s32 %s24, 1
        %s461 = smul.u32 %s460, 8
        %s462 = sadd.s32 %s461, 1
        %p463 = scmp.lt.s32.totalorder %s23, 1
        %s464 = scalar_select %p463, %s23, 1
        %p465 = scmp.lt.s32.totalorder %s462, 17
        %s466 = scalar_select %p465, %s462, 17
        %s467 = smul.addr %s466, 3
        %s468 = smul.addr %s464, 54
        %s469 = sadd.s32 %s467, %s468
        %s470 = smul.addr %s469, 8
        %s471 = scalar_lea.vmem %s6, %s470
        %s472 = sadd.s32 %s24, 1
        %s473 = smul.u32 %s472, 8
        %s474 = sadd.s32 %s473, 1
      $region56: #{upsample_forward.4} parent=31 // pred_fallthru
        _
    $region32: #{upsample_forward.4} parent=5 // pred_fallthru
      _
    %p475 = scmp.le.s32.totalorder 1, %s16
    %p476 = scmp.lt.s32.totalorder %s16, 5
    %p477 = pnand %p475, %p476
    %p478 = pneg %p477
    // Predicated region
    $region57: #{upsample_forward.4} parent=5 // pred_check
      _
    $region58: #{upsample_forward.4} parent=5 // pred_check_branch
      %480 = sbr.rel (%p477) target = $region60
    $region59: #{upsample_forward.4} parent=5 // pred_region
      %s481 = ssub.s32 %s16, 1
      %s482 = smul.u32 8, %s26
      %s483 = ssub.s32 18, %s482
      %p484 = scmp.lt.s32.totalorder %s483, 8
      %s485 = scalar_select %p484, %s483, 8
      %s486 = smul.u32 128, %s485
      %s487 = smul.u32 %s486, 3
      %p488 = scmp.lt.s32.totalorder %s25, 1
      %s489 = scalar_select %p488, %s25, 1
      %p490 = scmp.lt.s32.totalorder %s482, 17
      %s491 = scalar_select %p490, %s482, 17
      %s492 = smul.addr %s491, 3
      %s493 = smul.addr %s489, 54
      %s494 = sadd.s32 %s492, %s493
      %s495 = smul.addr %s494, 8
      %s496 = scalar_lea.vmem %s0, %s495
      %p497 = pneg %p56
      %p498 = pneg %p53
      %s499 = sadd.s32 %s26, 1
      %s500 = smul.u32 %s499, 8
      %p501 = scmp.lt.s32.totalorder %s25, 1
      %s502 = scalar_select %p501, %s25, 1
      %p503 = scmp.lt.s32.totalorder %s500, 17
      %s504 = scalar_select %p503, %s500, 17
      %s505 = smul.addr %s504, 3
      %s506 = smul.addr %s502, 54
      %s507 = sadd.s32 %s505, %s506
      %s508 = smul.addr %s507, 8
      %s509 = scalar_lea.vmem %s1, %s508
      %p510 = pneg %p88
      %p511 = pneg %p85
      %s512 = sadd.s32 %s26, 1
      %s513 = smul.u32 %s512, 8
      %s514 = sadd.s32 %s513, 1
      %p515 = scmp.lt.s32.totalorder %s25, 1
      %s516 = scalar_select %p515, %s25, 1
      %p517 = scmp.lt.s32.totalorder %s514, 17
      %s518 = scalar_select %p517, %s514, 17
      %s519 = smul.addr %s518, 3
      %s520 = smul.addr %s516, 54
      %s521 = sadd.s32 %s519, %s520
      %s522 = smul.addr %s521, 8
      %s523 = scalar_lea.vmem %s2, %s522
      %p524 = pneg %p122
      %p525 = pneg %p119
      %p526 = pneg %p143
      %p527 = pneg %p140
      %s528 = smul.u32 8, %s26
      %s529 = ssub.s32 18, %s528
      %p530 = scmp.lt.s32.totalorder %s529, 8
      %s531 = scalar_select %p530, %s529, 8
      %s532 = smul.u32 128, %s531
      %s533 = smul.u32 %s532, 3
      %p534 = scmp.lt.s32.totalorder %s25, 1
      %s535 = scalar_select %p534, %s25, 1
      %p536 = scmp.lt.s32.totalorder %s528, 17
      %s537 = scalar_select %p536, %s528, 17
      %s538 = smul.addr %s537, 3
      %s539 = smul.addr %s535, 54
      %s540 = sadd.s32 %s538, %s539
      %s541 = smul.addr %s540, 8
      %s542 = scalar_lea.vmem %s4, %s541
      %p543 = pneg %p171
      %p544 = pneg %p168
      %s545 = sadd.s32 %s26, 1
      %s546 = smul.u32 %s545, 8
      %p547 = scmp.lt.s32.totalorder %s25, 1
      %s548 = scalar_select %p547, %s25, 1
      %p549 = scmp.lt.s32.totalorder %s546, 17
      %s550 = scalar_select %p549, %s546, 17
      %s551 = smul.addr %s550, 3
      %s552 = smul.addr %s548, 54
      %s553 = sadd.s32 %s551, %s552
      %s554 = smul.addr %s553, 8
      %s555 = scalar_lea.vmem %s5, %s554
      %p556 = pneg %p203
      %p557 = pneg %p200
      %s558 = sadd.s32 %s26, 1
      %s559 = smul.u32 %s558, 8
      %s560 = sadd.s32 %s559, 1
      %p561 = scmp.lt.s32.totalorder %s25, 1
      %s562 = scalar_select %p561, %s25, 1
      %p563 = scmp.lt.s32.totalorder %s560, 17
      %s564 = scalar_select %p563, %s560, 17
      %s565 = smul.addr %s564, 3
      %s566 = smul.addr %s562, 54
      %s567 = sadd.s32 %s565, %s566
      %s568 = smul.addr %s567, 8
      %s569 = scalar_lea.vmem %s6, %s568
      %p570 = pneg %p237
      %p571 = pneg %p234
      %p572 = pneg %p258
      %p573 = pneg %p255
      %p574 = pneg %p279
      %p575 = pneg %p276
      %p576 = pneg %p300
      %p577 = pneg %p297
      %p578 = pneg %p328
      %p579 = pneg %p325
      %s580 = smul.u32 8, %s26
      %p581 = scmp.lt.s32.totalorder %s25, 1
      %s582 = scalar_select %p581, %s25, 1
      %p583 = scmp.lt.s32.totalorder %s580, 15
      %s584 = scalar_select %p583, %s580, 15
      %s585 = smul.addr %s584, 2
      %s586 = smul.addr %s582, 32
      %s587 = sadd.s32 %s585, %s586
      %s588 = smul.addr %s587, 8
      %s589 = scalar_lea.vmem %s10, %s588
      %s590 = smul.u32 8, %s26
      %s591 = ssub.s32 18, %s590
      %p592 = scmp.lt.s32.totalorder %s591, 8
      %s593 = scalar_select %p592, %s591, 8
      %s594 = smul.u32 128, %s593
      %s595 = smul.u32 %s594, 3
      %p596 = scmp.lt.s32.totalorder %s25, 1
      %s597 = scalar_select %p596, %s25, 1
      %p598 = scmp.lt.s32.totalorder %s590, 17
      %s599 = scalar_select %p598, %s590, 17
      %s600 = smul.addr %s599, 3
      %s601 = smul.addr %s597, 54
      %s602 = sadd.s32 %s600, %s601
      %s603 = smul.addr %s602, 8
      %s604 = scalar_lea.vmem %s0, %s603
      %s605 = smul.u32 8, %s26
      %s606 = ssub.s32 18, %s605
      %p607 = scmp.lt.s32.totalorder %s606, 8
      %s608 = scalar_select %p607, %s606, 8
      %s609 = smul.u32 128, %s608
      %s610 = smul.u32 %s609, 3
      %s611 = sadd.s32 %s26, 1
      %s612 = smul.u32 %s611, 8
      %p613 = scmp.lt.s32.totalorder %s25, 1
      %s614 = scalar_select %p613, %s25, 1
      %p615 = scmp.lt.s32.totalorder %s612, 17
      %s616 = scalar_select %p615, %s612, 17
      %s617 = smul.addr %s616, 3
      %s618 = smul.addr %s614, 54
      %s619 = sadd.s32 %s617, %s618
      %s620 = smul.addr %s619, 8
      %s621 = scalar_lea.vmem %s1, %s620
      %s622 = sadd.s32 %s26, 1
      %s623 = smul.u32 %s622, 8
      %s624 = sadd.s32 %s26, 1
      %s625 = smul.u32 %s624, 8
      %s626 = sadd.s32 %s625, 1
      %p627 = scmp.lt.s32.totalorder %s25, 1
      %s628 = scalar_select %p627, %s25, 1
      %p629 = scmp.lt.s32.totalorder %s626, 17
      %s630 = scalar_select %p629, %s626, 17
      %s631 = smul.addr %s630, 3
      %s632 = smul.addr %s628, 54
      %s633 = sadd.s32 %s631, %s632
      %s634 = smul.addr %s633, 8
      %s635 = scalar_lea.vmem %s2, %s634
      %s636 = sadd.s32 %s26, 1
      %s637 = smul.u32 %s636, 8
      %s638 = sadd.s32 %s637, 1
      %s639 = smul.u32 8, %s26
      %s640 = ssub.s32 18, %s639
      %p641 = scmp.lt.s32.totalorder %s640, 8
      %s642 = scalar_select %p641, %s640, 8
      %s643 = smul.u32 128, %s642
      %s644 = smul.u32 %s643, 3
      %p645 = scmp.lt.s32.totalorder %s25, 1
      %s646 = scalar_select %p645, %s25, 1
      %p647 = scmp.lt.s32.totalorder %s639, 17
      %s648 = scalar_select %p647, %s639, 17
      %s649 = smul.addr %s648, 3
      %s650 = smul.addr %s646, 54
      %s651 = sadd.s32 %s649, %s650
      %s652 = smul.addr %s651, 8
      %s653 = scalar_lea.vmem %s4, %s652
      %s654 = smul.u32 8, %s26
      %s655 = ssub.s32 18, %s654
      %p656 = scmp.lt.s32.totalorder %s655, 8
      %s657 = scalar_select %p656, %s655, 8
      %s658 = smul.u32 128, %s657
      %s659 = smul.u32 %s658, 3
      %s660 = sadd.s32 %s26, 1
      %s661 = smul.u32 %s660, 8
      %p662 = scmp.lt.s32.totalorder %s25, 1
      %s663 = scalar_select %p662, %s25, 1
      %p664 = scmp.lt.s32.totalorder %s661, 17
      %s665 = scalar_select %p664, %s661, 17
      %s666 = smul.addr %s665, 3
      %s667 = smul.addr %s663, 54
      %s668 = sadd.s32 %s666, %s667
      %s669 = smul.addr %s668, 8
      %s670 = scalar_lea.vmem %s5, %s669
      %s671 = sadd.s32 %s26, 1
      %s672 = smul.u32 %s671, 8
      %s673 = sadd.s32 %s26, 1
      %s674 = smul.u32 %s673, 8
      %s675 = sadd.s32 %s674, 1
      %p676 = scmp.lt.s32.totalorder %s25, 1
      %s677 = scalar_select %p676, %s25, 1
      %p678 = scmp.lt.s32.totalorder %s675, 17
      %s679 = scalar_select %p678, %s675, 17
      %s680 = smul.addr %s679, 3
      %s681 = smul.addr %s677, 54
      %s682 = sadd.s32 %s680, %s681
      %s683 = smul.addr %s682, 8
      %s684 = scalar_lea.vmem %s6, %s683
      %s685 = sadd.s32 %s26, 1
      %s686 = smul.u32 %s685, 8
      %s687 = sadd.s32 %s686, 1
      %s688 = smul.u32 8, %s26
      %p689 = scmp.lt.s32.totalorder %s25, 1
      %s690 = scalar_select %p689, %s25, 1
      %p691 = scmp.lt.s32.totalorder %s688, 15
      %s692 = scalar_select %p691, %s688, 15
      %s693 = smul.addr %s692, 2
      %s694 = smul.addr %s690, 32
      %s695 = sadd.s32 %s693, %s694
      %s696 = smul.addr %s695, 8
      %s697 = scalar_lea.vmem %s10, %s696
      %s698 = smul.u32 8, %s26
      %v699 = vld [vmem:[%s604] sm:$0xff]
      %v700 = vld [vmem:[%s604 + $0x8] sm:$0xff]
      %v701 = vld [vmem:[%s604 + $0x10] sm:$0x3]
      %v702 = vld [vmem:[%s604 + $0x18] sm:$0xff]
      %v703 = vld [vmem:[%s604 + $0x20] sm:$0xff]
      %v704 = vld [vmem:[%s604 + $0x28] sm:$0x3]
      %v705 = vld [vmem:[%s604 + $0x30] sm:$0xff]
      %v706 = vld [vmem:[%s604 + $0x38] sm:$0xff]
      %v707 = vld [vmem:[%s604 + $0x40] sm:$0x3]
      %v708 = vld [vmem:[%s604 + $0x48] sm:$0xff]
      %v709 = vld [vmem:[%s604 + $0x50] sm:$0xff]
      %v710 = vld [vmem:[%s604 + $0x58] sm:$0x3]
      %v711 = vld [vmem:[%s604 + $0x60] sm:$0xff]
      %v712 = vld [vmem:[%s604 + $0x68] sm:$0xff]
      %v713 = vld [vmem:[%s604 + $0x70] sm:$0x3]
      %v714 = vld [vmem:[%s604 + $0x78] sm:$0xff]
      %v715 = vld [vmem:[%s604 + $0x80] sm:$0xff]
      %v716 = vld [vmem:[%s604 + $0x88] sm:$0x3]
      %v717 = vld [vmem:[%s604 + $0x90] sm:$0xff]
      %v718 = vld [vmem:[%s604 + $0x98] sm:$0xff]
      %v719 = vld [vmem:[%s604 + $0xa0] sm:$0x3]
      %v720 = vld [vmem:[%s604 + $0xa8] sm:$0xff]
      %v721 = vld [vmem:[%s604 + $0xb0] sm:$0xff]
      %v722 = vld [vmem:[%s604 + $0xb8] sm:$0x3]
      %v723 = vld [vmem:[%s621] sm:$0xff]
      %v724 = vld [vmem:[%s621 + $0x8] sm:$0xff]
      %v725 = vld [vmem:[%s621 + $0x10] sm:$0x3]
      %v726 = vld [vmem:[%s635] sm:$0xff]
      %v727 = vld [vmem:[%s635 + $0x8] sm:$0xff]
      %v728 = vld [vmem:[%s635 + $0x10] sm:$0x3]
      %vm753 = vcmask 1046528
      %v754 = vrot.slane %v699, 1
      %v755 = vrot.slane %v700, 1
      %v756 = vsel %vm753, %v754, %v755
      %v757 = vrot.slane %v701, 1
      %v758 = vsel %vm753, %v755, %v757
      %v759 = vrot.slane %v702, 1
      %v760 = vrot.slane %v703, 1
      %v761 = vsel %vm753, %v759, %v760
      %v762 = vrot.slane %v704, 1
      %v763 = vsel %vm753, %v760, %v762
      %v764 = vrot.slane %v705, 1
      %v765 = vrot.slane %v706, 1
      %v766 = vsel %vm753, %v764, %v765
      %v767 = vrot.slane %v707, 1
      %v768 = vsel %vm753, %v765, %v767
      %v769 = vrot.slane %v708, 1
      %v770 = vrot.slane %v709, 1
      %v771 = vsel %vm753, %v769, %v770
      %v772 = vrot.slane %v710, 1
      %v773 = vsel %vm753, %v770, %v772
      %v774 = vrot.slane %v711, 1
      %v775 = vrot.slane %v712, 1
      %v776 = vsel %vm753, %v774, %v775
      %v777 = vrot.slane %v713, 1
      %v778 = vsel %vm753, %v775, %v777
      %v779 = vrot.slane %v714, 1
      %v780 = vrot.slane %v715, 1
      %v781 = vsel %vm753, %v779, %v780
      %v782 = vrot.slane %v716, 1
      %v783 = vsel %vm753, %v780, %v782
      %v784 = vrot.slane %v717, 1
      %v785 = vrot.slane %v718, 1
      %v786 = vsel %vm753, %v784, %v785
      %v787 = vrot.slane %v719, 1
      %v788 = vsel %vm753, %v785, %v787
      %v789 = vrot.slane %v720, 1
      %v790 = vrot.slane %v721, 1
      %v791 = vsel %vm753, %v789, %v790
      %v792 = vrot.slane %v722, 1
      %v793 = vsel %vm753, %v790, %v792
      %vm810 = vcmask 1045504
      %v811 = vrot.slane %v699, 2
      %v812 = vrot.slane %v700, 2
      %v813 = vsel %vm810, %v811, %v812
      %v814 = vrot.slane %v701, 2
      %v815 = vsel %vm810, %v812, %v814
      %v816 = vrot.slane %v702, 2
      %v817 = vrot.slane %v703, 2
      %v818 = vsel %vm810, %v816, %v817
      %v819 = vrot.slane %v704, 2
      %v820 = vsel %vm810, %v817, %v819
      %v821 = vrot.slane %v705, 2
      %v822 = vrot.slane %v706, 2
      %v823 = vsel %vm810, %v821, %v822
      %v824 = vrot.slane %v707, 2
      %v825 = vsel %vm810, %v822, %v824
      %v826 = vrot.slane %v708, 2
      %v827 = vrot.slane %v709, 2
      %v828 = vsel %vm810, %v826, %v827
      %v829 = vrot.slane %v710, 2
      %v830 = vsel %vm810, %v827, %v829
      %v831 = vrot.slane %v711, 2
      %v832 = vrot.slane %v712, 2
      %v833 = vsel %vm810, %v831, %v832
      %v834 = vrot.slane %v713, 2
      %v835 = vsel %vm810, %v832, %v834
      %v836 = vrot.slane %v714, 2
      %v837 = vrot.slane %v715, 2
      %v838 = vsel %vm810, %v836, %v837
      %v839 = vrot.slane %v716, 2
      %v840 = vsel %vm810, %v837, %v839
      %v841 = vrot.slane %v717, 2
      %v842 = vrot.slane %v718, 2
      %v843 = vsel %vm810, %v841, %v842
      %v844 = vrot.slane %v719, 2
      %v845 = vsel %vm810, %v842, %v844
      %v846 = vrot.slane %v720, 2
      %v847 = vrot.slane %v721, 2
      %v848 = vsel %vm810, %v846, %v847
      %v849 = vrot.slane %v722, 2
      %v850 = vsel %vm810, %v847, %v849
      %v870 = vrot.slane %v723, 1
      %v871 = vrot.slane %v724, 1
      %v872 = vsel %vm753, %v870, %v871
      %v873 = vrot.slane %v725, 1
      %v874 = vsel %vm753, %v871, %v873
      %v877 = vrot.slane %v723, 2
      %v878 = vrot.slane %v724, 2
      %v879 = vsel %vm810, %v877, %v878
      %v880 = vrot.slane %v725, 2
      %v881 = vsel %vm810, %v878, %v880
      %v887 = vrot.slane %v726, 1
      %v888 = vrot.slane %v727, 1
      %v889 = vsel %vm753, %v887, %v888
      %v890 = vrot.slane %v728, 1
      %v891 = vsel %vm753, %v888, %v890
      %v894 = vrot.slane %v726, 2
      %v895 = vrot.slane %v727, 2
      %v896 = vsel %vm810, %v894, %v895
      %v897 = vrot.slane %v728, 2
      %v898 = vsel %vm810, %v895, %v897
      %v901 = vld [vmem:[%s3] sm:$0xff]
      %v902 = vld [vmem:[%s3 + $0x8] sm:$0xff]
      %v903 = vld [vmem:[%s3 + $0x10] sm:$0xff]
      %v904 = vld [vmem:[%s3 + $0x18] sm:$0xff]
      %v905 = vld [vmem:[%s3 + $0x20] sm:$0xff]
      %v906 = vld [vmem:[%s3 + $0x28] sm:$0xff]
      %v907 = vld [vmem:[%s3 + $0x30] sm:$0xff]
      %v908 = vld [vmem:[%s3 + $0x38] sm:$0xff]
      %v909 = vld [vmem:[%s3 + $0x40] sm:$0xff]
      %v910 = vld [vmem:[%s3 + $0x48] sm:$0xff]
      %v911 = vld [vmem:[%s3 + $0x50] sm:$0xff]
      %v912 = vld [vmem:[%s3 + $0x58] sm:$0xff]
      %v913 = vld [vmem:[%s3 + $0x60] sm:$0xff]
      %v914 = vld [vmem:[%s3 + $0x68] sm:$0xff]
      %v915 = vld [vmem:[%s3 + $0x70] sm:$0xff]
      %v916 = vld [vmem:[%s3 + $0x78] sm:$0xff]
      %v917 = vld [vmem:[%s3 + $0x80] sm:$0xff]
      %v918 = vld [vmem:[%s3 + $0x88] sm:$0xff]
      %v919 = vld [vmem:[%s3 + $0x90] sm:$0xff]
      %v920 = vld [vmem:[%s3 + $0x98] sm:$0xff]
      %v921 = vld [vmem:[%s3 + $0xa0] sm:$0xff]
      %v922 = vld [vmem:[%s3 + $0xa8] sm:$0xff]
      %v923 = vld [vmem:[%s3 + $0xb0] sm:$0xff]
      %v924 = vld [vmem:[%s3 + $0xb8] sm:$0xff]
      %v925 = vld [vmem:[%s3 + $0xc0] sm:$0xff]
      %v926 = vld [vmem:[%s3 + $0xc8] sm:$0xff]
      %v927 = vld [vmem:[%s3 + $0xd0] sm:$0xff]
      %v928 = vld [vmem:[%s3 + $0xd8] sm:$0xff]
      %v929 = vld [vmem:[%s3 + $0xe0] sm:$0xff]
      %v930 = vld [vmem:[%s3 + $0xe8] sm:$0xff]
      %v931 = vld [vmem:[%s3 + $0xf0] sm:$0xff]
      %v932 = vld [vmem:[%s3 + $0xf8] sm:$0xff]
      %v933 = vld [vmem:[%s3 + $0x100] sm:$0xff]
      %v934 = vld [vmem:[%s3 + $0x108] sm:$0xff]
      %v935 = vld [vmem:[%s3 + $0x110] sm:$0xff]
      %v936 = vld [vmem:[%s3 + $0x118] sm:$0xff]
      %v937 = vld [vmem:[%s3 + $0x120] sm:$0xff]
      %v938 = vld [vmem:[%s3 + $0x128] sm:$0xff]
      %v939 = vld [vmem:[%s3 + $0x130] sm:$0xff]
      %v940 = vld [vmem:[%s3 + $0x138] sm:$0xff]
      %v941 = vld [vmem:[%s3 + $0x140] sm:$0xff]
      %v942 = vld [vmem:[%s3 + $0x148] sm:$0xff]
      %v943 = vld [vmem:[%s3 + $0x150] sm:$0xff]
      %v944 = vld [vmem:[%s3 + $0x158] sm:$0xff]
      %v945 = vld [vmem:[%s3 + $0x160] sm:$0xff]
      %v946 = vld [vmem:[%s3 + $0x168] sm:$0xff]
      %v947 = vld [vmem:[%s3 + $0x170] sm:$0xff]
      %v948 = vld [vmem:[%s3 + $0x178] sm:$0xff]
      %v949 = vld [vmem:[%s3 + $0x180] sm:$0xff]
      %v950 = vld [vmem:[%s3 + $0x188] sm:$0xff]
      %v951 = vld [vmem:[%s3 + $0x190] sm:$0xff]
      %v952 = vld [vmem:[%s3 + $0x198] sm:$0xff]
      %v953 = vld [vmem:[%s3 + $0x1a0] sm:$0xff]
      %v954 = vld [vmem:[%s3 + $0x1a8] sm:$0xff]
      %v955 = vld [vmem:[%s3 + $0x1b0] sm:$0xff]
      %v956 = vld [vmem:[%s3 + $0x1b8] sm:$0xff]
      %v957 = vld [vmem:[%s3 + $0x1c0] sm:$0xff]
      %v958 = vld [vmem:[%s3 + $0x1c8] sm:$0xff]
      %v959 = vld [vmem:[%s3 + $0x1d0] sm:$0xff]
      %v960 = vld [vmem:[%s3 + $0x1d8] sm:$0xff]
      %v961 = vld [vmem:[%s3 + $0x1e0] sm:$0xff]
      %v962 = vld [vmem:[%s3 + $0x1e8] sm:$0xff]
      %v963 = vld [vmem:[%s3 + $0x1f0] sm:$0xff]
      %v964 = vld [vmem:[%s3 + $0x1f8] sm:$0xff]
      %v965 = vld [vmem:[%s3 + $0x200] sm:$0xff]
      %v966 = vld [vmem:[%s3 + $0x208] sm:$0xff]
      %v967 = vld [vmem:[%s3 + $0x210] sm:$0xff]
      %v968 = vld [vmem:[%s3 + $0x218] sm:$0xff]
      %v969 = vld [vmem:[%s3 + $0x220] sm:$0xff]
      %v970 = vld [vmem:[%s3 + $0x228] sm:$0xff]
      %v971 = vld [vmem:[%s3 + $0x230] sm:$0xff]
      %v972 = vld [vmem:[%s3 + $0x238] sm:$0xff]
      %v973 = vld [vmem:[%s3 + $0x240] sm:$0xff]
      %v974 = vld [vmem:[%s3 + $0x248] sm:$0xff]
      %v975 = vld [vmem:[%s3 + $0x250] sm:$0xff]
      %v976 = vld [vmem:[%s3 + $0x258] sm:$0xff]
      %v977 = vld [vmem:[%s3 + $0x260] sm:$0xff]
      %v978 = vld [vmem:[%s3 + $0x268] sm:$0xff]
      %v979 = vld [vmem:[%s3 + $0x270] sm:$0xff]
      %v980 = vld [vmem:[%s3 + $0x278] sm:$0xff]
      %v981 = vld [vmem:[%s3 + $0x280] sm:$0xff]
      %v982 = vld [vmem:[%s3 + $0x288] sm:$0xff]
      %v983 = vld [vmem:[%s3 + $0x290] sm:$0xff]
      %v984 = vld [vmem:[%s3 + $0x298] sm:$0xff]
      %v985 = vld [vmem:[%s3 + $0x2a0] sm:$0xff]
      %v986 = vld [vmem:[%s3 + $0x2a8] sm:$0xff]
      %v987 = vld [vmem:[%s3 + $0x2b0] sm:$0xff]
      %v988 = vld [vmem:[%s3 + $0x2b8] sm:$0xff]
      %v989 = vld [vmem:[%s3 + $0x2c0] sm:$0xff]
      %v990 = vld [vmem:[%s3 + $0x2c8] sm:$0xff]
      %v991 = vld [vmem:[%s3 + $0x2d0] sm:$0xff]
      %v992 = vld [vmem:[%s3 + $0x2d8] sm:$0xff]
      %v993 = vld [vmem:[%s3 + $0x2e0] sm:$0xff]
      %v994 = vld [vmem:[%s3 + $0x2e8] sm:$0xff]
      %v995 = vld [vmem:[%s3 + $0x2f0] sm:$0xff]
      %v996 = vld [vmem:[%s3 + $0x2f8] sm:$0xff]
      %v997 = vld [vmem:[%s3 + $0x300] sm:$0xff]
      %v998 = vld [vmem:[%s3 + $0x308] sm:$0xff]
      %v999 = vld [vmem:[%s3 + $0x310] sm:$0xff]
      %v1000 = vld [vmem:[%s3 + $0x318] sm:$0xff]
      %v1001 = vld [vmem:[%s3 + $0x320] sm:$0xff]
      %v1002 = vld [vmem:[%s3 + $0x328] sm:$0xff]
      %v1003 = vld [vmem:[%s3 + $0x330] sm:$0xff]
      %v1004 = vld [vmem:[%s3 + $0x338] sm:$0xff]
      %v1005 = vld [vmem:[%s3 + $0x340] sm:$0xff]
      %v1006 = vld [vmem:[%s3 + $0x348] sm:$0xff]
      %v1007 = vld [vmem:[%s3 + $0x350] sm:$0xff]
      %v1008 = vld [vmem:[%s3 + $0x358] sm:$0xff]
      %v1009 = vld [vmem:[%s3 + $0x360] sm:$0xff]
      %v1010 = vld [vmem:[%s3 + $0x368] sm:$0xff]
      %v1011 = vld [vmem:[%s3 + $0x370] sm:$0xff]
      %v1012 = vld [vmem:[%s3 + $0x378] sm:$0xff]
      %v1013 = vld [vmem:[%s3 + $0x380] sm:$0xff]
      %v1014 = vld [vmem:[%s3 + $0x388] sm:$0xff]
      %v1015 = vld [vmem:[%s3 + $0x390] sm:$0xff]
      %v1016 = vld [vmem:[%s3 + $0x398] sm:$0xff]
      %v1017 = vld [vmem:[%s3 + $0x3a0] sm:$0xff]
      %v1018 = vld [vmem:[%s3 + $0x3a8] sm:$0xff]
      %v1019 = vld [vmem:[%s3 + $0x3b0] sm:$0xff]
      %v1020 = vld [vmem:[%s3 + $0x3b8] sm:$0xff]
      %v1021 = vld [vmem:[%s3 + $0x3c0] sm:$0xff]
      %v1022 = vld [vmem:[%s3 + $0x3c8] sm:$0xff]
      %v1023 = vld [vmem:[%s3 + $0x3d0] sm:$0xff]
      %v1024 = vld [vmem:[%s3 + $0x3d8] sm:$0xff]
      %v1025 = vld [vmem:[%s3 + $0x3e0] sm:$0xff]
      %v1026 = vld [vmem:[%s3 + $0x3e8] sm:$0xff]
      %v1027 = vld [vmem:[%s3 + $0x3f0] sm:$0xff]
      %v1028 = vld [vmem:[%s3 + $0x3f8] sm:$0xff]
      %v1029 = vld [vmem:[%s3 + $0x400] sm:$0xff]
      %v1030 = vld [vmem:[%s3 + $0x408] sm:$0xff]
      %v1031 = vld [vmem:[%s3 + $0x410] sm:$0xff]
      %v1032 = vld [vmem:[%s3 + $0x418] sm:$0xff]
      %v1033 = vld [vmem:[%s3 + $0x420] sm:$0xff]
      %v1034 = vld [vmem:[%s3 + $0x428] sm:$0xff]
      %v1035 = vld [vmem:[%s3 + $0x430] sm:$0xff]
      %v1036 = vld [vmem:[%s3 + $0x438] sm:$0xff]
      %v1037 = vld [vmem:[%s3 + $0x440] sm:$0xff]
      %v1038 = vld [vmem:[%s3 + $0x448] sm:$0xff]
      %v1039 = vld [vmem:[%s3 + $0x450] sm:$0xff]
      %v1040 = vld [vmem:[%s3 + $0x458] sm:$0xff]
      %v1041 = vld [vmem:[%s3 + $0x460] sm:$0xff]
      %v1042 = vld [vmem:[%s3 + $0x468] sm:$0xff]
      %v1043 = vld [vmem:[%s3 + $0x470] sm:$0xff]
      %v1044 = vld [vmem:[%s3 + $0x478] sm:$0xff]
      %v1045 = vld [vmem:[%s653] sm:$0xff]
      %v1046 = vld [vmem:[%s653 + $0x8] sm:$0xff]
      %v1047 = vld [vmem:[%s653 + $0x10] sm:$0x3]
      %v1048 = vld [vmem:[%s653 + $0x18] sm:$0xff]
      %v1049 = vld [vmem:[%s653 + $0x20] sm:$0xff]
      %v1050 = vld [vmem:[%s653 + $0x28] sm:$0x3]
      %v1051 = vld [vmem:[%s653 + $0x30] sm:$0xff]
      %v1052 = vld [vmem:[%s653 + $0x38] sm:$0xff]
      %v1053 = vld [vmem:[%s653 + $0x40] sm:$0x3]
      %v1054 = vld [vmem:[%s653 + $0x48] sm:$0xff]
      %v1055 = vld [vmem:[%s653 + $0x50] sm:$0xff]
      %v1056 = vld [vmem:[%s653 + $0x58] sm:$0x3]
      %v1057 = vld [vmem:[%s653 + $0x60] sm:$0xff]
      %v1058 = vld [vmem:[%s653 + $0x68] sm:$0xff]
      %v1059 = vld [vmem:[%s653 + $0x70] sm:$0x3]
      %v1060 = vld [vmem:[%s653 + $0x78] sm:$0xff]
      %v1061 = vld [vmem:[%s653 + $0x80] sm:$0xff]
      %v1062 = vld [vmem:[%s653 + $0x88] sm:$0x3]
      %v1063 = vld [vmem:[%s653 + $0x90] sm:$0xff]
      %v1064 = vld [vmem:[%s653 + $0x98] sm:$0xff]
      %v1065 = vld [vmem:[%s653 + $0xa0] sm:$0x3]
      %v1066 = vld [vmem:[%s653 + $0xa8] sm:$0xff]
      %v1067 = vld [vmem:[%s653 + $0xb0] sm:$0xff]
      %v1068 = vld [vmem:[%s653 + $0xb8] sm:$0x3]
      %v1069 = vld [vmem:[%s670] sm:$0xff]
      %v1070 = vld [vmem:[%s670 + $0x8] sm:$0xff]
      %v1071 = vld [vmem:[%s670 + $0x10] sm:$0x3]
      %v1072 = vld [vmem:[%s684] sm:$0xff]
      %v1073 = vld [vmem:[%s684 + $0x8] sm:$0xff]
      %v1074 = vld [vmem:[%s684 + $0x10] sm:$0x3]
      %v1099 = vrot.slane %v1045, 1
      %v1100 = vrot.slane %v1046, 1
      %v1101 = vsel %vm753, %v1099, %v1100
      %v1102 = vrot.slane %v1047, 1
      %v1103 = vsel %vm753, %v1100, %v1102
      %v1104 = vrot.slane %v1048, 1
      %v1105 = vrot.slane %v1049, 1
      %v1106 = vsel %vm753, %v1104, %v1105
      %v1107 = vrot.slane %v1050, 1
      %v1108 = vsel %vm753, %v1105, %v1107
      %v1109 = vrot.slane %v1051, 1
      %v1110 = vrot.slane %v1052, 1
      %v1111 = vsel %vm753, %v1109, %v1110
      %v1112 = vrot.slane %v1053, 1
      %v1113 = vsel %vm753, %v1110, %v1112
      %v1114 = vrot.slane %v1054, 1
      %v1115 = vrot.slane %v1055, 1
      %v1116 = vsel %vm753, %v1114, %v1115
      %v1117 = vrot.slane %v1056, 1
      %v1118 = vsel %vm753, %v1115, %v1117
      %v1119 = vrot.slane %v1057, 1
      %v1120 = vrot.slane %v1058, 1
      %v1121 = vsel %vm753, %v1119, %v1120
      %v1122 = vrot.slane %v1059, 1
      %v1123 = vsel %vm753, %v1120, %v1122
      %v1124 = vrot.slane %v1060, 1
      %v1125 = vrot.slane %v1061, 1
      %v1126 = vsel %vm753, %v1124, %v1125
      %v1127 = vrot.slane %v1062, 1
      %v1128 = vsel %vm753, %v1125, %v1127
      %v1129 = vrot.slane %v1063, 1
      %v1130 = vrot.slane %v1064, 1
      %v1131 = vsel %vm753, %v1129, %v1130
      %v1132 = vrot.slane %v1065, 1
      %v1133 = vsel %vm753, %v1130, %v1132
      %v1134 = vrot.slane %v1066, 1
      %v1135 = vrot.slane %v1067, 1
      %v1136 = vsel %vm753, %v1134, %v1135
      %v1137 = vrot.slane %v1068, 1
      %v1138 = vsel %vm753, %v1135, %v1137
      %v1155 = vrot.slane %v1045, 2
      %v1156 = vrot.slane %v1046, 2
      %v1157 = vsel %vm810, %v1155, %v1156
      %v1158 = vrot.slane %v1047, 2
      %v1159 = vsel %vm810, %v1156, %v1158
      %v1160 = vrot.slane %v1048, 2
      %v1161 = vrot.slane %v1049, 2
      %v1162 = vsel %vm810, %v1160, %v1161
      %v1163 = vrot.slane %v1050, 2
      %v1164 = vsel %vm810, %v1161, %v1163
      %v1165 = vrot.slane %v1051, 2
      %v1166 = vrot.slane %v1052, 2
      %v1167 = vsel %vm810, %v1165, %v1166
      %v1168 = vrot.slane %v1053, 2
      %v1169 = vsel %vm810, %v1166, %v1168
      %v1170 = vrot.slane %v1054, 2
      %v1171 = vrot.slane %v1055, 2
      %v1172 = vsel %vm810, %v1170, %v1171
      %v1173 = vrot.slane %v1056, 2
      %v1174 = vsel %vm810, %v1171, %v1173
      %v1175 = vrot.slane %v1057, 2
      %v1176 = vrot.slane %v1058, 2
      %v1177 = vsel %vm810, %v1175, %v1176
      %v1178 = vrot.slane %v1059, 2
      %v1179 = vsel %vm810, %v1176, %v1178
      %v1180 = vrot.slane %v1060, 2
      %v1181 = vrot.slane %v1061, 2
      %v1182 = vsel %vm810, %v1180, %v1181
      %v1183 = vrot.slane %v1062, 2
      %v1184 = vsel %vm810, %v1181, %v1183
      %v1185 = vrot.slane %v1063, 2
      %v1186 = vrot.slane %v1064, 2
      %v1187 = vsel %vm810, %v1185, %v1186
      %v1188 = vrot.slane %v1065, 2
      %v1189 = vsel %vm810, %v1186, %v1188
      %v1190 = vrot.slane %v1066, 2
      %v1191 = vrot.slane %v1067, 2
      %v1192 = vsel %vm810, %v1190, %v1191
      %v1193 = vrot.slane %v1068, 2
      %v1194 = vsel %vm810, %v1191, %v1193
      %v1214 = vrot.slane %v1069, 1
      %v1215 = vrot.slane %v1070, 1
      %v1216 = vsel %vm753, %v1214, %v1215
      %v1217 = vrot.slane %v1071, 1
      %v1218 = vsel %vm753, %v1215, %v1217
      %v1221 = vrot.slane %v1069, 2
      %v1222 = vrot.slane %v1070, 2
      %v1223 = vsel %vm810, %v1221, %v1222
      %v1224 = vrot.slane %v1071, 2
      %v1225 = vsel %vm810, %v1222, %v1224
      %v1231 = vrot.slane %v1072, 1
      %v1232 = vrot.slane %v1073, 1
      %v1233 = vsel %vm753, %v1231, %v1232
      %v1234 = vrot.slane %v1074, 1
      %v1235 = vsel %vm753, %v1232, %v1234
      %v1238 = vrot.slane %v1072, 2
      %v1239 = vrot.slane %v1073, 2
      %v1240 = vsel %vm810, %v1238, %v1239
      %v1241 = vrot.slane %v1074, 2
      %v1242 = vsel %vm810, %v1239, %v1241
      %v1245 = vld [vmem:[%s7] sm:$0xff]
      %v1246 = vld [vmem:[%s7 + $0x8] sm:$0xff]
      %v1247 = vld [vmem:[%s7 + $0x10] sm:$0xff]
      %v1248 = vld [vmem:[%s7 + $0x18] sm:$0xff]
      %v1249 = vld [vmem:[%s7 + $0x20] sm:$0xff]
      %v1250 = vld [vmem:[%s7 + $0x28] sm:$0xff]
      %v1251 = vld [vmem:[%s7 + $0x30] sm:$0xff]
      %v1252 = vld [vmem:[%s7 + $0x38] sm:$0xff]
      %v1253 = vld [vmem:[%s7 + $0x40] sm:$0xff]
      %v1254 = vld [vmem:[%s7 + $0x48] sm:$0xff]
      %v1255 = vld [vmem:[%s7 + $0x50] sm:$0xff]
      %v1256 = vld [vmem:[%s7 + $0x58] sm:$0xff]
      %v1257 = vld [vmem:[%s7 + $0x60] sm:$0xff]
      %v1258 = vld [vmem:[%s7 + $0x68] sm:$0xff]
      %v1259 = vld [vmem:[%s7 + $0x70] sm:$0xff]
      %v1260 = vld [vmem:[%s7 + $0x78] sm:$0xff]
      %v1261 = vld [vmem:[%s7 + $0x80] sm:$0xff]
      %v1262 = vld [vmem:[%s7 + $0x88] sm:$0xff]
      %v1263 = vld [vmem:[%s7 + $0x90] sm:$0xff]
      %v1264 = vld [vmem:[%s7 + $0x98] sm:$0xff]
      %v1265 = vld [vmem:[%s7 + $0xa0] sm:$0xff]
      %v1266 = vld [vmem:[%s7 + $0xa8] sm:$0xff]
      %v1267 = vld [vmem:[%s7 + $0xb0] sm:$0xff]
      %v1268 = vld [vmem:[%s7 + $0xb8] sm:$0xff]
      %v1269 = vld [vmem:[%s7 + $0xc0] sm:$0xff]
      %v1270 = vld [vmem:[%s7 + $0xc8] sm:$0xff]
      %v1271 = vld [vmem:[%s7 + $0xd0] sm:$0xff]
      %v1272 = vld [vmem:[%s7 + $0xd8] sm:$0xff]
      %v1273 = vld [vmem:[%s7 + $0xe0] sm:$0xff]
      %v1274 = vld [vmem:[%s7 + $0xe8] sm:$0xff]
      %v1275 = vld [vmem:[%s7 + $0xf0] sm:$0xff]
      %v1276 = vld [vmem:[%s7 + $0xf8] sm:$0xff]
      %v1277 = vld [vmem:[%s7 + $0x100] sm:$0xff]
      %v1278 = vld [vmem:[%s7 + $0x108] sm:$0xff]
      %v1279 = vld [vmem:[%s7 + $0x110] sm:$0xff]
      %v1280 = vld [vmem:[%s7 + $0x118] sm:$0xff]
      %v1281 = vld [vmem:[%s7 + $0x120] sm:$0xff]
      %v1282 = vld [vmem:[%s7 + $0x128] sm:$0xff]
      %v1283 = vld [vmem:[%s7 + $0x130] sm:$0xff]
      %v1284 = vld [vmem:[%s7 + $0x138] sm:$0xff]
      %v1285 = vld [vmem:[%s7 + $0x140] sm:$0xff]
      %v1286 = vld [vmem:[%s7 + $0x148] sm:$0xff]
      %v1287 = vld [vmem:[%s7 + $0x150] sm:$0xff]
      %v1288 = vld [vmem:[%s7 + $0x158] sm:$0xff]
      %v1289 = vld [vmem:[%s7 + $0x160] sm:$0xff]
      %v1290 = vld [vmem:[%s7 + $0x168] sm:$0xff]
      %v1291 = vld [vmem:[%s7 + $0x170] sm:$0xff]
      %v1292 = vld [vmem:[%s7 + $0x178] sm:$0xff]
      %v1293 = vld [vmem:[%s7 + $0x180] sm:$0xff]
      %v1294 = vld [vmem:[%s7 + $0x188] sm:$0xff]
      %v1295 = vld [vmem:[%s7 + $0x190] sm:$0xff]
      %v1296 = vld [vmem:[%s7 + $0x198] sm:$0xff]
      %v1297 = vld [vmem:[%s7 + $0x1a0] sm:$0xff]
      %v1298 = vld [vmem:[%s7 + $0x1a8] sm:$0xff]
      %v1299 = vld [vmem:[%s7 + $0x1b0] sm:$0xff]
      %v1300 = vld [vmem:[%s7 + $0x1b8] sm:$0xff]
      %v1301 = vld [vmem:[%s7 + $0x1c0] sm:$0xff]
      %v1302 = vld [vmem:[%s7 + $0x1c8] sm:$0xff]
      %v1303 = vld [vmem:[%s7 + $0x1d0] sm:$0xff]
      %v1304 = vld [vmem:[%s7 + $0x1d8] sm:$0xff]
      %v1305 = vld [vmem:[%s7 + $0x1e0] sm:$0xff]
      %v1306 = vld [vmem:[%s7 + $0x1e8] sm:$0xff]
      %v1307 = vld [vmem:[%s7 + $0x1f0] sm:$0xff]
      %v1308 = vld [vmem:[%s7 + $0x1f8] sm:$0xff]
      %v1309 = vld [vmem:[%s7 + $0x200] sm:$0xff]
      %v1310 = vld [vmem:[%s7 + $0x208] sm:$0xff]
      %v1311 = vld [vmem:[%s7 + $0x210] sm:$0xff]
      %v1312 = vld [vmem:[%s7 + $0x218] sm:$0xff]
      %v1313 = vld [vmem:[%s7 + $0x220] sm:$0xff]
      %v1314 = vld [vmem:[%s7 + $0x228] sm:$0xff]
      %v1315 = vld [vmem:[%s7 + $0x230] sm:$0xff]
      %v1316 = vld [vmem:[%s7 + $0x238] sm:$0xff]
      %v1317 = vld [vmem:[%s7 + $0x240] sm:$0xff]
      %v1318 = vld [vmem:[%s7 + $0x248] sm:$0xff]
      %v1319 = vld [vmem:[%s7 + $0x250] sm:$0xff]
      %v1320 = vld [vmem:[%s7 + $0x258] sm:$0xff]
      %v1321 = vld [vmem:[%s7 + $0x260] sm:$0xff]
      %v1322 = vld [vmem:[%s7 + $0x268] sm:$0xff]
      %v1323 = vld [vmem:[%s7 + $0x270] sm:$0xff]
      %v1324 = vld [vmem:[%s7 + $0x278] sm:$0xff]
      %v1325 = vld [vmem:[%s7 + $0x280] sm:$0xff]
      %v1326 = vld [vmem:[%s7 + $0x288] sm:$0xff]
      %v1327 = vld [vmem:[%s7 + $0x290] sm:$0xff]
      %v1328 = vld [vmem:[%s7 + $0x298] sm:$0xff]
      %v1329 = vld [vmem:[%s7 + $0x2a0] sm:$0xff]
      %v1330 = vld [vmem:[%s7 + $0x2a8] sm:$0xff]
      %v1331 = vld [vmem:[%s7 + $0x2b0] sm:$0xff]
      %v1332 = vld [vmem:[%s7 + $0x2b8] sm:$0xff]
      %v1333 = vld [vmem:[%s7 + $0x2c0] sm:$0xff]
      %v1334 = vld [vmem:[%s7 + $0x2c8] sm:$0xff]
      %v1335 = vld [vmem:[%s7 + $0x2d0] sm:$0xff]
      %v1336 = vld [vmem:[%s7 + $0x2d8] sm:$0xff]
      %v1337 = vld [vmem:[%s7 + $0x2e0] sm:$0xff]
      %v1338 = vld [vmem:[%s7 + $0x2e8] sm:$0xff]
      %v1339 = vld [vmem:[%s7 + $0x2f0] sm:$0xff]
      %v1340 = vld [vmem:[%s7 + $0x2f8] sm:$0xff]
      %v1341 = vld [vmem:[%s7 + $0x300] sm:$0xff]
      %v1342 = vld [vmem:[%s7 + $0x308] sm:$0xff]
      %v1343 = vld [vmem:[%s7 + $0x310] sm:$0xff]
      %v1344 = vld [vmem:[%s7 + $0x318] sm:$0xff]
      %v1345 = vld [vmem:[%s7 + $0x320] sm:$0xff]
      %v1346 = vld [vmem:[%s7 + $0x328] sm:$0xff]
      %v1347 = vld [vmem:[%s7 + $0x330] sm:$0xff]
      %v1348 = vld [vmem:[%s7 + $0x338] sm:$0xff]
      %v1349 = vld [vmem:[%s7 + $0x340] sm:$0xff]
      %v1350 = vld [vmem:[%s7 + $0x348] sm:$0xff]
      %v1351 = vld [vmem:[%s7 + $0x350] sm:$0xff]
      %v1352 = vld [vmem:[%s7 + $0x358] sm:$0xff]
      %v1353 = vld [vmem:[%s7 + $0x360] sm:$0xff]
      %v1354 = vld [vmem:[%s7 + $0x368] sm:$0xff]
      %v1355 = vld [vmem:[%s7 + $0x370] sm:$0xff]
      %v1356 = vld [vmem:[%s7 + $0x378] sm:$0xff]
      %v1357 = vld [vmem:[%s7 + $0x380] sm:$0xff]
      %v1358 = vld [vmem:[%s7 + $0x388] sm:$0xff]
      %v1359 = vld [vmem:[%s7 + $0x390] sm:$0xff]
      %v1360 = vld [vmem:[%s7 + $0x398] sm:$0xff]
      %v1361 = vld [vmem:[%s7 + $0x3a0] sm:$0xff]
      %v1362 = vld [vmem:[%s7 + $0x3a8] sm:$0xff]
      %v1363 = vld [vmem:[%s7 + $0x3b0] sm:$0xff]
      %v1364 = vld [vmem:[%s7 + $0x3b8] sm:$0xff]
      %v1365 = vld [vmem:[%s7 + $0x3c0] sm:$0xff]
      %v1366 = vld [vmem:[%s7 + $0x3c8] sm:$0xff]
      %v1367 = vld [vmem:[%s7 + $0x3d0] sm:$0xff]
      %v1368 = vld [vmem:[%s7 + $0x3d8] sm:$0xff]
      %v1369 = vld [vmem:[%s7 + $0x3e0] sm:$0xff]
      %v1370 = vld [vmem:[%s7 + $0x3e8] sm:$0xff]
      %v1371 = vld [vmem:[%s7 + $0x3f0] sm:$0xff]
      %v1372 = vld [vmem:[%s7 + $0x3f8] sm:$0xff]
      %v1373 = vld [vmem:[%s7 + $0x400] sm:$0xff]
      %v1374 = vld [vmem:[%s7 + $0x408] sm:$0xff]
      %v1375 = vld [vmem:[%s7 + $0x410] sm:$0xff]
      %v1376 = vld [vmem:[%s7 + $0x418] sm:$0xff]
      %v1377 = vld [vmem:[%s7 + $0x420] sm:$0xff]
      %v1378 = vld [vmem:[%s7 + $0x428] sm:$0xff]
      %v1379 = vld [vmem:[%s7 + $0x430] sm:$0xff]
      %v1380 = vld [vmem:[%s7 + $0x438] sm:$0xff]
      %v1381 = vld [vmem:[%s7 + $0x440] sm:$0xff]
      %v1382 = vld [vmem:[%s7 + $0x448] sm:$0xff]
      %v1383 = vld [vmem:[%s7 + $0x450] sm:$0xff]
      %v1384 = vld [vmem:[%s7 + $0x458] sm:$0xff]
      %v1385 = vld [vmem:[%s7 + $0x460] sm:$0xff]
      %v1386 = vld [vmem:[%s7 + $0x468] sm:$0xff]
      %v1387 = vld [vmem:[%s7 + $0x470] sm:$0xff]
      %v1388 = vld [vmem:[%s7 + $0x478] sm:$0xff]
      %1389 = vmatprep.subr.mxu0 0.0
      %1390 = vmatpush1.msra.mxu0 %v1260
      %1391 = vmatprep.subr.mxu0 0.0
      %1392 = vmatpush1.msra.mxu0 %v1259
      %1393 = vmatprep.subr.mxu0 0.0
      %1394 = vmatpush1.msra.mxu0 %v1258
      %1395 = vmatprep.subr.mxu0 0.0
      %1396 = vmatpush1.msra.mxu0 %v1257
      %1397 = vmatprep.subr.mxu0 0.0
      %1398 = vmatpush1.msra.mxu0 %v1256
      %1399 = vmatprep.subr.mxu0 0.0
      %1400 = vmatpush1.msra.mxu0 %v1255
      %1401 = vmatprep.subr.mxu0 0.0
      %1402 = vmatpush1.msra.mxu0 %v1254
      %1403 = vmatprep.subr.mxu0 0.0
      %1404 = vmatpush1.msra.mxu0 %v1253
      %1405 = vmatprep.subr.mxu0 0.0
      %1406 = vmatpush1.msra.mxu0 %v1252
      %1407 = vmatprep.subr.mxu0 0.0
      %1408 = vmatpush1.msra.mxu0 %v1251
      %1409 = vmatprep.subr.mxu0 0.0
      %1410 = vmatpush1.msra.mxu0 %v1250
      %1411 = vmatprep.subr.mxu0 0.0
      %1412 = vmatpush1.msra.mxu0 %v1249
      %1413 = vmatprep.subr.mxu0 0.0
      %1414 = vmatpush1.msra.mxu0 %v1248
      %1415 = vmatprep.subr.mxu0 0.0
      %1416 = vmatpush1.msra.mxu0 %v1247
      %1417 = vmatprep.subr.mxu0 0.0
      %1418 = vmatpush1.msra.mxu0 %v1246
      %1419 = vmatprep.subr.mxu0 0.0
      %1420 = vmatpush1.msra.mxu0 %v1245
      %1421 = vmatprep.subr.mxu0 0.0
      %1422 = vmatpush2.msra.mxu0 %v1276
      %1423 = vmatprep.subr.mxu0 0.0
      %1424 = vmatpush2.msra.mxu0 %v1275
      %1425 = vmatprep.subr.mxu0 0.0
      %1426 = vmatpush2.msra.mxu0 %v1274
      %1427 = vmatprep.subr.mxu0 0.0
      %1428 = vmatpush2.msra.mxu0 %v1273
      %1429 = vmatprep.subr.mxu0 0.0
      %1430 = vmatpush2.msra.mxu0 %v1272
      %1431 = vmatprep.subr.mxu0 0.0
      %1432 = vmatpush2.msra.mxu0 %v1271
      %1433 = vmatprep.subr.mxu0 0.0
      %1434 = vmatpush2.msra.mxu0 %v1270
      %1435 = vmatprep.subr.mxu0 0.0
      %1436 = vmatpush2.msra.mxu0 %v1269
      %1437 = vmatprep.subr.mxu0 0.0
      %1438 = vmatpush2.msra.mxu0 %v1268
      %1439 = vmatprep.subr.mxu0 0.0
      %1440 = vmatpush2.msra.mxu0 %v1267
      %1441 = vmatprep.subr.mxu0 0.0
      %1442 = vmatpush2.msra.mxu0 %v1266
      %1443 = vmatprep.subr.mxu0 0.0
      %1444 = vmatpush2.msra.mxu0 %v1265
      %1445 = vmatprep.subr.mxu0 0.0
      %1446 = vmatpush2.msra.mxu0 %v1264
      %1447 = vmatprep.subr.mxu0 0.0
      %1448 = vmatpush2.msra.mxu0 %v1263
      %1449 = vmatprep.subr.mxu0 0.0
      %1450 = vmatpush2.msra.mxu0 %v1262
      %1451 = vmatprep.subr.mxu0 0.0
      %1452 = vmatpush2.msra.mxu0 %v1261
      %1453 = vmatprep.mubr.f32.mxu0 %v1101
      %1454 = vmatmul.mubr.f32.gmra.mxu0 %v1045
      %v1455 = vpop.f32.mrf.mxu0
      %v1456 = vadd.f32 0.0, %v1455
      %v1457 = vpop.f32.mrf.mxu0
      %1458 = vmatprep.mubr.f32.mxu0 %v1103
      %1459 = vmatmul.mubr.f32.gmra.mxu0 %v1046
      %v1460 = vpop.f32.mrf.mxu0
      %v1461 = vadd.f32 0.0, %v1460
      %v1462 = vpop.f32.mrf.mxu0
      %1463 = vmatprep.mubr.f32.mxu0 %v1106
      %1464 = vmatmul.mubr.f32.gmra.mxu0 %v1048
      %v1465 = vpop.f32.mrf.mxu0
      %v1466 = vadd.f32 0.0, %v1465
      %v1467 = vpop.f32.mrf.mxu0
      %1468 = vmatprep.mubr.f32.mxu0 %v1108
      %1469 = vmatmul.mubr.f32.gmra.mxu0 %v1049
      %v1470 = vpop.f32.mrf.mxu0
      %v1471 = vadd.f32 0.0, %v1470
      %v1472 = vpop.f32.mrf.mxu0
      %1473 = vmatprep.mubr.f32.mxu0 %v1111
      %1474 = vmatmul.mubr.f32.gmra.mxu0 %v1051
      %v1475 = vpop.f32.mrf.mxu0
      %v1476 = vadd.f32 0.0, %v1475
      %v1477 = vpop.f32.mrf.mxu0
      %1478 = vmatprep.mubr.f32.mxu0 %v1113
      %1479 = vmatmul.mubr.f32.gmra.mxu0 %v1052
      %v1480 = vpop.f32.mrf.mxu0
      %v1481 = vadd.f32 0.0, %v1480
      %v1482 = vpop.f32.mrf.mxu0
      %1483 = vmatprep.mubr.f32.mxu0 %v1116
      %1484 = vmatmul.mubr.f32.gmra.mxu0 %v1054
      %v1485 = vpop.f32.mrf.mxu0
      %v1486 = vadd.f32 0.0, %v1485
      %v1487 = vpop.f32.mrf.mxu0
      %1488 = vmatprep.mubr.f32.mxu0 %v1118
      %1489 = vmatmul.mubr.f32.gmra.mxu0 %v1055
      %v1490 = vpop.f32.mrf.mxu0
      %v1491 = vadd.f32 0.0, %v1490
      %v1492 = vpop.f32.mrf.mxu0
      %1493 = vmatprep.mubr.f32.mxu0 %v1121
      %1494 = vmatmul.mubr.f32.gmra.mxu0 %v1057
      %v1495 = vpop.f32.mrf.mxu0
      %v1496 = vadd.f32 0.0, %v1495
      %v1497 = vpop.f32.mrf.mxu0
      %1498 = vmatprep.mubr.f32.mxu0 %v1123
      %1499 = vmatmul.mubr.f32.gmra.mxu0 %v1058
      %v1500 = vpop.f32.mrf.mxu0
      %v1501 = vadd.f32 0.0, %v1500
      %v1502 = vpop.f32.mrf.mxu0
      %1503 = vmatprep.mubr.f32.mxu0 %v1126
      %1504 = vmatmul.mubr.f32.gmra.mxu0 %v1060
      %v1505 = vpop.f32.mrf.mxu0
      %v1506 = vadd.f32 0.0, %v1505
      %v1507 = vpop.f32.mrf.mxu0
      %1508 = vmatprep.mubr.f32.mxu0 %v1128
      %1509 = vmatmul.mubr.f32.gmra.mxu0 %v1061
      %v1510 = vpop.f32.mrf.mxu0
      %v1511 = vadd.f32 0.0, %v1510
      %v1512 = vpop.f32.mrf.mxu0
      %1513 = vmatprep.mubr.f32.mxu0 %v1131
      %1514 = vmatmul.mubr.f32.gmra.mxu0 %v1063
      %v1515 = vpop.f32.mrf.mxu0
      %v1516 = vadd.f32 0.0, %v1515
      %v1517 = vpop.f32.mrf.mxu0
      %1518 = vmatprep.mubr.f32.mxu0 %v1133
      %1519 = vmatmul.mubr.f32.gmra.mxu0 %v1064
      %v1520 = vpop.f32.mrf.mxu0
      %v1521 = vadd.f32 0.0, %v1520
      %v1522 = vpop.f32.mrf.mxu0
      %1523 = vmatprep.mubr.f32.mxu0 %v1136
      %1524 = vmatmul.mubr.f32.gmra.mxu0 %v1066
      %v1525 = vpop.f32.mrf.mxu0
      %v1526 = vadd.f32 0.0, %v1525
      %v1527 = vpop.f32.mrf.mxu0
      %1528 = vmatprep.mubr.f32.mxu0 %v1138
      %1529 = vmatmul.mubr.f32.gmra.mxu0 %v1067
      %v1530 = vpop.f32.mrf.mxu0
      %v1531 = vadd.f32 0.0, %v1530
      %v1532 = vpop.f32.mrf.mxu0
      %1533 = vdwg.mxu0
      %1534 = vmatprep.subr.mxu0 0.0
      %1535 = vmatpush1.msra.mxu0 %v1292
      %1536 = vmatprep.subr.mxu0 0.0
      %1537 = vmatpush1.msra.mxu0 %v1291
      %1538 = vmatprep.subr.mxu0 0.0
      %1539 = vmatpush1.msra.mxu0 %v1290
      %1540 = vmatprep.subr.mxu0 0.0
      %1541 = vmatpush1.msra.mxu0 %v1289
      %1542 = vmatprep.subr.mxu0 0.0
      %1543 = vmatpush1.msra.mxu0 %v1288
      %1544 = vmatprep.subr.mxu0 0.0
      %1545 = vmatpush1.msra.mxu0 %v1287
      %1546 = vmatprep.subr.mxu0 0.0
      %1547 = vmatpush1.msra.mxu0 %v1286
      %1548 = vmatprep.subr.mxu0 0.0
      %1549 = vmatpush1.msra.mxu0 %v1285
      %1550 = vmatprep.subr.mxu0 0.0
      %1551 = vmatpush1.msra.mxu0 %v1284
      %1552 = vmatprep.subr.mxu0 0.0
      %1553 = vmatpush1.msra.mxu0 %v1283
      %1554 = vmatprep.subr.mxu0 0.0
      %1555 = vmatpush1.msra.mxu0 %v1282
      %1556 = vmatprep.subr.mxu0 0.0
      %1557 = vmatpush1.msra.mxu0 %v1281
      %1558 = vmatprep.subr.mxu0 0.0
      %1559 = vmatpush1.msra.mxu0 %v1280
      %1560 = vmatprep.subr.mxu0 0.0
      %1561 = vmatpush1.msra.mxu0 %v1279
      %1562 = vmatprep.subr.mxu0 0.0
      %1563 = vmatpush1.msra.mxu0 %v1278
      %1564 = vmatprep.subr.mxu0 0.0
      %1565 = vmatpush1.msra.mxu0 %v1277
      %1566 = vmatprep.subr.mxu0 0.0
      %1567 = vmatpush2.msra.mxu0 %v1308
      %1568 = vmatprep.subr.mxu0 0.0
      %1569 = vmatpush2.msra.mxu0 %v1307
      %1570 = vmatprep.subr.mxu0 0.0
      %1571 = vmatpush2.msra.mxu0 %v1306
      %1572 = vmatprep.subr.mxu0 0.0
      %1573 = vmatpush2.msra.mxu0 %v1305
      %1574 = vmatprep.subr.mxu0 0.0
      %1575 = vmatpush2.msra.mxu0 %v1304
      %1576 = vmatprep.subr.mxu0 0.0
      %1577 = vmatpush2.msra.mxu0 %v1303
      %1578 = vmatprep.subr.mxu0 0.0
      %1579 = vmatpush2.msra.mxu0 %v1302
      %1580 = vmatprep.subr.mxu0 0.0
      %1581 = vmatpush2.msra.mxu0 %v1301
      %1582 = vmatprep.subr.mxu0 0.0
      %1583 = vmatpush2.msra.mxu0 %v1300
      %1584 = vmatprep.subr.mxu0 0.0
      %1585 = vmatpush2.msra.mxu0 %v1299
      %1586 = vmatprep.subr.mxu0 0.0
      %1587 = vmatpush2.msra.mxu0 %v1298
      %1588 = vmatprep.subr.mxu0 0.0
      %1589 = vmatpush2.msra.mxu0 %v1297
      %1590 = vmatprep.subr.mxu0 0.0
      %1591 = vmatpush2.msra.mxu0 %v1296
      %1592 = vmatprep.subr.mxu0 0.0
      %1593 = vmatpush2.msra.mxu0 %v1295
      %1594 = vmatprep.subr.mxu0 0.0
      %1595 = vmatpush2.msra.mxu0 %v1294
      %1596 = vmatprep.subr.mxu0 0.0
      %1597 = vmatpush2.msra.mxu0 %v1293
      %1598 = vmatprep.mubr.f32.mxu0 %v1048
      %1599 = vmatmul.mubr.f32.gmra.mxu0 %v1157
      %v1600 = vpop.f32.mrf.mxu0
      %v1601 = vadd.f32 %v1456, %v1600
      %v1602 = vpop.f32.mrf.mxu0
      %1603 = vmatprep.mubr.f32.mxu0 %v1049
      %1604 = vmatmul.mubr.f32.gmra.mxu0 %v1159
      %v1605 = vpop.f32.mrf.mxu0
      %v1606 = vadd.f32 %v1461, %v1605
      %v1607 = vpop.f32.mrf.mxu0
      %1608 = vmatprep.mubr.f32.mxu0 %v1051
      %1609 = vmatmul.mubr.f32.gmra.mxu0 %v1162
      %v1610 = vpop.f32.mrf.mxu0
      %v1611 = vadd.f32 %v1466, %v1610
      %v1612 = vpop.f32.mrf.mxu0
      %1613 = vmatprep.mubr.f32.mxu0 %v1052
      %1614 = vmatmul.mubr.f32.gmra.mxu0 %v1164
      %v1615 = vpop.f32.mrf.mxu0
      %v1616 = vadd.f32 %v1471, %v1615
      %v1617 = vpop.f32.mrf.mxu0
      %1618 = vmatprep.mubr.f32.mxu0 %v1054
      %1619 = vmatmul.mubr.f32.gmra.mxu0 %v1167
      %v1620 = vpop.f32.mrf.mxu0
      %v1621 = vadd.f32 %v1476, %v1620
      %v1622 = vpop.f32.mrf.mxu0
      %1623 = vmatprep.mubr.f32.mxu0 %v1055
      %1624 = vmatmul.mubr.f32.gmra.mxu0 %v1169
      %v1625 = vpop.f32.mrf.mxu0
      %v1626 = vadd.f32 %v1481, %v1625
      %v1627 = vpop.f32.mrf.mxu0
      %1628 = vmatprep.mubr.f32.mxu0 %v1057
      %1629 = vmatmul.mubr.f32.gmra.mxu0 %v1172
      %v1630 = vpop.f32.mrf.mxu0
      %v1631 = vadd.f32 %v1486, %v1630
      %v1632 = vpop.f32.mrf.mxu0
      %1633 = vmatprep.mubr.f32.mxu0 %v1058
      %1634 = vmatmul.mubr.f32.gmra.mxu0 %v1174
      %v1635 = vpop.f32.mrf.mxu0
      %v1636 = vadd.f32 %v1491, %v1635
      %v1637 = vpop.f32.mrf.mxu0
      %1638 = vmatprep.mubr.f32.mxu0 %v1060
      %1639 = vmatmul.mubr.f32.gmra.mxu0 %v1177
      %v1640 = vpop.f32.mrf.mxu0
      %v1641 = vadd.f32 %v1496, %v1640
      %v1642 = vpop.f32.mrf.mxu0
      %1643 = vmatprep.mubr.f32.mxu0 %v1061
      %1644 = vmatmul.mubr.f32.gmra.mxu0 %v1179
      %v1645 = vpop.f32.mrf.mxu0
      %v1646 = vadd.f32 %v1501, %v1645
      %v1647 = vpop.f32.mrf.mxu0
      %1648 = vmatprep.mubr.f32.mxu0 %v1063
      %1649 = vmatmul.mubr.f32.gmra.mxu0 %v1182
      %v1650 = vpop.f32.mrf.mxu0
      %v1651 = vadd.f32 %v1506, %v1650
      %v1652 = vpop.f32.mrf.mxu0
      %1653 = vmatprep.mubr.f32.mxu0 %v1064
      %1654 = vmatmul.mubr.f32.gmra.mxu0 %v1184
      %v1655 = vpop.f32.mrf.mxu0
      %v1656 = vadd.f32 %v1511, %v1655
      %v1657 = vpop.f32.mrf.mxu0
      %1658 = vmatprep.mubr.f32.mxu0 %v1066
      %1659 = vmatmul.mubr.f32.gmra.mxu0 %v1187
      %v1660 = vpop.f32.mrf.mxu0
      %v1661 = vadd.f32 %v1516, %v1660
      %v1662 = vpop.f32.mrf.mxu0
      %1663 = vmatprep.mubr.f32.mxu0 %v1067
      %1664 = vmatmul.mubr.f32.gmra.mxu0 %v1189
      %v1665 = vpop.f32.mrf.mxu0
      %v1666 = vadd.f32 %v1521, %v1665
      %v1667 = vpop.f32.mrf.mxu0
      %1668 = vmatprep.mubr.f32.mxu0 %v1069
      %1669 = vmatmul.mubr.f32.gmra.mxu0 %v1192
      %v1670 = vpop.f32.mrf.mxu0
      %v1671 = vadd.f32 %v1526, %v1670
      %v1672 = vpop.f32.mrf.mxu0
      %1673 = vmatprep.mubr.f32.mxu0 %v1070
      %1674 = vmatmul.mubr.f32.gmra.mxu0 %v1194
      %v1675 = vpop.f32.mrf.mxu0
      %v1676 = vadd.f32 %v1531, %v1675
      %v1677 = vpop.f32.mrf.mxu0
      %1678 = vdwg.mxu0
      %1679 = vmatprep.subr.mxu0 0.0
      %1680 = vmatpush1.msra.mxu0 %v1324
      %1681 = vmatprep.subr.mxu0 0.0
      %1682 = vmatpush1.msra.mxu0 %v1323
      %1683 = vmatprep.subr.mxu0 0.0
      %1684 = vmatpush1.msra.mxu0 %v1322
      %1685 = vmatprep.subr.mxu0 0.0
      %1686 = vmatpush1.msra.mxu0 %v1321
      %1687 = vmatprep.subr.mxu0 0.0
      %1688 = vmatpush1.msra.mxu0 %v1320
      %1689 = vmatprep.subr.mxu0 0.0
      %1690 = vmatpush1.msra.mxu0 %v1319
      %1691 = vmatprep.subr.mxu0 0.0
      %1692 = vmatpush1.msra.mxu0 %v1318
      %1693 = vmatprep.subr.mxu0 0.0
      %1694 = vmatpush1.msra.mxu0 %v1317
      %1695 = vmatprep.subr.mxu0 0.0
      %1696 = vmatpush1.msra.mxu0 %v1316
      %1697 = vmatprep.subr.mxu0 0.0
      %1698 = vmatpush1.msra.mxu0 %v1315
      %1699 = vmatprep.subr.mxu0 0.0
      %1700 = vmatpush1.msra.mxu0 %v1314
      %1701 = vmatprep.subr.mxu0 0.0
      %1702 = vmatpush1.msra.mxu0 %v1313
      %1703 = vmatprep.subr.mxu0 0.0
      %1704 = vmatpush1.msra.mxu0 %v1312
      %1705 = vmatprep.subr.mxu0 0.0
      %1706 = vmatpush1.msra.mxu0 %v1311
      %1707 = vmatprep.subr.mxu0 0.0
      %1708 = vmatpush1.msra.mxu0 %v1310
      %1709 = vmatprep.subr.mxu0 0.0
      %1710 = vmatpush1.msra.mxu0 %v1309
      %1711 = vmatprep.subr.mxu0 0.0
      %1712 = vmatpush2.msra.mxu0 %v1340
      %1713 = vmatprep.subr.mxu0 0.0
      %1714 = vmatpush2.msra.mxu0 %v1339
      %1715 = vmatprep.subr.mxu0 0.0
      %1716 = vmatpush2.msra.mxu0 %v1338
      %1717 = vmatprep.subr.mxu0 0.0
      %1718 = vmatpush2.msra.mxu0 %v1337
      %1719 = vmatprep.subr.mxu0 0.0
      %1720 = vmatpush2.msra.mxu0 %v1336
      %1721 = vmatprep.subr.mxu0 0.0
      %1722 = vmatpush2.msra.mxu0 %v1335
      %1723 = vmatprep.subr.mxu0 0.0
      %1724 = vmatpush2.msra.mxu0 %v1334
      %1725 = vmatprep.subr.mxu0 0.0
      %1726 = vmatpush2.msra.mxu0 %v1333
      %1727 = vmatprep.subr.mxu0 0.0
      %1728 = vmatpush2.msra.mxu0 %v1332
      %1729 = vmatprep.subr.mxu0 0.0
      %1730 = vmatpush2.msra.mxu0 %v1331
      %1731 = vmatprep.subr.mxu0 0.0
      %1732 = vmatpush2.msra.mxu0 %v1330
      %1733 = vmatprep.subr.mxu0 0.0
      %1734 = vmatpush2.msra.mxu0 %v1329
      %1735 = vmatprep.subr.mxu0 0.0
      %1736 = vmatpush2.msra.mxu0 %v1328
      %1737 = vmatprep.subr.mxu0 0.0
      %1738 = vmatpush2.msra.mxu0 %v1327
      %1739 = vmatprep.subr.mxu0 0.0
      %1740 = vmatpush2.msra.mxu0 %v1326
      %1741 = vmatprep.subr.mxu0 0.0
      %1742 = vmatpush2.msra.mxu0 %v1325
      %1743 = vmatprep.mubr.f32.mxu0 %v1162
      %1744 = vmatmul.mubr.f32.gmra.mxu0 %v1106
      %v1745 = vpop.f32.mrf.mxu0
      %v1746 = vadd.f32 %v1601, %v1745
      %v1747 = vpop.f32.mrf.mxu0
      %1748 = vmatprep.mubr.f32.mxu0 %v1164
      %1749 = vmatmul.mubr.f32.gmra.mxu0 %v1108
      %v1750 = vpop.f32.mrf.mxu0
      %v1751 = vadd.f32 %v1606, %v1750
      %v1752 = vpop.f32.mrf.mxu0
      %1753 = vmatprep.mubr.f32.mxu0 %v1167
      %1754 = vmatmul.mubr.f32.gmra.mxu0 %v1111
      %v1755 = vpop.f32.mrf.mxu0
      %v1756 = vadd.f32 %v1611, %v1755
      %v1757 = vpop.f32.mrf.mxu0
      %1758 = vmatprep.mubr.f32.mxu0 %v1169
      %1759 = vmatmul.mubr.f32.gmra.mxu0 %v1113
      %v1760 = vpop.f32.mrf.mxu0
      %v1761 = vadd.f32 %v1616, %v1760
      %v1762 = vpop.f32.mrf.mxu0
      %1763 = vmatprep.mubr.f32.mxu0 %v1172
      %1764 = vmatmul.mubr.f32.gmra.mxu0 %v1116
      %v1765 = vpop.f32.mrf.mxu0
      %v1766 = vadd.f32 %v1621, %v1765
      %v1767 = vpop.f32.mrf.mxu0
      %1768 = vmatprep.mubr.f32.mxu0 %v1174
      %1769 = vmatmul.mubr.f32.gmra.mxu0 %v1118
      %v1770 = vpop.f32.mrf.mxu0
      %v1771 = vadd.f32 %v1626, %v1770
      %v1772 = vpop.f32.mrf.mxu0
      %1773 = vmatprep.mubr.f32.mxu0 %v1177
      %1774 = vmatmul.mubr.f32.gmra.mxu0 %v1121
      %v1775 = vpop.f32.mrf.mxu0
      %v1776 = vadd.f32 %v1631, %v1775
      %v1777 = vpop.f32.mrf.mxu0
      %1778 = vmatprep.mubr.f32.mxu0 %v1179
      %1779 = vmatmul.mubr.f32.gmra.mxu0 %v1123
      %v1780 = vpop.f32.mrf.mxu0
      %v1781 = vadd.f32 %v1636, %v1780
      %v1782 = vpop.f32.mrf.mxu0
      %1783 = vmatprep.mubr.f32.mxu0 %v1182
      %1784 = vmatmul.mubr.f32.gmra.mxu0 %v1126
      %v1785 = vpop.f32.mrf.mxu0
      %v1786 = vadd.f32 %v1641, %v1785
      %v1787 = vpop.f32.mrf.mxu0
      %1788 = vmatprep.mubr.f32.mxu0 %v1184
      %1789 = vmatmul.mubr.f32.gmra.mxu0 %v1128
      %v1790 = vpop.f32.mrf.mxu0
      %v1791 = vadd.f32 %v1646, %v1790
      %v1792 = vpop.f32.mrf.mxu0
      %1793 = vmatprep.mubr.f32.mxu0 %v1187
      %1794 = vmatmul.mubr.f32.gmra.mxu0 %v1131
      %v1795 = vpop.f32.mrf.mxu0
      %v1796 = vadd.f32 %v1651, %v1795
      %v1797 = vpop.f32.mrf.mxu0
      %1798 = vmatprep.mubr.f32.mxu0 %v1189
      %1799 = vmatmul.mubr.f32.gmra.mxu0 %v1133
      %v1800 = vpop.f32.mrf.mxu0
      %v1801 = vadd.f32 %v1656, %v1800
      %v1802 = vpop.f32.mrf.mxu0
      %1803 = vmatprep.mubr.f32.mxu0 %v1192
      %1804 = vmatmul.mubr.f32.gmra.mxu0 %v1136
      %v1805 = vpop.f32.mrf.mxu0
      %v1806 = vadd.f32 %v1661, %v1805
      %v1807 = vpop.f32.mrf.mxu0
      %1808 = vmatprep.mubr.f32.mxu0 %v1194
      %1809 = vmatmul.mubr.f32.gmra.mxu0 %v1138
      %v1810 = vpop.f32.mrf.mxu0
      %v1811 = vadd.f32 %v1666, %v1810
      %v1812 = vpop.f32.mrf.mxu0
      %1813 = vmatprep.mubr.f32.mxu0 %v1223
      %1814 = vmatmul.mubr.f32.gmra.mxu0 %v1216
      %v1815 = vpop.f32.mrf.mxu0
      %v1816 = vadd.f32 %v1671, %v1815
      %v1817 = vpop.f32.mrf.mxu0
      %1818 = vmatprep.mubr.f32.mxu0 %v1225
      %1819 = vmatmul.mubr.f32.gmra.mxu0 %v1218
      %v1820 = vpop.f32.mrf.mxu0
      %v1821 = vadd.f32 %v1676, %v1820
      %v1822 = vpop.f32.mrf.mxu0
      %1823 = vdwg.mxu0
      %1824 = vmatprep.subr.mxu0 0.0
      %1825 = vmatpush1.msra.mxu0 %v1356
      %1826 = vmatprep.subr.mxu0 0.0
      %1827 = vmatpush1.msra.mxu0 %v1355
      %1828 = vmatprep.subr.mxu0 0.0
      %1829 = vmatpush1.msra.mxu0 %v1354
      %1830 = vmatprep.subr.mxu0 0.0
      %1831 = vmatpush1.msra.mxu0 %v1353
      %1832 = vmatprep.subr.mxu0 0.0
      %1833 = vmatpush1.msra.mxu0 %v1352
      %1834 = vmatprep.subr.mxu0 0.0
      %1835 = vmatpush1.msra.mxu0 %v1351
      %1836 = vmatprep.subr.mxu0 0.0
      %1837 = vmatpush1.msra.mxu0 %v1350
      %1838 = vmatprep.subr.mxu0 0.0
      %1839 = vmatpush1.msra.mxu0 %v1349
      %1840 = vmatprep.subr.mxu0 0.0
      %1841 = vmatpush1.msra.mxu0 %v1348
      %1842 = vmatprep.subr.mxu0 0.0
      %1843 = vmatpush1.msra.mxu0 %v1347
      %1844 = vmatprep.subr.mxu0 0.0
      %1845 = vmatpush1.msra.mxu0 %v1346
      %1846 = vmatprep.subr.mxu0 0.0
      %1847 = vmatpush1.msra.mxu0 %v1345
      %1848 = vmatprep.subr.mxu0 0.0
      %1849 = vmatpush1.msra.mxu0 %v1344
      %1850 = vmatprep.subr.mxu0 0.0
      %1851 = vmatpush1.msra.mxu0 %v1343
      %1852 = vmatprep.subr.mxu0 0.0
      %1853 = vmatpush1.msra.mxu0 %v1342
      %1854 = vmatprep.subr.mxu0 0.0
      %1855 = vmatpush1.msra.mxu0 %v1341
      %1856 = vmatprep.subr.mxu0 0.0
      %1857 = vmatpush2.msra.mxu0 %v1372
      %1858 = vmatprep.subr.mxu0 0.0
      %1859 = vmatpush2.msra.mxu0 %v1371
      %1860 = vmatprep.subr.mxu0 0.0
      %1861 = vmatpush2.msra.mxu0 %v1370
      %1862 = vmatprep.subr.mxu0 0.0
      %1863 = vmatpush2.msra.mxu0 %v1369
      %1864 = vmatprep.subr.mxu0 0.0
      %1865 = vmatpush2.msra.mxu0 %v1368
      %1866 = vmatprep.subr.mxu0 0.0
      %1867 = vmatpush2.msra.mxu0 %v1367
      %1868 = vmatprep.subr.mxu0 0.0
      %1869 = vmatpush2.msra.mxu0 %v1366
      %1870 = vmatprep.subr.mxu0 0.0
      %1871 = vmatpush2.msra.mxu0 %v1365
      %1872 = vmatprep.subr.mxu0 0.0
      %1873 = vmatpush2.msra.mxu0 %v1364
      %1874 = vmatprep.subr.mxu0 0.0
      %1875 = vmatpush2.msra.mxu0 %v1363
      %1876 = vmatprep.subr.mxu0 0.0
      %1877 = vmatpush2.msra.mxu0 %v1362
      %1878 = vmatprep.subr.mxu0 0.0
      %1879 = vmatpush2.msra.mxu0 %v1361
      %1880 = vmatprep.subr.mxu0 0.0
      %1881 = vmatpush2.msra.mxu0 %v1360
      %1882 = vmatprep.subr.mxu0 0.0
      %1883 = vmatpush2.msra.mxu0 %v1359
      %1884 = vmatprep.subr.mxu0 0.0
      %1885 = vmatpush2.msra.mxu0 %v1358
      %1886 = vmatprep.subr.mxu0 0.0
      %1887 = vmatpush2.msra.mxu0 %v1357
      %1888 = vmatprep.mubr.f32.mxu0 %v1111
      %1889 = vmatmul.mubr.f32.gmra.mxu0 %v1051
      %v1890 = vpop.f32.mrf.mxu0
      %v1891 = vadd.f32 %v1746, %v1890
      %v1892 = vpop.f32.mrf.mxu0
      %1893 = vmatprep.mubr.f32.mxu0 %v1113
      %1894 = vmatmul.mubr.f32.gmra.mxu0 %v1052
      %v1895 = vpop.f32.mrf.mxu0
      %v1896 = vadd.f32 %v1751, %v1895
      %v1897 = vpop.f32.mrf.mxu0
      %1898 = vmatprep.mubr.f32.mxu0 %v1116
      %1899 = vmatmul.mubr.f32.gmra.mxu0 %v1054
      %v1900 = vpop.f32.mrf.mxu0
      %v1901 = vadd.f32 %v1756, %v1900
      %v1902 = vpop.f32.mrf.mxu0
      %1903 = vmatprep.mubr.f32.mxu0 %v1118
      %1904 = vmatmul.mubr.f32.gmra.mxu0 %v1055
      %v1905 = vpop.f32.mrf.mxu0
      %v1906 = vadd.f32 %v1761, %v1905
      %v1907 = vpop.f32.mrf.mxu0
      %1908 = vmatprep.mubr.f32.mxu0 %v1121
      %1909 = vmatmul.mubr.f32.gmra.mxu0 %v1057
      %v1910 = vpop.f32.mrf.mxu0
      %v1911 = vadd.f32 %v1766, %v1910
      %v1912 = vpop.f32.mrf.mxu0
      %1913 = vmatprep.mubr.f32.mxu0 %v1123
      %1914 = vmatmul.mubr.f32.gmra.mxu0 %v1058
      %v1915 = vpop.f32.mrf.mxu0
      %v1916 = vadd.f32 %v1771, %v1915
      %v1917 = vpop.f32.mrf.mxu0
      %1918 = vmatprep.mubr.f32.mxu0 %v1126
      %1919 = vmatmul.mubr.f32.gmra.mxu0 %v1060
      %v1920 = vpop.f32.mrf.mxu0
      %v1921 = vadd.f32 %v1776, %v1920
      %v1922 = vpop.f32.mrf.mxu0
      %1923 = vmatprep.mubr.f32.mxu0 %v1128
      %1924 = vmatmul.mubr.f32.gmra.mxu0 %v1061
      %v1925 = vpop.f32.mrf.mxu0
      %v1926 = vadd.f32 %v1781, %v1925
      %v1927 = vpop.f32.mrf.mxu0
      %1928 = vmatprep.mubr.f32.mxu0 %v1131
      %1929 = vmatmul.mubr.f32.gmra.mxu0 %v1063
      %v1930 = vpop.f32.mrf.mxu0
      %v1931 = vadd.f32 %v1786, %v1930
      %v1932 = vpop.f32.mrf.mxu0
      %1933 = vmatprep.mubr.f32.mxu0 %v1133
      %1934 = vmatmul.mubr.f32.gmra.mxu0 %v1064
      %v1935 = vpop.f32.mrf.mxu0
      %v1936 = vadd.f32 %v1791, %v1935
      %v1937 = vpop.f32.mrf.mxu0
      %1938 = vmatprep.mubr.f32.mxu0 %v1136
      %1939 = vmatmul.mubr.f32.gmra.mxu0 %v1066
      %v1940 = vpop.f32.mrf.mxu0
      %v1941 = vadd.f32 %v1796, %v1940
      %v1942 = vpop.f32.mrf.mxu0
      %1943 = vmatprep.mubr.f32.mxu0 %v1138
      %1944 = vmatmul.mubr.f32.gmra.mxu0 %v1067
      %v1945 = vpop.f32.mrf.mxu0
      %v1946 = vadd.f32 %v1801, %v1945
      %v1947 = vpop.f32.mrf.mxu0
      %1948 = vmatprep.mubr.f32.mxu0 %v1216
      %1949 = vmatmul.mubr.f32.gmra.mxu0 %v1069
      %v1950 = vpop.f32.mrf.mxu0
      %v1951 = vadd.f32 %v1806, %v1950
      %v1952 = vpop.f32.mrf.mxu0
      %1953 = vmatprep.mubr.f32.mxu0 %v1218
      %1954 = vmatmul.mubr.f32.gmra.mxu0 %v1070
      %v1955 = vpop.f32.mrf.mxu0
      %v1956 = vadd.f32 %v1811, %v1955
      %v1957 = vpop.f32.mrf.mxu0
      %1958 = vmatprep.mubr.f32.mxu0 %v1233
      %1959 = vmatmul.mubr.f32.gmra.mxu0 %v1072
      %v1960 = vpop.f32.mrf.mxu0
      %v1961 = vadd.f32 %v1816, %v1960
      %v1962 = vpop.f32.mrf.mxu0
      %1963 = vmatprep.mubr.f32.mxu0 %v1235
      %1964 = vmatmul.mubr.f32.gmra.mxu0 %v1073
      %v1965 = vpop.f32.mrf.mxu0
      %v1966 = vadd.f32 %v1821, %v1965
      %v1967 = vpop.f32.mrf.mxu0
      %1968 = vdwg.mxu0
      %1969 = vmatprep.subr.mxu0 0.0
      %1970 = vmatpush1.msra.mxu0 %v1388
      %1971 = vmatprep.subr.mxu0 0.0
      %1972 = vmatpush1.msra.mxu0 %v1387
      %1973 = vmatprep.subr.mxu0 0.0
      %1974 = vmatpush1.msra.mxu0 %v1386
      %1975 = vmatprep.subr.mxu0 0.0
      %1976 = vmatpush1.msra.mxu0 %v1385
      %1977 = vmatprep.subr.mxu0 0.0
      %1978 = vmatpush1.msra.mxu0 %v1384
      %1979 = vmatprep.subr.mxu0 0.0
      %1980 = vmatpush1.msra.mxu0 %v1383
      %1981 = vmatprep.subr.mxu0 0.0
      %1982 = vmatpush1.msra.mxu0 %v1382
      %1983 = vmatprep.subr.mxu0 0.0
      %1984 = vmatpush1.msra.mxu0 %v1381
      %1985 = vmatprep.subr.mxu0 0.0
      %1986 = vmatpush1.msra.mxu0 %v1380
      %1987 = vmatprep.subr.mxu0 0.0
      %1988 = vmatpush1.msra.mxu0 %v1379
      %1989 = vmatprep.subr.mxu0 0.0
      %1990 = vmatpush1.msra.mxu0 %v1378
      %1991 = vmatprep.subr.mxu0 0.0
      %1992 = vmatpush1.msra.mxu0 %v1377
      %1993 = vmatprep.subr.mxu0 0.0
      %1994 = vmatpush1.msra.mxu0 %v1376
      %1995 = vmatprep.subr.mxu0 0.0
      %1996 = vmatpush1.msra.mxu0 %v1375
      %1997 = vmatprep.subr.mxu0 0.0
      %1998 = vmatpush1.msra.mxu0 %v1374
      %1999 = vmatprep.subr.mxu0 0.0
      %2000 = vmatpush1.msra.mxu0 %v1373
      %2001 = vmatprep.subr.mxu0 0.0
      %2002 = vmatpush2.msra.mxu0 0.0
      %2003 = vmatprep.subr.mxu0 0.0
      %2004 = vmatpush2.msra.mxu0 0.0
      %2005 = vmatprep.subr.mxu0 0.0
      %2006 = vmatpush2.msra.mxu0 0.0
      %2007 = vmatprep.subr.mxu0 0.0
      %2008 = vmatpush2.msra.mxu0 0.0
      %2009 = vmatprep.subr.mxu0 0.0
      %2010 = vmatpush2.msra.mxu0 0.0
      %2011 = vmatprep.subr.mxu0 0.0
      %2012 = vmatpush2.msra.mxu0 0.0
      %2013 = vmatprep.subr.mxu0 0.0
      %2014 = vmatpush2.msra.mxu0 0.0
      %2015 = vmatprep.subr.mxu0 0.0
      %2016 = vmatpush2.msra.mxu0 0.0
      %2017 = vmatprep.subr.mxu0 0.0
      %2018 = vmatpush2.msra.mxu0 0.0
      %2019 = vmatprep.subr.mxu0 0.0
      %2020 = vmatpush2.msra.mxu0 0.0
      %2021 = vmatprep.subr.mxu0 0.0
      %2022 = vmatpush2.msra.mxu0 0.0
      %2023 = vmatprep.subr.mxu0 0.0
      %2024 = vmatpush2.msra.mxu0 0.0
      %2025 = vmatprep.subr.mxu0 0.0
      %2026 = vmatpush2.msra.mxu0 0.0
      %2027 = vmatprep.subr.mxu0 0.0
      %2028 = vmatpush2.msra.mxu0 0.0
      %2029 = vmatprep.subr.mxu0 0.0
      %2030 = vmatpush2.msra.mxu0 0.0
      %2031 = vmatprep.subr.mxu0 0.0
      %2032 = vmatpush2.msra.mxu0 0.0
      %2033 = vmatprep.mubr.f32.mxu0 0.0
      %2034 = vmatmul.mubr.f32.gmra.mxu0 %v1167
      %v2035 = vpop.f32.mrf.mxu0
      %v2036 = vadd.f32 %v1891, %v2035
      %v2037 = vpop.f32.mrf.mxu0
      %2038 = vmatprep.mubr.f32.mxu0 0.0
      %2039 = vmatmul.mubr.f32.gmra.mxu0 %v1169
      %v2040 = vpop.f32.mrf.mxu0
      %v2041 = vadd.f32 %v1896, %v2040
      %v2042 = vpop.f32.mrf.mxu0
      %2043 = vmatprep.mubr.f32.mxu0 0.0
      %2044 = vmatmul.mubr.f32.gmra.mxu0 %v1172
      %v2045 = vpop.f32.mrf.mxu0
      %v2046 = vadd.f32 %v1901, %v2045
      %v2047 = vpop.f32.mrf.mxu0
      %2048 = vmatprep.mubr.f32.mxu0 0.0
      %2049 = vmatmul.mubr.f32.gmra.mxu0 %v1174
      %v2050 = vpop.f32.mrf.mxu0
      %v2051 = vadd.f32 %v1906, %v2050
      %v2052 = vpop.f32.mrf.mxu0
      %2053 = vmatprep.mubr.f32.mxu0 0.0
      %2054 = vmatmul.mubr.f32.gmra.mxu0 %v1177
      %v2055 = vpop.f32.mrf.mxu0
      %v2056 = vadd.f32 %v1911, %v2055
      %v2057 = vpop.f32.mrf.mxu0
      %2058 = vmatprep.mubr.f32.mxu0 0.0
      %2059 = vmatmul.mubr.f32.gmra.mxu0 %v1179
      %v2060 = vpop.f32.mrf.mxu0
      %v2061 = vadd.f32 %v1916, %v2060
      %v2062 = vpop.f32.mrf.mxu0
      %2063 = vmatprep.mubr.f32.mxu0 0.0
      %2064 = vmatmul.mubr.f32.gmra.mxu0 %v1182
      %v2065 = vpop.f32.mrf.mxu0
      %v2066 = vadd.f32 %v1921, %v2065
      %v2067 = vpop.f32.mrf.mxu0
      %2068 = vmatprep.mubr.f32.mxu0 0.0
      %2069 = vmatmul.mubr.f32.gmra.mxu0 %v1184
      %v2070 = vpop.f32.mrf.mxu0
      %v2071 = vadd.f32 %v1926, %v2070
      %v2072 = vpop.f32.mrf.mxu0
      %2073 = vmatprep.mubr.f32.mxu0 0.0
      %2074 = vmatmul.mubr.f32.gmra.mxu0 %v1187
      %v2075 = vpop.f32.mrf.mxu0
      %v2076 = vadd.f32 %v1931, %v2075
      %v2077 = vpop.f32.mrf.mxu0
      %2078 = vmatprep.mubr.f32.mxu0 0.0
      %2079 = vmatmul.mubr.f32.gmra.mxu0 %v1189
      %v2080 = vpop.f32.mrf.mxu0
      %v2081 = vadd.f32 %v1936, %v2080
      %v2082 = vpop.f32.mrf.mxu0
      %2083 = vmatprep.mubr.f32.mxu0 0.0
      %2084 = vmatmul.mubr.f32.gmra.mxu0 %v1192
      %v2085 = vpop.f32.mrf.mxu0
      %v2086 = vadd.f32 %v1941, %v2085
      %v2087 = vpop.f32.mrf.mxu0
      %2088 = vmatprep.mubr.f32.mxu0 0.0
      %2089 = vmatmul.mubr.f32.gmra.mxu0 %v1194
      %v2090 = vpop.f32.mrf.mxu0
      %v2091 = vadd.f32 %v1946, %v2090
      %v2092 = vpop.f32.mrf.mxu0
      %2093 = vmatprep.mubr.f32.mxu0 0.0
      %2094 = vmatmul.mubr.f32.gmra.mxu0 %v1223
      %v2095 = vpop.f32.mrf.mxu0
      %v2096 = vadd.f32 %v1951, %v2095
      %v2097 = vpop.f32.mrf.mxu0
      %2098 = vmatprep.mubr.f32.mxu0 0.0
      %2099 = vmatmul.mubr.f32.gmra.mxu0 %v1225
      %v2100 = vpop.f32.mrf.mxu0
      %v2101 = vadd.f32 %v1956, %v2100
      %v2102 = vpop.f32.mrf.mxu0
      %2103 = vmatprep.mubr.f32.mxu0 0.0
      %2104 = vmatmul.mubr.f32.gmra.mxu0 %v1240
      %v2105 = vpop.f32.mrf.mxu0
      %v2106 = vadd.f32 %v1961, %v2105
      %v2107 = vpop.f32.mrf.mxu0
      %2108 = vmatprep.mubr.f32.mxu0 0.0
      %2109 = vmatmul.mubr.f32.gmra.mxu0 %v1242
      %v2110 = vpop.f32.mrf.mxu0
      %v2111 = vadd.f32 %v1966, %v2110
      %v2112 = vpop.f32.mrf.mxu0
      %2113 = vdwg.mxu0
      %2114 = vmatprep.subr.mxu0 0.0
      %2115 = vmatpush1.msra.mxu0 %v916
      %2116 = vmatprep.subr.mxu0 0.0
      %2117 = vmatpush1.msra.mxu0 %v915
      %2118 = vmatprep.subr.mxu0 0.0
      %2119 = vmatpush1.msra.mxu0 %v914
      %2120 = vmatprep.subr.mxu0 0.0
      %2121 = vmatpush1.msra.mxu0 %v913
      %2122 = vmatprep.subr.mxu0 0.0
      %2123 = vmatpush1.msra.mxu0 %v912
      %2124 = vmatprep.subr.mxu0 0.0
      %2125 = vmatpush1.msra.mxu0 %v911
      %2126 = vmatprep.subr.mxu0 0.0
      %2127 = vmatpush1.msra.mxu0 %v910
      %2128 = vmatprep.subr.mxu0 0.0
      %2129 = vmatpush1.msra.mxu0 %v909
      %2130 = vmatprep.subr.mxu0 0.0
      %2131 = vmatpush1.msra.mxu0 %v908
      %2132 = vmatprep.subr.mxu0 0.0
      %2133 = vmatpush1.msra.mxu0 %v907
      %2134 = vmatprep.subr.mxu0 0.0
      %2135 = vmatpush1.msra.mxu0 %v906
      %2136 = vmatprep.subr.mxu0 0.0
      %2137 = vmatpush1.msra.mxu0 %v905
      %2138 = vmatprep.subr.mxu0 0.0
      %2139 = vmatpush1.msra.mxu0 %v904
      %2140 = vmatprep.subr.mxu0 0.0
      %2141 = vmatpush1.msra.mxu0 %v903
      %2142 = vmatprep.subr.mxu0 0.0
      %2143 = vmatpush1.msra.mxu0 %v902
      %2144 = vmatprep.subr.mxu0 0.0
      %2145 = vmatpush1.msra.mxu0 %v901
      %2146 = vmatprep.subr.mxu0 0.0
      %2147 = vmatpush2.msra.mxu0 %v932
      %2148 = vmatprep.subr.mxu0 0.0
      %2149 = vmatpush2.msra.mxu0 %v931
      %2150 = vmatprep.subr.mxu0 0.0
      %2151 = vmatpush2.msra.mxu0 %v930
      %2152 = vmatprep.subr.mxu0 0.0
      %2153 = vmatpush2.msra.mxu0 %v929
      %2154 = vmatprep.subr.mxu0 0.0
      %2155 = vmatpush2.msra.mxu0 %v928
      %2156 = vmatprep.subr.mxu0 0.0
      %2157 = vmatpush2.msra.mxu0 %v927
      %2158 = vmatprep.subr.mxu0 0.0
      %2159 = vmatpush2.msra.mxu0 %v926
      %2160 = vmatprep.subr.mxu0 0.0
      %2161 = vmatpush2.msra.mxu0 %v925
      %2162 = vmatprep.subr.mxu0 0.0
      %2163 = vmatpush2.msra.mxu0 %v924
      %2164 = vmatprep.subr.mxu0 0.0
      %2165 = vmatpush2.msra.mxu0 %v923
      %2166 = vmatprep.subr.mxu0 0.0
      %2167 = vmatpush2.msra.mxu0 %v922
      %2168 = vmatprep.subr.mxu0 0.0
      %2169 = vmatpush2.msra.mxu0 %v921
      %2170 = vmatprep.subr.mxu0 0.0
      %2171 = vmatpush2.msra.mxu0 %v920
      %2172 = vmatprep.subr.mxu0 0.0
      %2173 = vmatpush2.msra.mxu0 %v919
      %2174 = vmatprep.subr.mxu0 0.0
      %2175 = vmatpush2.msra.mxu0 %v918
      %2176 = vmatprep.subr.mxu0 0.0
      %2177 = vmatpush2.msra.mxu0 %v917
      %2178 = vmatprep.mubr.f32.mxu0 %v756
      %2179 = vmatmul.mubr.f32.gmra.mxu0 %v699
      %v2180 = vpop.f32.mrf.mxu0
      %v2181 = vadd.f32 %v2036, %v2180
      %v2182 = vpop.f32.mrf.mxu0
      %2183 = vmatprep.mubr.f32.mxu0 %v758
      %2184 = vmatmul.mubr.f32.gmra.mxu0 %v700
      %v2185 = vpop.f32.mrf.mxu0
      %v2186 = vadd.f32 %v2041, %v2185
      %v2187 = vpop.f32.mrf.mxu0
      %2188 = vmatprep.mubr.f32.mxu0 %v761
      %2189 = vmatmul.mubr.f32.gmra.mxu0 %v702
      %v2190 = vpop.f32.mrf.mxu0
      %v2191 = vadd.f32 %v2046, %v2190
      %v2192 = vpop.f32.mrf.mxu0
      %2193 = vmatprep.mubr.f32.mxu0 %v763
      %2194 = vmatmul.mubr.f32.gmra.mxu0 %v703
      %v2195 = vpop.f32.mrf.mxu0
      %v2196 = vadd.f32 %v2051, %v2195
      %v2197 = vpop.f32.mrf.mxu0
      %2198 = vmatprep.mubr.f32.mxu0 %v766
      %2199 = vmatmul.mubr.f32.gmra.mxu0 %v705
      %v2200 = vpop.f32.mrf.mxu0
      %v2201 = vadd.f32 %v2056, %v2200
      %v2202 = vpop.f32.mrf.mxu0
      %2203 = vmatprep.mubr.f32.mxu0 %v768
      %2204 = vmatmul.mubr.f32.gmra.mxu0 %v706
      %v2205 = vpop.f32.mrf.mxu0
      %v2206 = vadd.f32 %v2061, %v2205
      %v2207 = vpop.f32.mrf.mxu0
      %2208 = vmatprep.mubr.f32.mxu0 %v771
      %2209 = vmatmul.mubr.f32.gmra.mxu0 %v708
      %v2210 = vpop.f32.mrf.mxu0
      %v2211 = vadd.f32 %v2066, %v2210
      %v2212 = vpop.f32.mrf.mxu0
      %2213 = vmatprep.mubr.f32.mxu0 %v773
      %2214 = vmatmul.mubr.f32.gmra.mxu0 %v709
      %v2215 = vpop.f32.mrf.mxu0
      %v2216 = vadd.f32 %v2071, %v2215
      %v2217 = vpop.f32.mrf.mxu0
      %2218 = vmatprep.mubr.f32.mxu0 %v776
      %2219 = vmatmul.mubr.f32.gmra.mxu0 %v711
      %v2220 = vpop.f32.mrf.mxu0
      %v2221 = vadd.f32 %v2076, %v2220
      %v2222 = vpop.f32.mrf.mxu0
      %2223 = vmatprep.mubr.f32.mxu0 %v778
      %2224 = vmatmul.mubr.f32.gmra.mxu0 %v712
      %v2225 = vpop.f32.mrf.mxu0
      %v2226 = vadd.f32 %v2081, %v2225
      %v2227 = vpop.f32.mrf.mxu0
      %2228 = vmatprep.mubr.f32.mxu0 %v781
      %2229 = vmatmul.mubr.f32.gmra.mxu0 %v714
      %v2230 = vpop.f32.mrf.mxu0
      %v2231 = vadd.f32 %v2086, %v2230
      %v2232 = vpop.f32.mrf.mxu0
      %2233 = vmatprep.mubr.f32.mxu0 %v783
      %2234 = vmatmul.mubr.f32.gmra.mxu0 %v715
      %v2235 = vpop.f32.mrf.mxu0
      %v2236 = vadd.f32 %v2091, %v2235
      %v2237 = vpop.f32.mrf.mxu0
      %2238 = vmatprep.mubr.f32.mxu0 %v786
      %2239 = vmatmul.mubr.f32.gmra.mxu0 %v717
      %v2240 = vpop.f32.mrf.mxu0
      %v2241 = vadd.f32 %v2096, %v2240
      %v2242 = vpop.f32.mrf.mxu0
      %2243 = vmatprep.mubr.f32.mxu0 %v788
      %2244 = vmatmul.mubr.f32.gmra.mxu0 %v718
      %v2245 = vpop.f32.mrf.mxu0
      %v2246 = vadd.f32 %v2101, %v2245
      %v2247 = vpop.f32.mrf.mxu0
      %2248 = vmatprep.mubr.f32.mxu0 %v791
      %2249 = vmatmul.mubr.f32.gmra.mxu0 %v720
      %v2250 = vpop.f32.mrf.mxu0
      %v2251 = vadd.f32 %v2106, %v2250
      %v2252 = vpop.f32.mrf.mxu0
      %2253 = vmatprep.mubr.f32.mxu0 %v793
      %2254 = vmatmul.mubr.f32.gmra.mxu0 %v721
      %v2255 = vpop.f32.mrf.mxu0
      %v2256 = vadd.f32 %v2111, %v2255
      %v2257 = vpop.f32.mrf.mxu0
      %2258 = vdwg.mxu0
      %2259 = vmatprep.subr.mxu0 0.0
      %2260 = vmatpush1.msra.mxu0 %v948
      %2261 = vmatprep.subr.mxu0 0.0
      %2262 = vmatpush1.msra.mxu0 %v947
      %2263 = vmatprep.subr.mxu0 0.0
      %2264 = vmatpush1.msra.mxu0 %v946
      %2265 = vmatprep.subr.mxu0 0.0
      %2266 = vmatpush1.msra.mxu0 %v945
      %2267 = vmatprep.subr.mxu0 0.0
      %2268 = vmatpush1.msra.mxu0 %v944
      %2269 = vmatprep.subr.mxu0 0.0
      %2270 = vmatpush1.msra.mxu0 %v943
      %2271 = vmatprep.subr.mxu0 0.0
      %2272 = vmatpush1.msra.mxu0 %v942
      %2273 = vmatprep.subr.mxu0 0.0
      %2274 = vmatpush1.msra.mxu0 %v941
      %2275 = vmatprep.subr.mxu0 0.0
      %2276 = vmatpush1.msra.mxu0 %v940
      %2277 = vmatprep.subr.mxu0 0.0
      %2278 = vmatpush1.msra.mxu0 %v939
      %2279 = vmatprep.subr.mxu0 0.0
      %2280 = vmatpush1.msra.mxu0 %v938
      %2281 = vmatprep.subr.mxu0 0.0
      %2282 = vmatpush1.msra.mxu0 %v937
      %2283 = vmatprep.subr.mxu0 0.0
      %2284 = vmatpush1.msra.mxu0 %v936
      %2285 = vmatprep.subr.mxu0 0.0
      %2286 = vmatpush1.msra.mxu0 %v935
      %2287 = vmatprep.subr.mxu0 0.0
      %2288 = vmatpush1.msra.mxu0 %v934
      %2289 = vmatprep.subr.mxu0 0.0
      %2290 = vmatpush1.msra.mxu0 %v933
      %2291 = vmatprep.subr.mxu0 0.0
      %2292 = vmatpush2.msra.mxu0 %v964
      %2293 = vmatprep.subr.mxu0 0.0
      %2294 = vmatpush2.msra.mxu0 %v963
      %2295 = vmatprep.subr.mxu0 0.0
      %2296 = vmatpush2.msra.mxu0 %v962
      %2297 = vmatprep.subr.mxu0 0.0
      %2298 = vmatpush2.msra.mxu0 %v961
      %2299 = vmatprep.subr.mxu0 0.0
      %2300 = vmatpush2.msra.mxu0 %v960
      %2301 = vmatprep.subr.mxu0 0.0
      %2302 = vmatpush2.msra.mxu0 %v959
      %2303 = vmatprep.subr.mxu0 0.0
      %2304 = vmatpush2.msra.mxu0 %v958
      %2305 = vmatprep.subr.mxu0 0.0
      %2306 = vmatpush2.msra.mxu0 %v957
      %2307 = vmatprep.subr.mxu0 0.0
      %2308 = vmatpush2.msra.mxu0 %v956
      %2309 = vmatprep.subr.mxu0 0.0
      %2310 = vmatpush2.msra.mxu0 %v955
      %2311 = vmatprep.subr.mxu0 0.0
      %2312 = vmatpush2.msra.mxu0 %v954
      %2313 = vmatprep.subr.mxu0 0.0
      %2314 = vmatpush2.msra.mxu0 %v953
      %2315 = vmatprep.subr.mxu0 0.0
      %2316 = vmatpush2.msra.mxu0 %v952
      %2317 = vmatprep.subr.mxu0 0.0
      %2318 = vmatpush2.msra.mxu0 %v951
      %2319 = vmatprep.subr.mxu0 0.0
      %2320 = vmatpush2.msra.mxu0 %v950
      %2321 = vmatprep.subr.mxu0 0.0
      %2322 = vmatpush2.msra.mxu0 %v949
      %2323 = vmatprep.mubr.f32.mxu0 %v702
      %2324 = vmatmul.mubr.f32.gmra.mxu0 %v813
      %v2325 = vpop.f32.mrf.mxu0
      %v2326 = vadd.f32 %v2181, %v2325
      %v2327 = vpop.f32.mrf.mxu0
      %2328 = vmatprep.mubr.f32.mxu0 %v703
      %2329 = vmatmul.mubr.f32.gmra.mxu0 %v815
      %v2330 = vpop.f32.mrf.mxu0
      %v2331 = vadd.f32 %v2186, %v2330
      %v2332 = vpop.f32.mrf.mxu0
      %2333 = vmatprep.mubr.f32.mxu0 %v705
      %2334 = vmatmul.mubr.f32.gmra.mxu0 %v818
      %v2335 = vpop.f32.mrf.mxu0
      %v2336 = vadd.f32 %v2191, %v2335
      %v2337 = vpop.f32.mrf.mxu0
      %2338 = vmatprep.mubr.f32.mxu0 %v706
      %2339 = vmatmul.mubr.f32.gmra.mxu0 %v820
      %v2340 = vpop.f32.mrf.mxu0
      %v2341 = vadd.f32 %v2196, %v2340
      %v2342 = vpop.f32.mrf.mxu0
      %2343 = vmatprep.mubr.f32.mxu0 %v708
      %2344 = vmatmul.mubr.f32.gmra.mxu0 %v823
      %v2345 = vpop.f32.mrf.mxu0
      %v2346 = vadd.f32 %v2201, %v2345
      %v2347 = vpop.f32.mrf.mxu0
      %2348 = vmatprep.mubr.f32.mxu0 %v709
      %2349 = vmatmul.mubr.f32.gmra.mxu0 %v825
      %v2350 = vpop.f32.mrf.mxu0
      %v2351 = vadd.f32 %v2206, %v2350
      %v2352 = vpop.f32.mrf.mxu0
      %2353 = vmatprep.mubr.f32.mxu0 %v711
      %2354 = vmatmul.mubr.f32.gmra.mxu0 %v828
      %v2355 = vpop.f32.mrf.mxu0
      %v2356 = vadd.f32 %v2211, %v2355
      %v2357 = vpop.f32.mrf.mxu0
      %2358 = vmatprep.mubr.f32.mxu0 %v712
      %2359 = vmatmul.mubr.f32.gmra.mxu0 %v830
      %v2360 = vpop.f32.mrf.mxu0
      %v2361 = vadd.f32 %v2216, %v2360
      %v2362 = vpop.f32.mrf.mxu0
      %2363 = vmatprep.mubr.f32.mxu0 %v714
      %2364 = vmatmul.mubr.f32.gmra.mxu0 %v833
      %v2365 = vpop.f32.mrf.mxu0
      %v2366 = vadd.f32 %v2221, %v2365
      %v2367 = vpop.f32.mrf.mxu0
      %2368 = vmatprep.mubr.f32.mxu0 %v715
      %2369 = vmatmul.mubr.f32.gmra.mxu0 %v835
      %v2370 = vpop.f32.mrf.mxu0
      %v2371 = vadd.f32 %v2226, %v2370
      %v2372 = vpop.f32.mrf.mxu0
      %2373 = vmatprep.mubr.f32.mxu0 %v717
      %2374 = vmatmul.mubr.f32.gmra.mxu0 %v838
      %v2375 = vpop.f32.mrf.mxu0
      %v2376 = vadd.f32 %v2231, %v2375
      %v2377 = vpop.f32.mrf.mxu0
      %2378 = vmatprep.mubr.f32.mxu0 %v718
      %2379 = vmatmul.mubr.f32.gmra.mxu0 %v840
      %v2380 = vpop.f32.mrf.mxu0
      %v2381 = vadd.f32 %v2236, %v2380
      %v2382 = vpop.f32.mrf.mxu0
      %2383 = vmatprep.mubr.f32.mxu0 %v720
      %2384 = vmatmul.mubr.f32.gmra.mxu0 %v843
      %v2385 = vpop.f32.mrf.mxu0
      %v2386 = vadd.f32 %v2241, %v2385
      %v2387 = vpop.f32.mrf.mxu0
      %2388 = vmatprep.mubr.f32.mxu0 %v721
      %2389 = vmatmul.mubr.f32.gmra.mxu0 %v845
      %v2390 = vpop.f32.mrf.mxu0
      %v2391 = vadd.f32 %v2246, %v2390
      %v2392 = vpop.f32.mrf.mxu0
      %2393 = vmatprep.mubr.f32.mxu0 %v723
      %2394 = vmatmul.mubr.f32.gmra.mxu0 %v848
      %v2395 = vpop.f32.mrf.mxu0
      %v2396 = vadd.f32 %v2251, %v2395
      %v2397 = vpop.f32.mrf.mxu0
      %2398 = vmatprep.mubr.f32.mxu0 %v724
      %2399 = vmatmul.mubr.f32.gmra.mxu0 %v850
      %v2400 = vpop.f32.mrf.mxu0
      %v2401 = vadd.f32 %v2256, %v2400
      %v2402 = vpop.f32.mrf.mxu0
      %2403 = vdwg.mxu0
      %2404 = vmatprep.subr.mxu0 0.0
      %2405 = vmatpush1.msra.mxu0 %v980
      %2406 = vmatprep.subr.mxu0 0.0
      %2407 = vmatpush1.msra.mxu0 %v979
      %2408 = vmatprep.subr.mxu0 0.0
      %2409 = vmatpush1.msra.mxu0 %v978
      %2410 = vmatprep.subr.mxu0 0.0
      %2411 = vmatpush1.msra.mxu0 %v977
      %2412 = vmatprep.subr.mxu0 0.0
      %2413 = vmatpush1.msra.mxu0 %v976
      %2414 = vmatprep.subr.mxu0 0.0
      %2415 = vmatpush1.msra.mxu0 %v975
      %2416 = vmatprep.subr.mxu0 0.0
      %2417 = vmatpush1.msra.mxu0 %v974
      %2418 = vmatprep.subr.mxu0 0.0
      %2419 = vmatpush1.msra.mxu0 %v973
      %2420 = vmatprep.subr.mxu0 0.0
      %2421 = vmatpush1.msra.mxu0 %v972
      %2422 = vmatprep.subr.mxu0 0.0
      %2423 = vmatpush1.msra.mxu0 %v971
      %2424 = vmatprep.subr.mxu0 0.0
      %2425 = vmatpush1.msra.mxu0 %v970
      %2426 = vmatprep.subr.mxu0 0.0
      %2427 = vmatpush1.msra.mxu0 %v969
      %2428 = vmatprep.subr.mxu0 0.0
      %2429 = vmatpush1.msra.mxu0 %v968
      %2430 = vmatprep.subr.mxu0 0.0
      %2431 = vmatpush1.msra.mxu0 %v967
      %2432 = vmatprep.subr.mxu0 0.0
      %2433 = vmatpush1.msra.mxu0 %v966
      %2434 = vmatprep.subr.mxu0 0.0
      %2435 = vmatpush1.msra.mxu0 %v965
      %2436 = vmatprep.subr.mxu0 0.0
      %2437 = vmatpush2.msra.mxu0 %v996
      %2438 = vmatprep.subr.mxu0 0.0
      %2439 = vmatpush2.msra.mxu0 %v995
      %2440 = vmatprep.subr.mxu0 0.0
      %2441 = vmatpush2.msra.mxu0 %v994
      %2442 = vmatprep.subr.mxu0 0.0
      %2443 = vmatpush2.msra.mxu0 %v993
      %2444 = vmatprep.subr.mxu0 0.0
      %2445 = vmatpush2.msra.mxu0 %v992
      %2446 = vmatprep.subr.mxu0 0.0
      %2447 = vmatpush2.msra.mxu0 %v991
      %2448 = vmatprep.subr.mxu0 0.0
      %2449 = vmatpush2.msra.mxu0 %v990
      %2450 = vmatprep.subr.mxu0 0.0
      %2451 = vmatpush2.msra.mxu0 %v989
      %2452 = vmatprep.subr.mxu0 0.0
      %2453 = vmatpush2.msra.mxu0 %v988
      %2454 = vmatprep.subr.mxu0 0.0
      %2455 = vmatpush2.msra.mxu0 %v987
      %2456 = vmatprep.subr.mxu0 0.0
      %2457 = vmatpush2.msra.mxu0 %v986
      %2458 = vmatprep.subr.mxu0 0.0
      %2459 = vmatpush2.msra.mxu0 %v985
      %2460 = vmatprep.subr.mxu0 0.0
      %2461 = vmatpush2.msra.mxu0 %v984
      %2462 = vmatprep.subr.mxu0 0.0
      %2463 = vmatpush2.msra.mxu0 %v983
      %2464 = vmatprep.subr.mxu0 0.0
      %2465 = vmatpush2.msra.mxu0 %v982
      %2466 = vmatprep.subr.mxu0 0.0
      %2467 = vmatpush2.msra.mxu0 %v981
      %2468 = vmatprep.mubr.f32.mxu0 %v818
      %2469 = vmatmul.mubr.f32.gmra.mxu0 %v761
      %v2470 = vpop.f32.mrf.mxu0
      %v2471 = vadd.f32 %v2326, %v2470
      %v2472 = vpop.f32.mrf.mxu0
      %2473 = vmatprep.mubr.f32.mxu0 %v820
      %2474 = vmatmul.mubr.f32.gmra.mxu0 %v763
      %v2475 = vpop.f32.mrf.mxu0
      %v2476 = vadd.f32 %v2331, %v2475
      %v2477 = vpop.f32.mrf.mxu0
      %2478 = vmatprep.mubr.f32.mxu0 %v823
      %2479 = vmatmul.mubr.f32.gmra.mxu0 %v766
      %v2480 = vpop.f32.mrf.mxu0
      %v2481 = vadd.f32 %v2336, %v2480
      %v2482 = vpop.f32.mrf.mxu0
      %2483 = vmatprep.mubr.f32.mxu0 %v825
      %2484 = vmatmul.mubr.f32.gmra.mxu0 %v768
      %v2485 = vpop.f32.mrf.mxu0
      %v2486 = vadd.f32 %v2341, %v2485
      %v2487 = vpop.f32.mrf.mxu0
      %2488 = vmatprep.mubr.f32.mxu0 %v828
      %2489 = vmatmul.mubr.f32.gmra.mxu0 %v771
      %v2490 = vpop.f32.mrf.mxu0
      %v2491 = vadd.f32 %v2346, %v2490
      %v2492 = vpop.f32.mrf.mxu0
      %2493 = vmatprep.mubr.f32.mxu0 %v830
      %2494 = vmatmul.mubr.f32.gmra.mxu0 %v773
      %v2495 = vpop.f32.mrf.mxu0
      %v2496 = vadd.f32 %v2351, %v2495
      %v2497 = vpop.f32.mrf.mxu0
      %2498 = vmatprep.mubr.f32.mxu0 %v833
      %2499 = vmatmul.mubr.f32.gmra.mxu0 %v776
      %v2500 = vpop.f32.mrf.mxu0
      %v2501 = vadd.f32 %v2356, %v2500
      %v2502 = vpop.f32.mrf.mxu0
      %2503 = vmatprep.mubr.f32.mxu0 %v835
      %2504 = vmatmul.mubr.f32.gmra.mxu0 %v778
      %v2505 = vpop.f32.mrf.mxu0
      %v2506 = vadd.f32 %v2361, %v2505
      %v2507 = vpop.f32.mrf.mxu0
      %2508 = vmatprep.mubr.f32.mxu0 %v838
      %2509 = vmatmul.mubr.f32.gmra.mxu0 %v781
      %v2510 = vpop.f32.mrf.mxu0
      %v2511 = vadd.f32 %v2366, %v2510
      %v2512 = vpop.f32.mrf.mxu0
      %2513 = vmatprep.mubr.f32.mxu0 %v840
      %2514 = vmatmul.mubr.f32.gmra.mxu0 %v783
      %v2515 = vpop.f32.mrf.mxu0
      %v2516 = vadd.f32 %v2371, %v2515
      %v2517 = vpop.f32.mrf.mxu0
      %2518 = vmatprep.mubr.f32.mxu0 %v843
      %2519 = vmatmul.mubr.f32.gmra.mxu0 %v786
      %v2520 = vpop.f32.mrf.mxu0
      %v2521 = vadd.f32 %v2376, %v2520
      %v2522 = vpop.f32.mrf.mxu0
      %2523 = vmatprep.mubr.f32.mxu0 %v845
      %2524 = vmatmul.mubr.f32.gmra.mxu0 %v788
      %v2525 = vpop.f32.mrf.mxu0
      %v2526 = vadd.f32 %v2381, %v2525
      %v2527 = vpop.f32.mrf.mxu0
      %2528 = vmatprep.mubr.f32.mxu0 %v848
      %2529 = vmatmul.mubr.f32.gmra.mxu0 %v791
      %v2530 = vpop.f32.mrf.mxu0
      %v2531 = vadd.f32 %v2386, %v2530
      %v2532 = vpop.f32.mrf.mxu0
      %2533 = vmatprep.mubr.f32.mxu0 %v850
      %2534 = vmatmul.mubr.f32.gmra.mxu0 %v793
      %v2535 = vpop.f32.mrf.mxu0
      %v2536 = vadd.f32 %v2391, %v2535
      %v2537 = vpop.f32.mrf.mxu0
      %2538 = vmatprep.mubr.f32.mxu0 %v879
      %2539 = vmatmul.mubr.f32.gmra.mxu0 %v872
      %v2540 = vpop.f32.mrf.mxu0
      %v2541 = vadd.f32 %v2396, %v2540
      %v2542 = vpop.f32.mrf.mxu0
      %2543 = vmatprep.mubr.f32.mxu0 %v881
      %2544 = vmatmul.mubr.f32.gmra.mxu0 %v874
      %v2545 = vpop.f32.mrf.mxu0
      %v2546 = vadd.f32 %v2401, %v2545
      %v2547 = vpop.f32.mrf.mxu0
      %2548 = vdwg.mxu0
      %2549 = vmatprep.subr.mxu0 0.0
      %2550 = vmatpush1.msra.mxu0 %v1012
      %2551 = vmatprep.subr.mxu0 0.0
      %2552 = vmatpush1.msra.mxu0 %v1011
      %2553 = vmatprep.subr.mxu0 0.0
      %2554 = vmatpush1.msra.mxu0 %v1010
      %2555 = vmatprep.subr.mxu0 0.0
      %2556 = vmatpush1.msra.mxu0 %v1009
      %2557 = vmatprep.subr.mxu0 0.0
      %2558 = vmatpush1.msra.mxu0 %v1008
      %2559 = vmatprep.subr.mxu0 0.0
      %2560 = vmatpush1.msra.mxu0 %v1007
      %2561 = vmatprep.subr.mxu0 0.0
      %2562 = vmatpush1.msra.mxu0 %v1006
      %2563 = vmatprep.subr.mxu0 0.0
      %2564 = vmatpush1.msra.mxu0 %v1005
      %2565 = vmatprep.subr.mxu0 0.0
      %2566 = vmatpush1.msra.mxu0 %v1004
      %2567 = vmatprep.subr.mxu0 0.0
      %2568 = vmatpush1.msra.mxu0 %v1003
      %2569 = vmatprep.subr.mxu0 0.0
      %2570 = vmatpush1.msra.mxu0 %v1002
      %2571 = vmatprep.subr.mxu0 0.0
      %2572 = vmatpush1.msra.mxu0 %v1001
      %2573 = vmatprep.subr.mxu0 0.0
      %2574 = vmatpush1.msra.mxu0 %v1000
      %2575 = vmatprep.subr.mxu0 0.0
      %2576 = vmatpush1.msra.mxu0 %v999
      %2577 = vmatprep.subr.mxu0 0.0
      %2578 = vmatpush1.msra.mxu0 %v998
      %2579 = vmatprep.subr.mxu0 0.0
      %2580 = vmatpush1.msra.mxu0 %v997
      %2581 = vmatprep.subr.mxu0 0.0
      %2582 = vmatpush2.msra.mxu0 %v1028
      %2583 = vmatprep.subr.mxu0 0.0
      %2584 = vmatpush2.msra.mxu0 %v1027
      %2585 = vmatprep.subr.mxu0 0.0
      %2586 = vmatpush2.msra.mxu0 %v1026
      %2587 = vmatprep.subr.mxu0 0.0
      %2588 = vmatpush2.msra.mxu0 %v1025
      %2589 = vmatprep.subr.mxu0 0.0
      %2590 = vmatpush2.msra.mxu0 %v1024
      %2591 = vmatprep.subr.mxu0 0.0
      %2592 = vmatpush2.msra.mxu0 %v1023
      %2593 = vmatprep.subr.mxu0 0.0
      %2594 = vmatpush2.msra.mxu0 %v1022
      %2595 = vmatprep.subr.mxu0 0.0
      %2596 = vmatpush2.msra.mxu0 %v1021
      %2597 = vmatprep.subr.mxu0 0.0
      %2598 = vmatpush2.msra.mxu0 %v1020
      %2599 = vmatprep.subr.mxu0 0.0
      %2600 = vmatpush2.msra.mxu0 %v1019
      %2601 = vmatprep.subr.mxu0 0.0
      %2602 = vmatpush2.msra.mxu0 %v1018
      %2603 = vmatprep.subr.mxu0 0.0
      %2604 = vmatpush2.msra.mxu0 %v1017
      %2605 = vmatprep.subr.mxu0 0.0
      %2606 = vmatpush2.msra.mxu0 %v1016
      %2607 = vmatprep.subr.mxu0 0.0
      %2608 = vmatpush2.msra.mxu0 %v1015
      %2609 = vmatprep.subr.mxu0 0.0
      %2610 = vmatpush2.msra.mxu0 %v1014
      %2611 = vmatprep.subr.mxu0 0.0
      %2612 = vmatpush2.msra.mxu0 %v1013
      %2613 = vmatprep.mubr.f32.mxu0 %v766
      %2614 = vmatmul.mubr.f32.gmra.mxu0 %v705
      %v2615 = vpop.f32.mrf.mxu0
      %v2616 = vadd.f32 %v2471, %v2615
      %v2617 = vpop.f32.mrf.mxu0
      %2618 = vmatprep.mubr.f32.mxu0 %v768
      %2619 = vmatmul.mubr.f32.gmra.mxu0 %v706
      %v2620 = vpop.f32.mrf.mxu0
      %v2621 = vadd.f32 %v2476, %v2620
      %v2622 = vpop.f32.mrf.mxu0
      %2623 = vmatprep.mubr.f32.mxu0 %v771
      %2624 = vmatmul.mubr.f32.gmra.mxu0 %v708
      %v2625 = vpop.f32.mrf.mxu0
      %v2626 = vadd.f32 %v2481, %v2625
      %v2627 = vpop.f32.mrf.mxu0
      %2628 = vmatprep.mubr.f32.mxu0 %v773
      %2629 = vmatmul.mubr.f32.gmra.mxu0 %v709
      %v2630 = vpop.f32.mrf.mxu0
      %v2631 = vadd.f32 %v2486, %v2630
      %v2632 = vpop.f32.mrf.mxu0
      %2633 = vmatprep.mubr.f32.mxu0 %v776
      %2634 = vmatmul.mubr.f32.gmra.mxu0 %v711
      %v2635 = vpop.f32.mrf.mxu0
      %v2636 = vadd.f32 %v2491, %v2635
      %v2637 = vpop.f32.mrf.mxu0
      %2638 = vmatprep.mubr.f32.mxu0 %v778
      %2639 = vmatmul.mubr.f32.gmra.mxu0 %v712
      %v2640 = vpop.f32.mrf.mxu0
      %v2641 = vadd.f32 %v2496, %v2640
      %v2642 = vpop.f32.mrf.mxu0
      %2643 = vmatprep.mubr.f32.mxu0 %v781
      %2644 = vmatmul.mubr.f32.gmra.mxu0 %v714
      %v2645 = vpop.f32.mrf.mxu0
      %v2646 = vadd.f32 %v2501, %v2645
      %v2647 = vpop.f32.mrf.mxu0
      %2648 = vmatprep.mubr.f32.mxu0 %v783
      %2649 = vmatmul.mubr.f32.gmra.mxu0 %v715
      %v2650 = vpop.f32.mrf.mxu0
      %v2651 = vadd.f32 %v2506, %v2650
      %v2652 = vpop.f32.mrf.mxu0
      %2653 = vmatprep.mubr.f32.mxu0 %v786
      %2654 = vmatmul.mubr.f32.gmra.mxu0 %v717
      %v2655 = vpop.f32.mrf.mxu0
      %v2656 = vadd.f32 %v2511, %v2655
      %v2657 = vpop.f32.mrf.mxu0
      %2658 = vmatprep.mubr.f32.mxu0 %v788
      %2659 = vmatmul.mubr.f32.gmra.mxu0 %v718
      %v2660 = vpop.f32.mrf.mxu0
      %v2661 = vadd.f32 %v2516, %v2660
      %v2662 = vpop.f32.mrf.mxu0
      %2663 = vmatprep.mubr.f32.mxu0 %v791
      %2664 = vmatmul.mubr.f32.gmra.mxu0 %v720
      %v2665 = vpop.f32.mrf.mxu0
      %v2666 = vadd.f32 %v2521, %v2665
      %v2667 = vpop.f32.mrf.mxu0
      %2668 = vmatprep.mubr.f32.mxu0 %v793
      %2669 = vmatmul.mubr.f32.gmra.mxu0 %v721
      %v2670 = vpop.f32.mrf.mxu0
      %v2671 = vadd.f32 %v2526, %v2670
      %v2672 = vpop.f32.mrf.mxu0
      %2673 = vmatprep.mubr.f32.mxu0 %v872
      %2674 = vmatmul.mubr.f32.gmra.mxu0 %v723
      %v2675 = vpop.f32.mrf.mxu0
      %v2676 = vadd.f32 %v2531, %v2675
      %v2677 = vpop.f32.mrf.mxu0
      %2678 = vmatprep.mubr.f32.mxu0 %v874
      %2679 = vmatmul.mubr.f32.gmra.mxu0 %v724
      %v2680 = vpop.f32.mrf.mxu0
      %v2681 = vadd.f32 %v2536, %v2680
      %v2682 = vpop.f32.mrf.mxu0
      %2683 = vmatprep.mubr.f32.mxu0 %v889
      %2684 = vmatmul.mubr.f32.gmra.mxu0 %v726
      %v2685 = vpop.f32.mrf.mxu0
      %v2686 = vadd.f32 %v2541, %v2685
      %v2687 = vpop.f32.mrf.mxu0
      %2688 = vmatprep.mubr.f32.mxu0 %v891
      %2689 = vmatmul.mubr.f32.gmra.mxu0 %v727
      %v2690 = vpop.f32.mrf.mxu0
      %v2691 = vadd.f32 %v2546, %v2690
      %v2692 = vpop.f32.mrf.mxu0
      %2693 = vdwg.mxu0
      %2694 = vmatprep.subr.mxu0 0.0
      %2695 = vmatpush1.msra.mxu0 %v1044
      %2696 = vmatprep.subr.mxu0 0.0
      %2697 = vmatpush1.msra.mxu0 %v1043
      %2698 = vmatprep.subr.mxu0 0.0
      %2699 = vmatpush1.msra.mxu0 %v1042
      %2700 = vmatprep.subr.mxu0 0.0
      %2701 = vmatpush1.msra.mxu0 %v1041
      %2702 = vmatprep.subr.mxu0 0.0
      %2703 = vmatpush1.msra.mxu0 %v1040
      %2704 = vmatprep.subr.mxu0 0.0
      %2705 = vmatpush1.msra.mxu0 %v1039
      %2706 = vmatprep.subr.mxu0 0.0
      %2707 = vmatpush1.msra.mxu0 %v1038
      %2708 = vmatprep.subr.mxu0 0.0
      %2709 = vmatpush1.msra.mxu0 %v1037
      %2710 = vmatprep.subr.mxu0 0.0
      %2711 = vmatpush1.msra.mxu0 %v1036
      %2712 = vmatprep.subr.mxu0 0.0
      %2713 = vmatpush1.msra.mxu0 %v1035
      %2714 = vmatprep.subr.mxu0 0.0
      %2715 = vmatpush1.msra.mxu0 %v1034
      %2716 = vmatprep.subr.mxu0 0.0
      %2717 = vmatpush1.msra.mxu0 %v1033
      %2718 = vmatprep.subr.mxu0 0.0
      %2719 = vmatpush1.msra.mxu0 %v1032
      %2720 = vmatprep.subr.mxu0 0.0
      %2721 = vmatpush1.msra.mxu0 %v1031
      %2722 = vmatprep.subr.mxu0 0.0
      %2723 = vmatpush1.msra.mxu0 %v1030
      %2724 = vmatprep.subr.mxu0 0.0
      %2725 = vmatpush1.msra.mxu0 %v1029
      %2726 = vmatprep.subr.mxu0 0.0
      %2727 = vmatpush2.msra.mxu0 0.0
      %2728 = vmatprep.subr.mxu0 0.0
      %2729 = vmatpush2.msra.mxu0 0.0
      %2730 = vmatprep.subr.mxu0 0.0
      %2731 = vmatpush2.msra.mxu0 0.0
      %2732 = vmatprep.subr.mxu0 0.0
      %2733 = vmatpush2.msra.mxu0 0.0
      %2734 = vmatprep.subr.mxu0 0.0
      %2735 = vmatpush2.msra.mxu0 0.0
      %2736 = vmatprep.subr.mxu0 0.0
      %2737 = vmatpush2.msra.mxu0 0.0
      %2738 = vmatprep.subr.mxu0 0.0
      %2739 = vmatpush2.msra.mxu0 0.0
      %2740 = vmatprep.subr.mxu0 0.0
      %2741 = vmatpush2.msra.mxu0 0.0
      %2742 = vmatprep.subr.mxu0 0.0
      %2743 = vmatpush2.msra.mxu0 0.0
      %2744 = vmatprep.subr.mxu0 0.0
      %2745 = vmatpush2.msra.mxu0 0.0
      %2746 = vmatprep.subr.mxu0 0.0
      %2747 = vmatpush2.msra.mxu0 0.0
      %2748 = vmatprep.subr.mxu0 0.0
      %2749 = vmatpush2.msra.mxu0 0.0
      %2750 = vmatprep.subr.mxu0 0.0
      %2751 = vmatpush2.msra.mxu0 0.0
      %2752 = vmatprep.subr.mxu0 0.0
      %2753 = vmatpush2.msra.mxu0 0.0
      %2754 = vmatprep.subr.mxu0 0.0
      %2755 = vmatpush2.msra.mxu0 0.0
      %2756 = vmatprep.subr.mxu0 0.0
      %2757 = vmatpush2.msra.mxu0 0.0
      %2758 = vmatprep.mubr.f32.mxu0 0.0
      %2759 = vmatmul.mubr.f32.gmra.mxu0 %v823
      %v2760 = vpop.f32.mrf.mxu0
      %v2761 = vadd.f32 %v2616, %v2760
      %v2762 = vpop.f32.mrf.mxu0
      %2763 = vmatprep.mubr.f32.mxu0 0.0
      %2764 = vmatmul.mubr.f32.gmra.mxu0 %v825
      %v2765 = vpop.f32.mrf.mxu0
      %v2766 = vadd.f32 %v2621, %v2765
      %v2767 = vpop.f32.mrf.mxu0
      %2768 = vmatprep.mubr.f32.mxu0 0.0
      %2769 = vmatmul.mubr.f32.gmra.mxu0 %v828
      %v2770 = vpop.f32.mrf.mxu0
      %v2771 = vadd.f32 %v2626, %v2770
      %v2772 = vpop.f32.mrf.mxu0
      %2773 = vmatprep.mubr.f32.mxu0 0.0
      %2774 = vmatmul.mubr.f32.gmra.mxu0 %v830
      %v2775 = vpop.f32.mrf.mxu0
      %v2776 = vadd.f32 %v2631, %v2775
      %v2777 = vpop.f32.mrf.mxu0
      %2778 = vmatprep.mubr.f32.mxu0 0.0
      %2779 = vmatmul.mubr.f32.gmra.mxu0 %v833
      %v2780 = vpop.f32.mrf.mxu0
      %v2781 = vadd.f32 %v2636, %v2780
      %v2782 = vpop.f32.mrf.mxu0
      %2783 = vmatprep.mubr.f32.mxu0 0.0
      %2784 = vmatmul.mubr.f32.gmra.mxu0 %v835
      %v2785 = vpop.f32.mrf.mxu0
      %v2786 = vadd.f32 %v2641, %v2785
      %v2787 = vpop.f32.mrf.mxu0
      %2788 = vmatprep.mubr.f32.mxu0 0.0
      %2789 = vmatmul.mubr.f32.gmra.mxu0 %v838
      %v2790 = vpop.f32.mrf.mxu0
      %v2791 = vadd.f32 %v2646, %v2790
      %v2792 = vpop.f32.mrf.mxu0
      %2793 = vmatprep.mubr.f32.mxu0 0.0
      %2794 = vmatmul.mubr.f32.gmra.mxu0 %v840
      %v2795 = vpop.f32.mrf.mxu0
      %v2796 = vadd.f32 %v2651, %v2795
      %v2797 = vpop.f32.mrf.mxu0
      %2798 = vmatprep.mubr.f32.mxu0 0.0
      %2799 = vmatmul.mubr.f32.gmra.mxu0 %v843
      %v2800 = vpop.f32.mrf.mxu0
      %v2801 = vadd.f32 %v2656, %v2800
      %v2802 = vpop.f32.mrf.mxu0
      %2803 = vmatprep.mubr.f32.mxu0 0.0
      %2804 = vmatmul.mubr.f32.gmra.mxu0 %v845
      %v2805 = vpop.f32.mrf.mxu0
      %v2806 = vadd.f32 %v2661, %v2805
      %v2807 = vpop.f32.mrf.mxu0
      %2808 = vmatprep.mubr.f32.mxu0 0.0
      %2809 = vmatmul.mubr.f32.gmra.mxu0 %v848
      %v2810 = vpop.f32.mrf.mxu0
      %v2811 = vadd.f32 %v2666, %v2810
      %v2812 = vpop.f32.mrf.mxu0
      %2813 = vmatprep.mubr.f32.mxu0 0.0
      %2814 = vmatmul.mubr.f32.gmra.mxu0 %v850
      %v2815 = vpop.f32.mrf.mxu0
      %v2816 = vadd.f32 %v2671, %v2815
      %v2817 = vpop.f32.mrf.mxu0
      %2818 = vmatprep.mubr.f32.mxu0 0.0
      %2819 = vmatmul.mubr.f32.gmra.mxu0 %v879
      %v2820 = vpop.f32.mrf.mxu0
      %v2821 = vadd.f32 %v2676, %v2820
      %v2822 = vpop.f32.mrf.mxu0
      %2823 = vmatprep.mubr.f32.mxu0 0.0
      %2824 = vmatmul.mubr.f32.gmra.mxu0 %v881
      %v2825 = vpop.f32.mrf.mxu0
      %v2826 = vadd.f32 %v2681, %v2825
      %v2827 = vpop.f32.mrf.mxu0
      %2828 = vmatprep.mubr.f32.mxu0 0.0
      %2829 = vmatmul.mubr.f32.gmra.mxu0 %v896
      %v2830 = vpop.f32.mrf.mxu0
      %v2831 = vadd.f32 %v2686, %v2830
      %v2832 = vpop.f32.mrf.mxu0
      %2833 = vmatprep.mubr.f32.mxu0 0.0
      %2834 = vmatmul.mubr.f32.gmra.mxu0 %v898
      %v2835 = vpop.f32.mrf.mxu0
      %v2836 = vadd.f32 %v2691, %v2835
      %v2837 = vpop.f32.mrf.mxu0
      %2838 = vdwg.mxu0
      %v2839 = vld [vmem:[%s8] sm:$0x1]
      %v2841 = vlaneseq
      %v2842 = vshrl.u32 %v2841, 7
      %v2843 = vsub.s32 0, %v2842
      %v2844 = vrot.slane %v2839, %v2843
      %v2846 = vmul.f32 %v2761, %v2844
      %v2847 = vmul.f32 %v2766, %v2844
      %v2848 = vmul.f32 %v2771, %v2844
      %v2849 = vmul.f32 %v2776, %v2844
      %v2850 = vmul.f32 %v2781, %v2844
      %v2851 = vmul.f32 %v2786, %v2844
      %v2852 = vmul.f32 %v2791, %v2844
      %v2853 = vmul.f32 %v2796, %v2844
      %v2854 = vmul.f32 %v2801, %v2844
      %v2855 = vmul.f32 %v2806, %v2844
      %v2856 = vmul.f32 %v2811, %v2844
      %v2857 = vmul.f32 %v2816, %v2844
      %v2858 = vmul.f32 %v2821, %v2844
      %v2859 = vmul.f32 %v2826, %v2844
      %v2860 = vmul.f32 %v2831, %v2844
      %v2861 = vmul.f32 %v2836, %v2844
      %v2862 = vld [vmem:[%s9] sm:$0x1]
      %v2864 = vlaneseq
      %v2865 = vshrl.u32 %v2864, 7
      %v2866 = vsub.s32 0, %v2865
      %v2867 = vrot.slane %v2862, %v2866
      %v2869 = vadd.f32 %v2846, %v2867
      %v2870 = vadd.f32 %v2847, %v2867
      %v2871 = vadd.f32 %v2848, %v2867
      %v2872 = vadd.f32 %v2849, %v2867
      %v2873 = vadd.f32 %v2850, %v2867
      %v2874 = vadd.f32 %v2851, %v2867
      %v2875 = vadd.f32 %v2852, %v2867
      %v2876 = vadd.f32 %v2853, %v2867
      %v2877 = vadd.f32 %v2854, %v2867
      %v2878 = vadd.f32 %v2855, %v2867
      %v2879 = vadd.f32 %v2856, %v2867
      %v2880 = vadd.f32 %v2857, %v2867
      %v2881 = vadd.f32 %v2858, %v2867
      %v2882 = vadd.f32 %v2859, %v2867
      %v2883 = vadd.f32 %v2860, %v2867
      %v2884 = vadd.f32 %v2861, %v2867
      %v2885 = vmax.f32 %v2869, 0.0
      %v2886 = vmax.f32 %v2870, 0.0
      %v2887 = vmax.f32 %v2871, 0.0
      %v2888 = vmax.f32 %v2872, 0.0
      %v2889 = vmax.f32 %v2873, 0.0
      %v2890 = vmax.f32 %v2874, 0.0
      %v2891 = vmax.f32 %v2875, 0.0
      %v2892 = vmax.f32 %v2876, 0.0
      %v2893 = vmax.f32 %v2877, 0.0
      %v2894 = vmax.f32 %v2878, 0.0
      %v2895 = vmax.f32 %v2879, 0.0
      %v2896 = vmax.f32 %v2880, 0.0
      %v2897 = vmax.f32 %v2881, 0.0
      %v2898 = vmax.f32 %v2882, 0.0
      %v2899 = vmax.f32 %v2883, 0.0
      %v2900 = vmax.f32 %v2884, 0.0
      %2901 = vst [vmem:[%s697] sm:$0xff] %v2885
      %2902 = vst [vmem:[%s697 + $0x8] sm:$0xff] %v2886
      %2903 = vst [vmem:[%s697 + $0x10] sm:$0xff] %v2887
      %2904 = vst [vmem:[%s697 + $0x18] sm:$0xff] %v2888
      %2905 = vst [vmem:[%s697 + $0x20] sm:$0xff] %v2889
      %2906 = vst [vmem:[%s697 + $0x28] sm:$0xff] %v2890
      %2907 = vst [vmem:[%s697 + $0x30] sm:$0xff] %v2891
      %2908 = vst [vmem:[%s697 + $0x38] sm:$0xff] %v2892
      %2909 = vst [vmem:[%s697 + $0x40] sm:$0xff] %v2893
      %2910 = vst [vmem:[%s697 + $0x48] sm:$0xff] %v2894
      %2911 = vst [vmem:[%s697 + $0x50] sm:$0xff] %v2895
      %2912 = vst [vmem:[%s697 + $0x58] sm:$0xff] %v2896
      %2913 = vst [vmem:[%s697 + $0x60] sm:$0xff] %v2897
      %2914 = vst [vmem:[%s697 + $0x68] sm:$0xff] %v2898
      %2915 = vst [vmem:[%s697 + $0x70] sm:$0xff] %v2899
      %2916 = vst [vmem:[%s697 + $0x78] sm:$0xff] %v2900
      %s2917 = smul.u32 8, %s26
      %p2918 = scmp.lt.s32.totalorder %s25, 1
      %s2919 = scalar_select %p2918, %s25, 1
      %p2920 = scmp.lt.s32.totalorder %s2917, 15
      %s2921 = scalar_select %p2920, %s2917, 15
      %s2922 = smul.addr %s2921, 2
      %s2923 = smul.addr %s2919, 32
      %s2924 = sadd.s32 %s2922, %s2923
      %s2925 = smul.addr %s2924, 8
      %s2926 = scalar_lea.vmem %s10, %s2925
      // Predicated region
      $region61: #{upsample_forward.4} parent=59 // pred_check
        %p2927 = pneg %p325
      $region62: #{upsample_forward.4} parent=59 // pred_check_branch
        %2929 = sbr.rel (%p2927) target = $region64
      $region63: #{upsample_forward.4} parent=59 // pred_region
        %s2930 = smul.u32 8, %s26
      $region64: #{upsample_forward.4} parent=59 // pred_fallthru
        _
    $region60: #{upsample_forward.4} parent=5 // pred_fallthru
      _
    %p2931 = scmp.le.s32.totalorder 2, %s16
    // Predicated region
    $region65: #{upsample_forward.4} parent=5 // pred_check
      %p2932 = pneg %p2931
    $region66: #{upsample_forward.4} parent=5 // pred_check_branch
      %2934 = sbr.rel (%p2932) target = $region68
    $region67: #{upsample_forward.4} parent=5 // pred_region
      %s2935 = ssub.s32 %s16, 2
      // Predicated region
      $region69: #{upsample_forward.4} parent=67 // pred_check
        %p2936 = pneg %p331
      $region70: #{upsample_forward.4} parent=67 // pred_check_branch
        %2938 = sbr.rel (%p2936) target = $region72
      $region71: #{upsample_forward.4} parent=67 // pred_region
        %s2939 = smul.u32 8, %s28
        %p2940 = scmp.lt.s32.totalorder %s27, 1
        %s2941 = scalar_select %p2940, %s27, 1
        %p2942 = scmp.lt.s32.totalorder %s2939, 15
        %s2943 = scalar_select %p2942, %s2939, 15
        %s2944 = smul.addr %s2943, 2
        %s2945 = smul.addr %s2941, 32
        %s2946 = sadd.s32 %s2944, %s2945
        %s2947 = smul.addr %s2946, 8
        %s2948 = scalar_lea.vmem %s10, %s2947
      $region72: #{upsample_forward.4} parent=67 // pred_fallthru
        _
    $region68: #{upsample_forward.4} parent=5 // pred_fallthru
      _
  $region6: #{upsample_forward.4} parent=0 // loop_footer
    %s20 = sadd.s32 1, %s16
  $region7: #{upsample_forward.4} parent=0 // loop_footer_branch
    %15 = sbr.rel target = $region3
  $region8: #{upsample_forward.4} parent=0 // loop_exit
    _

</llo_original>
